<compile_context>
chip_gen: v5e
topology: v5e:2x2
jax: 0.10.0
libtpu: 0.0.40
codegen_flags: <defaults>
</compile_context>

<pallas_src>
import jax
import jax.numpy as jnp
from jax.experimental import pallas as pl
from jax.experimental.pallas import tpu as pltpu

EPS = 1e-5  # PyTorch InstanceNorm2d default


def _resnet_block_kernel(xpad_ref, w1_ref, w2_ref, o_ref, pad_sc):
    # xpad_ref: (H+2, W+2, C) f32 reflect-padded input (this batch element)
    # w*_ref  : (9*C, C)      bf16 im2col weights, row index = (3*dy+dx)*C + cin
    # o_ref   : (H, W, C)     f32 output
    # pad_sc  : (H+2, W+2, C) f32 VMEM scratch for the in-kernel reflection pad
    Hp, Wp, C = xpad_ref.shape
    H, W = Hp - 2, Wp - 2
    HW = H * W

    def conv3x3(src_ref, w_ref):
        # im2col: gather the 9 shifted (H, W, C) views, concat on the channel
        # (lane) axis, flatten HW onto sublanes, and do ONE MXU matmul with a
        # 9C-deep contraction.  bf16 inputs, f32 accumulation.
        cols = [src_ref[dy:dy + H, dx:dx + W, :]
                for dy in range(3) for dx in range(3)]
        patches = jnp.concatenate(cols, axis=-1).reshape(HW, 9 * C)
        return jnp.dot(patches.astype(jnp.bfloat16), w_ref[...],
                       preferred_element_type=jnp.float32)        # (HW, C) f32

    def instance_norm(y):  # y: (HW, C) f32, stats over the spatial axis
        mean = jnp.mean(y, axis=0, keepdims=True)
        var = jnp.mean((y - mean) ** 2, axis=0, keepdims=True)
        return (y - mean) * jax.lax.rsqrt(var + EPS)

    # ---------------- conv1 -> InstanceNorm -> ReLU -------------------------
    # (conv bias omitted: a per-channel bias cancels exactly in affine-free IN)
    h = jnp.maximum(instance_norm(conv3x3(xpad_ref, w1_ref)), 0.0)

    # ---------------- in-kernel ReflectionPad2d(1) of h ---------------------
    h3 = h.reshape(H, W, C)
    pad_sc[1:H + 1, 1:W + 1, :] = h3
    pad_sc[0:1, 1:W + 1, :] = h3[1:2, :, :]                  # top row  <- row 1
    pad_sc[H + 1:H + 2, 1:W + 1, :] = h3[H - 2:H - 1, :, :]  # bot row  <- row H-2
    pad_sc[:, 0:1, :] = pad_sc[:, 2:3, :]                    # left col <- col 1
    pad_sc[:, W + 1:W + 2, :] = pad_sc[:, W - 1:W, :]        # right    <- col W-2

    # ---------------- conv2 -> InstanceNorm ----------------------------------
    h2 = instance_norm(conv3x3(pad_sc, w2_ref))

    # ---------------- residual add (residual = interior of padded input) -----
    o_ref[...] = xpad_ref[1:H + 1, 1:W + 1, :] + h2.reshape(H, W, C)


def resnet_block_pallas(x_nchw, w1, b1, w2, b2):
    """x_nchw: (N, C, H, W) f32; w*: (C, C, 3, 3) PyTorch OIHW; b*: (C,).

    b1 / b2 are accepted for API parity but not used: with
    InstanceNorm2d(affine=False) right after each conv, per-channel biases
    cancel exactly (identical output), so they are not shipped to the kernel.
    """
    N, C, H, W = x_nchw.shape
    x = jnp.transpose(x_nchw, (0, 2, 3, 1)).astype(jnp.float32)        # NHWC
    xpad = jnp.pad(x, ((0, 0), (1, 1), (1, 1), (0, 0)), mode="reflect")

    # OIHW -> (kh, kw, cin, cout) -> (9*C, C), tap-major (row = (3*dy+dx)*C+cin),
    # cast to bf16 for the MXU (f32 accumulation inside the kernel).
    def prep_w(w):
        return jnp.transpose(w, (2, 3, 1, 0)).reshape(9 * C, C).astype(jnp.bfloat16)

    w1t = prep_w(w1)
    w2t = prep_w(w2)

    out_nhwc = pl.pallas_call(
        _resnet_block_kernel,
        out_shape=jax.ShapeDtypeStruct((N, H, W, C), jnp.float32),
        grid_spec=pltpu.PrefetchScalarGridSpec(
            num_scalar_prefetch=0,
            grid=(N,),
            in_specs=[
                pl.BlockSpec((None, H + 2, W + 2, C), lambda n: (n, 0, 0, 0)),
                pl.BlockSpec((9 * C, C), lambda n: (0, 0)),
                pl.BlockSpec((9 * C, C), lambda n: (0, 0)),
            ],
            out_specs=pl.BlockSpec((None, H, W, C), lambda n: (n, 0, 0, 0)),
            scratch_shapes=[pltpu.VMEM((H + 2, W + 2, C), jnp.float32)],
        ),
        compiler_params=pltpu.CompilerParams(
            dimension_semantics=("parallel",),
            vmem_limit_bytes=32 * 1024 * 1024),
    )(xpad, w1t, w2t)

    return jnp.transpose(out_nhwc, (0, 3, 1, 2))               # back to NCHW


# ---------------------------- pure-JAX reference -----------------------------
# Mirrors the PyTorch forward; conv inputs/weights are cast to bf16 (f32
# accumulation) exactly as in the kernel, so the comparison is tight. This is
# the only deviation from pure-f32 PyTorch numerics and is the intended
# MXU-friendly precision choice. Biases ARE applied here (true module
# semantics); they cancel through InstanceNorm, matching the bias-free kernel.
def resnet_block_ref(x_nchw, w1, b1, w2, b2):
    xn = jnp.transpose(x_nchw, (0, 2, 3, 1)).astype(jnp.float32)

    def conv(h, w, b):
        hp = jnp.pad(h, ((0, 0), (1, 1), (1, 1), (0, 0)), mode="reflect")
        y = jax.lax.conv_general_dilated(
            hp.astype(jnp.bfloat16),
            jnp.transpose(w, (2, 3, 1, 0)).astype(jnp.bfloat16),
            window_strides=(1, 1), padding="VALID",
            dimension_numbers=("NHWC", "HWIO", "NHWC"),
            preferred_element_type=jnp.float32)
        return y + b.reshape(1, 1, 1, -1)

    def inorm(h):
        m = jnp.mean(h, axis=(1, 2), keepdims=True)
        v = jnp.mean((h - m) ** 2, axis=(1, 2), keepdims=True)
        return (h - m) * jax.lax.rsqrt(v + EPS)

    h = jax.nn.relu(inorm(conv(xn, w1, b1)))
    h = inorm(conv(h, w2, b2))
    return jnp.transpose(xn + h, (0, 3, 1, 2))


if __name__ == "__main__":
    N, C, H, W = 2, 4, 16, 16
    key = jax.random.PRNGKey(0)
    kx, k1, k2, k3, k4 = jax.random.split(key, 5)

    x = jax.random.normal(kx, (N, C, H, W), jnp.float32)
    # Conv2d(dim, dim, kernel_size=3, bias=True) parameter shapes
    w1 = jax.random.normal(k1, (C, C, 3, 3), jnp.float32) * 0.2
    b1 = jax.random.normal(k2, (C,), jnp.float32) * 0.1
    w2 = jax.random.normal(k3, (C, C, 3, 3), jnp.float32) * 0.2
    b2 = jax.random.normal(k4, (C,), jnp.float32) * 0.1

    out = jax.block_until_ready(resnet_block_pallas(x, w1, b1, w2, b2))
    ref = resnet_block_ref(x, w1, b1, w2, b2)

    assert out.shape == (N, C, H, W)
    assert jnp.allclose(out, ref, atol=5e-3, rtol=5e-3), (
        float(jnp.max(jnp.abs(out - ref))))

    print("KERNEL_OK")
</pallas_src>

<mosaic_0001>
module attributes {stable_mosaic.version = 11 : i64} {
  func.func @_resnet_block_kernel(%arg0: i32, %arg1: memref<1x18x18x4xf32, #tpu.memory_space<vmem>>, %arg2: memref<36x4xbf16, #tpu.memory_space<vmem>>, %arg3: memref<36x4xbf16, #tpu.memory_space<vmem>>, %arg4: memref<1x16x16x4xf32, #tpu.memory_space<vmem>>, %arg5: memref<18x18x4xf32, #tpu.memory_space<vmem>>) attributes {dimension_semantics = [#tpu.dimension_semantics<parallel>], iteration_bounds = array<i64: 2>, scalar_prefetch = 0 : i64, scratch_operands = 1 : i64, tpu.core_type = #tpu.core_type<tc>, window_params = [{transform_indices = @transform_0, window_bounds = array<i64: 1, 18, 18, 4>}, {pipeline_mode = #tpu.pipeline_mode<synchronous>, transform_indices = @transform_1, window_bounds = array<i64: 36, 4>}, {pipeline_mode = #tpu.pipeline_mode<synchronous>, transform_indices = @transform_2, window_bounds = array<i64: 36, 4>}, {transform_indices = @transform_3, window_bounds = array<i64: 1, 16, 16, 4>}]} {
    %c0 = arith.constant 0 : index
    %c0_0 = arith.constant 0 : index
    %c0_1 = arith.constant 0 : index
    %c0_2 = arith.constant 0 : index
    %0 = vector.load %arg1[%c0, %c0_0, %c0_1, %c0_2] : memref<1x18x18x4xf32, #tpu.memory_space<vmem>>, vector<1x16x16x4xf32>
    %1 = vector.shape_cast %0 : vector<1x16x16x4xf32> to vector<16x16x4xf32>
    %c0_3 = arith.constant 0 : index
    %c0_4 = arith.constant 0 : index
    %c1 = arith.constant 1 : index
    %c0_5 = arith.constant 0 : index
    %2 = vector.load %arg1[%c0_3, %c0_4, %c1, %c0_5] : memref<1x18x18x4xf32, #tpu.memory_space<vmem>>, vector<1x16x16x4xf32>
    %3 = vector.shape_cast %2 : vector<1x16x16x4xf32> to vector<16x16x4xf32>
    %c0_6 = arith.constant 0 : index
    %c0_7 = arith.constant 0 : index
    %c2 = arith.constant 2 : index
    %c0_8 = arith.constant 0 : index
    %4 = vector.load %arg1[%c0_6, %c0_7, %c2, %c0_8] : memref<1x18x18x4xf32, #tpu.memory_space<vmem>>, vector<1x16x16x4xf32>
    %5 = vector.shape_cast %4 : vector<1x16x16x4xf32> to vector<16x16x4xf32>
    %c0_9 = arith.constant 0 : index
    %c1_10 = arith.constant 1 : index
    %c0_11 = arith.constant 0 : index
    %c0_12 = arith.constant 0 : index
    %6 = vector.load %arg1[%c0_9, %c1_10, %c0_11, %c0_12] : memref<1x18x18x4xf32, #tpu.memory_space<vmem>>, vector<1x16x16x4xf32>
    %7 = vector.shape_cast %6 : vector<1x16x16x4xf32> to vector<16x16x4xf32>
    %c0_13 = arith.constant 0 : index
    %c1_14 = arith.constant 1 : index
    %c1_15 = arith.constant 1 : index
    %c0_16 = arith.constant 0 : index
    %8 = vector.load %arg1[%c0_13, %c1_14, %c1_15, %c0_16] : memref<1x18x18x4xf32, #tpu.memory_space<vmem>>, vector<1x16x16x4xf32>
    %9 = vector.shape_cast %8 : vector<1x16x16x4xf32> to vector<16x16x4xf32>
    %c0_17 = arith.constant 0 : index
    %c1_18 = arith.constant 1 : index
    %c2_19 = arith.constant 2 : index
    %c0_20 = arith.constant 0 : index
    %10 = vector.load %arg1[%c0_17, %c1_18, %c2_19, %c0_20] : memref<1x18x18x4xf32, #tpu.memory_space<vmem>>, vector<1x16x16x4xf32>
    %11 = vector.shape_cast %10 : vector<1x16x16x4xf32> to vector<16x16x4xf32>
    %c0_21 = arith.constant 0 : index
    %c2_22 = arith.constant 2 : index
    %c0_23 = arith.constant 0 : index
    %c0_24 = arith.constant 0 : index
    %12 = vector.load %arg1[%c0_21, %c2_22, %c0_23, %c0_24] : memref<1x18x18x4xf32, #tpu.memory_space<vmem>>, vector<1x16x16x4xf32>
    %13 = vector.shape_cast %12 : vector<1x16x16x4xf32> to vector<16x16x4xf32>
    %c0_25 = arith.constant 0 : index
    %c2_26 = arith.constant 2 : index
    %c1_27 = arith.constant 1 : index
    %c0_28 = arith.constant 0 : index
    %14 = vector.load %arg1[%c0_25, %c2_26, %c1_27, %c0_28] : memref<1x18x18x4xf32, #tpu.memory_space<vmem>>, vector<1x16x16x4xf32>
    %15 = vector.shape_cast %14 : vector<1x16x16x4xf32> to vector<16x16x4xf32>
    %c0_29 = arith.constant 0 : index
    %c2_30 = arith.constant 2 : index
    %c2_31 = arith.constant 2 : index
    %c0_32 = arith.constant 0 : index
    %16 = vector.load %arg1[%c0_29, %c2_30, %c2_31, %c0_32] : memref<1x18x18x4xf32, #tpu.memory_space<vmem>>, vector<1x16x16x4xf32>
    %17 = vector.shape_cast %16 : vector<1x16x16x4xf32> to vector<16x16x4xf32>
    %18 = tpu.concatenate %1, %3, %5, %7, %9, %11, %13, %15, %17 in 2 : vector<16x16x4xf32>, vector<16x16x4xf32>, vector<16x16x4xf32>, vector<16x16x4xf32>, vector<16x16x4xf32>, vector<16x16x4xf32>, vector<16x16x4xf32>, vector<16x16x4xf32>, vector<16x16x4xf32> -> vector<16x16x36xf32>
    %19 = vector.shape_cast %18 : vector<16x16x36xf32> to vector<256x36xf32>
    %20 = arith.truncf %19 : vector<256x36xf32> to vector<256x36xbf16>
    %c0_33 = arith.constant 0 : index
    %c0_34 = arith.constant 0 : index
    %21 = vector.load %arg2[%c0_33, %c0_34] : memref<36x4xbf16, #tpu.memory_space<vmem>>, vector<36x4xbf16>
    %cst = arith.constant dense<0.000000e+00> : vector<256x4xf32>
    %22 = tpu.matmul %20, %21, %cst {dimension_numbers = #tpu.dot_dimension_numbers<[1], [0], [0], [1], [0, 0, 1, 1], [], []>} : vector<256x36xbf16>, vector<36x4xbf16>, vector<256x4xf32> -> vector<256x4xf32>
    %cst_35 = arith.constant dense<0.000000e+00> : vector<4xf32>
    %23 = vector.multi_reduction <add>, %22, %cst_35 [0] : vector<256x4xf32> to vector<4xf32>
    %24 = vector.shape_cast %23 : vector<4xf32> to vector<1x4xf32>
    %cst_36 = arith.constant 2.560000e+02 : f32
    %25 = vector.broadcast %cst_36 : f32 to vector<1x4xf32>
    %26 = arith.divf %24, %25 : vector<1x4xf32>
    %27 = vector.broadcast %26 : vector<1x4xf32> to vector<256x4xf32>
    %28 = arith.subf %22, %27 : vector<256x4xf32>
    %29 = arith.mulf %28, %28 : vector<256x4xf32>
    %cst_37 = arith.constant dense<0.000000e+00> : vector<4xf32>
    %30 = vector.multi_reduction <add>, %29, %cst_37 [0] : vector<256x4xf32> to vector<4xf32>
    %31 = vector.shape_cast %30 : vector<4xf32> to vector<1x4xf32>
    %cst_38 = arith.constant 2.560000e+02 : f32
    %32 = vector.broadcast %cst_38 : f32 to vector<1x4xf32>
    %33 = arith.divf %31, %32 : vector<1x4xf32>
    %34 = vector.broadcast %26 : vector<1x4xf32> to vector<256x4xf32>
    %35 = arith.subf %22, %34 : vector<256x4xf32>
    %cst_39 = arith.constant 9.99999974E-6 : f32
    %36 = vector.broadcast %cst_39 : f32 to vector<1x4xf32>
    %37 = arith.addf %33, %36 : vector<1x4xf32>
    %38 = math.rsqrt %37 : vector<1x4xf32>
    %39 = vector.broadcast %38 : vector<1x4xf32> to vector<256x4xf32>
    %40 = arith.mulf %35, %39 : vector<256x4xf32>
    %cst_40 = arith.constant 0.000000e+00 : f32
    %41 = vector.broadcast %cst_40 : f32 to vector<256x4xf32>
    %42 = arith.maximumf %40, %41 : vector<256x4xf32>
    %43 = vector.shape_cast %42 : vector<256x4xf32> to vector<16x16x4xf32>
    %c1_41 = arith.constant 1 : index
    %c1_42 = arith.constant 1 : index
    %c0_43 = arith.constant 0 : index
    %44 = vector.load %arg5[%c1_41, %c1_42, %c0_43] : memref<18x18x4xf32, #tpu.memory_space<vmem>>, vector<16x16x4xf32>
    tpu.vector_store %arg5[%c1_41, %c1_42, %c0_43], %43 {strides = array<i32>} : memref<18x18x4xf32, #tpu.memory_space<vmem>>, vector<16x16x4xf32>,
    %45 = vector.extract_strided_slice %43 {offsets = [1, 0, 0], sizes = [1, 16, 4], strides = [1, 1, 1]} : vector<16x16x4xf32> to vector<1x16x4xf32>
    %c0_44 = arith.constant 0 : index
    %c1_45 = arith.constant 1 : index
    %c0_46 = arith.constant 0 : index
    %46 = vector.load %arg5[%c0_44, %c1_45, %c0_46] : memref<18x18x4xf32, #tpu.memory_space<vmem>>, vector<1x16x4xf32>
    tpu.vector_store %arg5[%c0_44, %c1_45, %c0_46], %45 {strides = array<i32>} : memref<18x18x4xf32, #tpu.memory_space<vmem>>, vector<1x16x4xf32>,
    %47 = vector.extract_strided_slice %43 {offsets = [14, 0, 0], sizes = [1, 16, 4], strides = [1, 1, 1]} : vector<16x16x4xf32> to vector<1x16x4xf32>
    %c17 = arith.constant 17 : index
    %c1_47 = arith.constant 1 : index
    %c0_48 = arith.constant 0 : index
    %48 = vector.load %arg5[%c17, %c1_47, %c0_48] : memref<18x18x4xf32, #tpu.memory_space<vmem>>, vector<1x16x4xf32>
    tpu.vector_store %arg5[%c17, %c1_47, %c0_48], %47 {strides = array<i32>} : memref<18x18x4xf32, #tpu.memory_space<vmem>>, vector<1x16x4xf32>,
    %c0_49 = arith.constant 0 : index
    %c2_50 = arith.constant 2 : index
    %c0_51 = arith.constant 0 : index
    %49 = vector.load %arg5[%c0_49, %c2_50, %c0_51] : memref<18x18x4xf32, #tpu.memory_space<vmem>>, vector<18x1x4xf32>
    %c0_52 = arith.constant 0 : index
    %c0_53 = arith.constant 0 : index
    %c0_54 = arith.constant 0 : index
    %50 = vector.load %arg5[%c0_52, %c0_53, %c0_54] : memref<18x18x4xf32, #tpu.memory_space<vmem>>, vector<18x1x4xf32>
    tpu.vector_store %arg5[%c0_52, %c0_53, %c0_54], %49 {strides = array<i32>} : memref<18x18x4xf32, #tpu.memory_space<vmem>>, vector<18x1x4xf32>,
    %c0_55 = arith.constant 0 : index
    %c15 = arith.constant 15 : index
    %c0_56 = arith.constant 0 : index
    %51 = vector.load %arg5[%c0_55, %c15, %c0_56] : memref<18x18x4xf32, #tpu.memory_space<vmem>>, vector<18x1x4xf32>
    %c0_57 = arith.constant 0 : index
    %c17_58 = arith.constant 17 : index
    %c0_59 = arith.constant 0 : index
    %52 = vector.load %arg5[%c0_57, %c17_58, %c0_59] : memref<18x18x4xf32, #tpu.memory_space<vmem>>, vector<18x1x4xf32>
    tpu.vector_store %arg5[%c0_57, %c17_58, %c0_59], %51 {strides = array<i32>} : memref<18x18x4xf32, #tpu.memory_space<vmem>>, vector<18x1x4xf32>,
    %c0_60 = arith.constant 0 : index
    %c0_61 = arith.constant 0 : index
    %c0_62 = arith.constant 0 : index
    %53 = vector.load %arg5[%c0_60, %c0_61, %c0_62] : memref<18x18x4xf32, #tpu.memory_space<vmem>>, vector<16x16x4xf32>
    %c0_63 = arith.constant 0 : index
    %c1_64 = arith.constant 1 : index
    %c0_65 = arith.constant 0 : index
    %54 = vector.load %arg5[%c0_63, %c1_64, %c0_65] : memref<18x18x4xf32, #tpu.memory_space<vmem>>, vector<16x16x4xf32>
    %c0_66 = arith.constant 0 : index
    %c2_67 = arith.constant 2 : index
    %c0_68 = arith.constant 0 : index
    %55 = vector.load %arg5[%c0_66, %c2_67, %c0_68] : memref<18x18x4xf32, #tpu.memory_space<vmem>>, vector<16x16x4xf32>
    %c1_69 = arith.constant 1 : index
    %c0_70 = arith.constant 0 : index
    %c0_71 = arith.constant 0 : index
    %56 = vector.load %arg5[%c1_69, %c0_70, %c0_71] : memref<18x18x4xf32, #tpu.memory_space<vmem>>, vector<16x16x4xf32>
    %c1_72 = arith.constant 1 : index
    %c1_73 = arith.constant 1 : index
    %c0_74 = arith.constant 0 : index
    %57 = vector.load %arg5[%c1_72, %c1_73, %c0_74] : memref<18x18x4xf32, #tpu.memory_space<vmem>>, vector<16x16x4xf32>
    %c1_75 = arith.constant 1 : index
    %c2_76 = arith.constant 2 : index
    %c0_77 = arith.constant 0 : index
    %58 = vector.load %arg5[%c1_75, %c2_76, %c0_77] : memref<18x18x4xf32, #tpu.memory_space<vmem>>, vector<16x16x4xf32>
    %c2_78 = arith.constant 2 : index
    %c0_79 = arith.constant 0 : index
    %c0_80 = arith.constant 0 : index
    %59 = vector.load %arg5[%c2_78, %c0_79, %c0_80] : memref<18x18x4xf32, #tpu.memory_space<vmem>>, vector<16x16x4xf32>
    %c2_81 = arith.constant 2 : index
    %c1_82 = arith.constant 1 : index
    %c0_83 = arith.constant 0 : index
    %60 = vector.load %arg5[%c2_81, %c1_82, %c0_83] : memref<18x18x4xf32, #tpu.memory_space<vmem>>, vector<16x16x4xf32>
    %c2_84 = arith.constant 2 : index
    %c2_85 = arith.constant 2 : index
    %c0_86 = arith.constant 0 : index
    %61 = vector.load %arg5[%c2_84, %c2_85, %c0_86] : memref<18x18x4xf32, #tpu.memory_space<vmem>>, vector<16x16x4xf32>
    %62 = tpu.concatenate %53, %54, %55, %56, %57, %58, %59, %60, %61 in 2 : vector<16x16x4xf32>, vector<16x16x4xf32>, vector<16x16x4xf32>, vector<16x16x4xf32>, vector<16x16x4xf32>, vector<16x16x4xf32>, vector<16x16x4xf32>, vector<16x16x4xf32>, vector<16x16x4xf32> -> vector<16x16x36xf32>
    %63 = vector.shape_cast %62 : vector<16x16x36xf32> to vector<256x36xf32>
    %64 = arith.truncf %63 : vector<256x36xf32> to vector<256x36xbf16>
    %c0_87 = arith.constant 0 : index
    %c0_88 = arith.constant 0 : index
    %65 = vector.load %arg3[%c0_87, %c0_88] : memref<36x4xbf16, #tpu.memory_space<vmem>>, vector<36x4xbf16>
    %cst_89 = arith.constant dense<0.000000e+00> : vector<256x4xf32>
    %66 = tpu.matmul %64, %65, %cst_89 {dimension_numbers = #tpu.dot_dimension_numbers<[1], [0], [0], [1], [0, 0, 1, 1], [], []>} : vector<256x36xbf16>, vector<36x4xbf16>, vector<256x4xf32> -> vector<256x4xf32>
    %cst_90 = arith.constant dense<0.000000e+00> : vector<4xf32>
    %67 = vector.multi_reduction <add>, %66, %cst_90 [0] : vector<256x4xf32> to vector<4xf32>
    %68 = vector.shape_cast %67 : vector<4xf32> to vector<1x4xf32>
    %cst_91 = arith.constant 2.560000e+02 : f32
    %69 = vector.broadcast %cst_91 : f32 to vector<1x4xf32>
    %70 = arith.divf %68, %69 : vector<1x4xf32>
    %71 = vector.broadcast %70 : vector<1x4xf32> to vector<256x4xf32>
    %72 = arith.subf %66, %71 : vector<256x4xf32>
    %73 = arith.mulf %72, %72 : vector<256x4xf32>
    %cst_92 = arith.constant dense<0.000000e+00> : vector<4xf32>
    %74 = vector.multi_reduction <add>, %73, %cst_92 [0] : vector<256x4xf32> to vector<4xf32>
    %75 = vector.shape_cast %74 : vector<4xf32> to vector<1x4xf32>
    %cst_93 = arith.constant 2.560000e+02 : f32
    %76 = vector.broadcast %cst_93 : f32 to vector<1x4xf32>
    %77 = arith.divf %75, %76 : vector<1x4xf32>
    %78 = vector.broadcast %70 : vector<1x4xf32> to vector<256x4xf32>
    %79 = arith.subf %66, %78 : vector<256x4xf32>
    %cst_94 = arith.constant 9.99999974E-6 : f32
    %80 = vector.broadcast %cst_94 : f32 to vector<1x4xf32>
    %81 = arith.addf %77, %80 : vector<1x4xf32>
    %82 = math.rsqrt %81 : vector<1x4xf32>
    %83 = vector.broadcast %82 : vector<1x4xf32> to vector<256x4xf32>
    %84 = arith.mulf %79, %83 : vector<256x4xf32>
    %c0_95 = arith.constant 0 : index
    %c1_96 = arith.constant 1 : index
    %c1_97 = arith.constant 1 : index
    %c0_98 = arith.constant 0 : index
    %85 = vector.load %arg1[%c0_95, %c1_96, %c1_97, %c0_98] : memref<1x18x18x4xf32, #tpu.memory_space<vmem>>, vector<1x16x16x4xf32>
    %86 = vector.shape_cast %85 : vector<1x16x16x4xf32> to vector<16x16x4xf32>
    %87 = vector.shape_cast %84 : vector<256x4xf32> to vector<16x16x4xf32>
    %88 = arith.addf %86, %87 : vector<16x16x4xf32>
    %c0_99 = arith.constant 0 : index
    %c0_100 = arith.constant 0 : index
    %c0_101 = arith.constant 0 : index
    %c0_102 = arith.constant 0 : index
    %89 = vector.load %arg4[%c0_99, %c0_100, %c0_101, %c0_102] : memref<1x16x16x4xf32, #tpu.memory_space<vmem>>, vector<1x16x16x4xf32>
    %90 = vector.shape_cast %89 : vector<1x16x16x4xf32> to vector<16x16x4xf32>
    %91 = vector.shape_cast %88 : vector<16x16x4xf32> to vector<1x16x16x4xf32>
    tpu.vector_store %arg4[%c0_99, %c0_100, %c0_101, %c0_102], %91 {strides = array<i32>} : memref<1x16x16x4xf32, #tpu.memory_space<vmem>>, vector<1x16x16x4xf32>,
    return
  }
  func.func @transform_0(%arg0: i32) -> (i32, i32, i32, i32) {
    %c0_i32 = arith.constant 0 : i32
    %c0_i32_0 = arith.constant 0 : i32
    %c0_i32_1 = arith.constant 0 : i32
    %c0_i32_2 = arith.constant 0 : i32
    return %arg0, %c0_i32, %c0_i32_0, %c0_i32_1 : i32, i32, i32, i32
  }
  func.func @transform_1(%arg0: i32) -> (i32, i32) {
    %c0_i32 = arith.constant 0 : i32
    %c0_i32_0 = arith.constant 0 : i32
    %c0_i32_1 = arith.constant 0 : i32
    return %c0_i32, %c0_i32_0 : i32, i32
  }
  func.func @transform_2(%arg0: i32) -> (i32, i32) {
    %c0_i32 = arith.constant 0 : i32
    %c0_i32_0 = arith.constant 0 : i32
    %c0_i32_1 = arith.constant 0 : i32
    return %c0_i32, %c0_i32_0 : i32, i32
  }
  func.func @transform_3(%arg0: i32) -> (i32, i32, i32, i32) {
    %c0_i32 = arith.constant 0 : i32
    %c0_i32_0 = arith.constant 0 : i32
    %c0_i32_1 = arith.constant 0 : i32
    %c0_i32_2 = arith.constant 0 : i32
    return %arg0, %c0_i32, %c0_i32_0, %c0_i32_1 : i32, i32, i32, i32
  }
}

</mosaic_0001>

<llo_original>
// kernel: tpu_custom_call.1
$region0: #{tpu_custom_call.1}
  #allocation0 [shape = 'u32[]', space=smem, size = 0x4, offset = 0x4, fixed_abs, tag = 'smem constant byte address 0x4 - core index']
  #allocation1 [shape = 'u32[72,128]{1,0:T(1,128)}', space=vmem, size = 0x9000, scoped, tag = 'internal scratch']
  #allocation2 [shape = 'f32[18,18,4]{2,1,0:T(8,128)}', space=vmem, size = 0x36000, scoped, tag = 'scratch operand']
  %s0 = inlined_call_operand.vmem [shape: f32[2,18,18,4], index: 0, kind: input, shape index: {}]
  %s1 = inlined_call_operand.vmem [shape: bf16[36,4], index: 1, kind: input, shape index: {}]
  %s2 = inlined_call_operand.vmem [shape: bf16[36,4], index: 2, kind: input, shape index: {}]
  %s3 = inlined_call_operand.vmem [shape: f32[2,16,16,4], index: 3, kind: output, shape index: {}]
  %s4 = sld [smem:[#allocation0]]
  $region45: #{tpu_custom_call.1} parent=0
    _
  %s6 = ssub.s32 1, %s4
  %s7 = scalar_select 0, %s6, %s4
  loop: start=0, step=1, limit=4
  $region2: #{tpu_custom_call.1} parent=0 // loop_pre_header
    _
  $region3: #{tpu_custom_call.1} parent=0 // loop_header
    %s9 = sphi 0, %s13
    %p10 = scmp.ge.s32.totalorder %s9, 4
    %s19 = sphi 0, %s21
    %s22 = sphi 0, %s19
    %s23 = sphi 0, %s22
    %s39 = sphi 0, %s23
    %s43 = sphi 0, %s43
    %s45 = sphi 0, %s43
    %s46 = sphi 0, %s45
    %s60 = sphi 0, %s46
    %s64 = sphi 0, %s64
    %s66 = sphi 0, %s64
    %s67 = sphi 0, %s66
    %s81 = sphi 0, %s67
    %s87 = sphi 0, %s89
    %s90 = sphi 0, %s87
    %s91 = sphi 0, %s90
    %s107 = sphi 0, %s91
  $region4: #{tpu_custom_call.1} parent=0 // loop_header_branch
    %12 = sbr.rel (%p10) target = $region8
  $region5: #{tpu_custom_call.1} parent=0 // loop_body
    %s14 = ssub.s32 %s9, 1
    %s15 = ssub.s32 %s9, 2
    %s16 = sadd.s32 %s9, 1
    %s17 = ssub.s32 %s9, %s16
    %p18 = scmp.eq.s32.totalorder %s17, 0
    %s20 = sadd.s32 %s19, 1
    %s21 = scalar_select %p18, %s19, %s20
    %p24 = pneg %p18
    %p25 = scmp.eq.s32.totalorder %s9, 1
    %p26 = por %p24, %p25
    %p27 = scmp.ne.s32.totalorder %s19, %s22
    %p28 = scmp.eq.s32.totalorder %s9, 0
    %p29 = por %p27, %p28
    %p30 = scmp.ne.s32.totalorder %s19, %s22
    %p31 = scmp.eq.s32.totalorder %s14, 1
    %p32 = por %p30, %p31
    %p33 = scmp.ne.s32.totalorder %s22, %s23
    %p34 = scmp.eq.s32.totalorder %s14, 0
    %p35 = por %p33, %p34
    %p36 = scmp.ne.s32.totalorder %s22, %s23
    %p37 = scmp.eq.s32.totalorder %s15, 1
    %p38 = por %p36, %p37
    %p40 = scmp.ne.s32.totalorder %s23, %s39
    %p41 = scmp.eq.s32.totalorder %s15, 0
    %p42 = por %p40, %p41
    %s44 = sadd.s32 %s43, 1
    %p47 = scmp.eq.s32.totalorder %s9, 1
    %p48 = scmp.ne.s32.totalorder %s43, %s45
    %p49 = scmp.eq.s32.totalorder %s9, 0
    %p50 = por %p48, %p49
    %p51 = scmp.ne.s32.totalorder %s43, %s45
    %p52 = scmp.eq.s32.totalorder %s14, 1
    %p53 = por %p51, %p52
    %p54 = scmp.ne.s32.totalorder %s45, %s46
    %p55 = scmp.eq.s32.totalorder %s14, 0
    %p56 = por %p54, %p55
    %p57 = scmp.ne.s32.totalorder %s45, %s46
    %p58 = scmp.eq.s32.totalorder %s15, 1
    %p59 = por %p57, %p58
    %p61 = scmp.ne.s32.totalorder %s46, %s60
    %p62 = scmp.eq.s32.totalorder %s15, 0
    %p63 = por %p61, %p62
    %s65 = sadd.s32 %s64, 1
    %p68 = scmp.eq.s32.totalorder %s9, 1
    %p69 = scmp.ne.s32.totalorder %s64, %s66
    %p70 = scmp.eq.s32.totalorder %s9, 0
    %p71 = por %p69, %p70
    %p72 = scmp.ne.s32.totalorder %s64, %s66
    %p73 = scmp.eq.s32.totalorder %s14, 1
    %p74 = por %p72, %p73
    %p75 = scmp.ne.s32.totalorder %s66, %s67
    %p76 = scmp.eq.s32.totalorder %s14, 0
    %p77 = por %p75, %p76
    %p78 = scmp.ne.s32.totalorder %s66, %s67
    %p79 = scmp.eq.s32.totalorder %s15, 1
    %p80 = por %p78, %p79
    %p82 = scmp.ne.s32.totalorder %s67, %s81
    %p83 = scmp.eq.s32.totalorder %s15, 0
    %p84 = por %p82, %p83
    %s85 = ssub.s32 %s9, %s16
    %p86 = scmp.eq.s32.totalorder %s85, 0
    %s88 = sadd.s32 %s87, 1
    %s89 = scalar_select %p86, %s87, %s88
    %p92 = pneg %p86
    %p93 = scmp.eq.s32.totalorder %s9, 1
    %p94 = por %p92, %p93
    %p95 = scmp.ne.s32.totalorder %s87, %s90
    %p96 = scmp.eq.s32.totalorder %s9, 0
    %p97 = por %p95, %p96
    %p98 = scmp.ne.s32.totalorder %s87, %s90
    %p99 = scmp.eq.s32.totalorder %s14, 1
    %p100 = por %p98, %p99
    %p101 = scmp.ne.s32.totalorder %s90, %s91
    %p102 = scmp.eq.s32.totalorder %s14, 0
    %p103 = por %p101, %p102
    %p104 = scmp.ne.s32.totalorder %s90, %s91
    %p105 = scmp.eq.s32.totalorder %s15, 1
    %p106 = por %p104, %p105
    %p108 = scmp.ne.s32.totalorder %s91, %s107
    %p109 = scmp.eq.s32.totalorder %s15, 0
    %p110 = por %p108, %p109
    %p111 = scmp.le.s32.totalorder 1, %s9
    %p112 = scmp.lt.s32.totalorder %s9, 3
    %p113 = pnand %p111, %p112
    %p114 = pneg %p113
    // Predicated region
    $region9: #{tpu_custom_call.1} parent=5 // pred_check
      _
    $region10: #{tpu_custom_call.1} parent=5 // pred_check_branch
      %116 = sbr.rel (%p113) target = $region12
    $region11: #{tpu_custom_call.1} parent=5 // pred_region
      %s117 = ssub.s32 %s9, 1
      // Predicated region
      $region13: #{tpu_custom_call.1} parent=11 // pred_check
        %p118 = pneg %p56
      $region14: #{tpu_custom_call.1} parent=11 // pred_check_branch
        %120 = sbr.rel (%p118) target = $region16
      $region15: #{tpu_custom_call.1} parent=11 // pred_region
        _
      $region16: #{tpu_custom_call.1} parent=11 // pred_fallthru
        _
      // Predicated region
      $region17: #{tpu_custom_call.1} parent=11 // pred_check
        %p121 = pneg %p77
      $region18: #{tpu_custom_call.1} parent=11 // pred_check_branch
        %123 = sbr.rel (%p121) target = $region20
      $region19: #{tpu_custom_call.1} parent=11 // pred_region
        _
      $region20: #{tpu_custom_call.1} parent=11 // pred_fallthru
        _
    $region12: #{tpu_custom_call.1} parent=5 // pred_fallthru
      _
    %p124 = scmp.lt.s32.totalorder %s9, 2
    // Predicated region
    $region21: #{tpu_custom_call.1} parent=5 // pred_check
      %p125 = pneg %p124
    $region22: #{tpu_custom_call.1} parent=5 // pred_check_branch
      %127 = sbr.rel (%p125) target = $region24
    $region23: #{tpu_custom_call.1} parent=5 // pred_region
      // Predicated region
      $region25: #{tpu_custom_call.1} parent=23 // pred_check
        %p128 = pneg %p29
      $region26: #{tpu_custom_call.1} parent=23 // pred_check_branch
        %130 = sbr.rel (%p128) target = $region28
      $region27: #{tpu_custom_call.1} parent=23 // pred_region
        %p131 = scmp.lt.s32.totalorder %s9, 1
        %s132 = scalar_select %p131, %s9, 1
        %s133 = smul.addr %s132, 54
        %s134 = smul.addr %s133, 8
        %s135 = scalar_lea.vmem %s0, %s134
      $region28: #{tpu_custom_call.1} parent=23 // pred_fallthru
        _
    $region24: #{tpu_custom_call.1} parent=5 // pred_fallthru
      _
    %p136 = scmp.le.s32.totalorder 1, %s9
    %p137 = scmp.lt.s32.totalorder %s9, 3
    %p138 = pnand %p136, %p137
    %p139 = pneg %p138
    // Predicated region
    $region29: #{tpu_custom_call.1} parent=5 // pred_check
      _
    $region30: #{tpu_custom_call.1} parent=5 // pred_check_branch
      %141 = sbr.rel (%p138) target = $region32
    $region31: #{tpu_custom_call.1} parent=5 // pred_region
      %s142 = ssub.s32 %s9, 1
      %p143 = scmp.lt.s32.totalorder %s14, 1
      %s144 = scalar_select %p143, %s14, 1
      %s145 = smul.addr %s144, 54
      %s146 = smul.addr %s145, 8
      %s147 = scalar_lea.vmem %s0, %s146
      %p148 = pneg %p35
      %p149 = pneg %p32
      %p150 = pneg %p56
      %p151 = pneg %p53
      %p152 = pneg %p77
      %p153 = pneg %p74
      %p154 = pneg %p103
      %p155 = pneg %p100
      %p156 = scmp.lt.s32.totalorder %s14, 1
      %s157 = scalar_select %p156, %s14, 1
      %s158 = smul.addr %s157, 32
      %s159 = smul.addr %s158, 8
      %s160 = scalar_lea.vmem %s3, %s159
      %p161 = scmp.lt.s32.totalorder %s14, 1
      %s162 = scalar_select %p161, %s14, 1
      %s163 = smul.addr %s162, 54
      %s164 = smul.addr %s163, 8
      %s165 = scalar_lea.vmem %s0, %s164
      %p166 = scmp.lt.s32.totalorder %s14, 1
      %s167 = scalar_select %p166, %s14, 1
      %s168 = smul.addr %s167, 32
      %s169 = smul.addr %s168, 8
      %s170 = scalar_lea.vmem %s3, %s169
      %v172 = vld [vmem:[%s165] sm:$0xff]
      %v173 = vld [vmem:[%s165 + $0x8] sm:$0xff]
      %v174 = vld [vmem:[%s165 + $0x18] sm:$0xff]
      %v175 = vld [vmem:[%s165 + $0x20] sm:$0xff]
      %v176 = vld [vmem:[%s165 + $0x30] sm:$0xff]
      %v177 = vld [vmem:[%s165 + $0x38] sm:$0xff]
      %v178 = vld [vmem:[%s165 + $0x48] sm:$0xff]
      %v179 = vld [vmem:[%s165 + $0x50] sm:$0xff]
      %v180 = vld [vmem:[%s165 + $0x60] sm:$0xff]
      %v181 = vld [vmem:[%s165 + $0x68] sm:$0xff]
      %v182 = vld [vmem:[%s165 + $0x78] sm:$0xff]
      %v183 = vld [vmem:[%s165 + $0x80] sm:$0xff]
      %v184 = vld [vmem:[%s165 + $0x90] sm:$0xff]
      %v185 = vld [vmem:[%s165 + $0x98] sm:$0xff]
      %v186 = vld [vmem:[%s165 + $0xa8] sm:$0xff]
      %v187 = vld [vmem:[%s165 + $0xb0] sm:$0xff]
      %v188 = vld [vmem:[%s165 + $0xc0] sm:$0xff]
      %v189 = vld [vmem:[%s165 + $0xc8] sm:$0xff]
      %v190 = vld [vmem:[%s165 + $0xd8] sm:$0xff]
      %v191 = vld [vmem:[%s165 + $0xe0] sm:$0xff]
      %v192 = vld [vmem:[%s165 + $0xf0] sm:$0xff]
      %v193 = vld [vmem:[%s165 + $0xf8] sm:$0xff]
      %v194 = vld [vmem:[%s165 + $0x108] sm:$0xff]
      %v195 = vld [vmem:[%s165 + $0x110] sm:$0xff]
      %v196 = vld [vmem:[%s165 + $0x120] sm:$0xff]
      %v197 = vld [vmem:[%s165 + $0x128] sm:$0xff]
      %v198 = vld [vmem:[%s165 + $0x138] sm:$0xff]
      %v199 = vld [vmem:[%s165 + $0x140] sm:$0xff]
      %v200 = vld [vmem:[%s165 + $0x150] sm:$0xff]
      %v201 = vld [vmem:[%s165 + $0x158] sm:$0xff]
      %v202 = vld [vmem:[%s165 + $0x168] sm:$0xff]
      %v203 = vld [vmem:[%s165 + $0x170] sm:$0xff]
      %v204 = vld [vmem:[%s165 + $0x1] sm:$0xff]
      %v205 = vld [vmem:[%s165 + $0x9] sm:$0xff]
      %v206 = vld [vmem:[%s165 + $0x19] sm:$0xff]
      %v207 = vld [vmem:[%s165 + $0x21] sm:$0xff]
      %v208 = vld [vmem:[%s165 + $0x31] sm:$0xff]
      %v209 = vld [vmem:[%s165 + $0x39] sm:$0xff]
      %v210 = vld [vmem:[%s165 + $0x49] sm:$0xff]
      %v211 = vld [vmem:[%s165 + $0x51] sm:$0xff]
      %v212 = vld [vmem:[%s165 + $0x61] sm:$0xff]
      %v213 = vld [vmem:[%s165 + $0x69] sm:$0xff]
      %v214 = vld [vmem:[%s165 + $0x79] sm:$0xff]
      %v215 = vld [vmem:[%s165 + $0x81] sm:$0xff]
      %v216 = vld [vmem:[%s165 + $0x91] sm:$0xff]
      %v217 = vld [vmem:[%s165 + $0x99] sm:$0xff]
      %v218 = vld [vmem:[%s165 + $0xa9] sm:$0xff]
      %v219 = vld [vmem:[%s165 + $0xb1] sm:$0xff]
      %v220 = vld [vmem:[%s165 + $0xc1] sm:$0xff]
      %v221 = vld [vmem:[%s165 + $0xc9] sm:$0xff]
      %v222 = vld [vmem:[%s165 + $0xd9] sm:$0xff]
      %v223 = vld [vmem:[%s165 + $0xe1] sm:$0xff]
      %v224 = vld [vmem:[%s165 + $0xf1] sm:$0xff]
      %v225 = vld [vmem:[%s165 + $0xf9] sm:$0xff]
      %v226 = vld [vmem:[%s165 + $0x109] sm:$0xff]
      %v227 = vld [vmem:[%s165 + $0x111] sm:$0xff]
      %v228 = vld [vmem:[%s165 + $0x121] sm:$0xff]
      %v229 = vld [vmem:[%s165 + $0x129] sm:$0xff]
      %v230 = vld [vmem:[%s165 + $0x139] sm:$0xff]
      %v231 = vld [vmem:[%s165 + $0x141] sm:$0xff]
      %v232 = vld [vmem:[%s165 + $0x151] sm:$0xff]
      %v233 = vld [vmem:[%s165 + $0x159] sm:$0xff]
      %v234 = vld [vmem:[%s165 + $0x169] sm:$0xff]
      %v235 = vld [vmem:[%s165 + $0x171] sm:$0xff]
      %v236 = vld [vmem:[%s165 + $0x2] sm:$0xff]
      %v237 = vld [vmem:[%s165 + $0xa] sm:$0xff]
      %v238 = vld [vmem:[%s165 + $0x1a] sm:$0xff]
      %v239 = vld [vmem:[%s165 + $0x22] sm:$0xff]
      %v240 = vld [vmem:[%s165 + $0x32] sm:$0xff]
      %v241 = vld [vmem:[%s165 + $0x3a] sm:$0xff]
      %v242 = vld [vmem:[%s165 + $0x4a] sm:$0xff]
      %v243 = vld [vmem:[%s165 + $0x52] sm:$0xff]
      %v244 = vld [vmem:[%s165 + $0x62] sm:$0xff]
      %v245 = vld [vmem:[%s165 + $0x6a] sm:$0xff]
      %v246 = vld [vmem:[%s165 + $0x7a] sm:$0xff]
      %v247 = vld [vmem:[%s165 + $0x82] sm:$0xff]
      %v248 = vld [vmem:[%s165 + $0x92] sm:$0xff]
      %v249 = vld [vmem:[%s165 + $0x9a] sm:$0xff]
      %v250 = vld [vmem:[%s165 + $0xaa] sm:$0xff]
      %v251 = vld [vmem:[%s165 + $0xb2] sm:$0xff]
      %v252 = vld [vmem:[%s165 + $0xc2] sm:$0xff]
      %v253 = vld [vmem:[%s165 + $0xca] sm:$0xff]
      %v254 = vld [vmem:[%s165 + $0xda] sm:$0xff]
      %v255 = vld [vmem:[%s165 + $0xe2] sm:$0xff]
      %v256 = vld [vmem:[%s165 + $0xf2] sm:$0xff]
      %v257 = vld [vmem:[%s165 + $0xfa] sm:$0xff]
      %v258 = vld [vmem:[%s165 + $0x10a] sm:$0xff]
      %v259 = vld [vmem:[%s165 + $0x112] sm:$0xff]
      %v260 = vld [vmem:[%s165 + $0x122] sm:$0xff]
      %v261 = vld [vmem:[%s165 + $0x12a] sm:$0xff]
      %v262 = vld [vmem:[%s165 + $0x13a] sm:$0xff]
      %v263 = vld [vmem:[%s165 + $0x142] sm:$0xff]
      %v264 = vld [vmem:[%s165 + $0x152] sm:$0xff]
      %v265 = vld [vmem:[%s165 + $0x15a] sm:$0xff]
      %v266 = vld [vmem:[%s165 + $0x16a] sm:$0xff]
      %v267 = vld [vmem:[%s165 + $0x172] sm:$0xff]
      %s268 = scalar_lea.vmem %s165, 24
      %v269 = vld [vmem:[%s268] sm:$0xff]
      %v270 = vld [vmem:[%s268 + $0x8] sm:$0xff]
      %v271 = vld [vmem:[%s268 + $0x18] sm:$0xff]
      %v272 = vld [vmem:[%s268 + $0x20] sm:$0xff]
      %v273 = vld [vmem:[%s268 + $0x30] sm:$0xff]
      %v274 = vld [vmem:[%s268 + $0x38] sm:$0xff]
      %v275 = vld [vmem:[%s268 + $0x48] sm:$0xff]
      %v276 = vld [vmem:[%s268 + $0x50] sm:$0xff]
      %v277 = vld [vmem:[%s268 + $0x60] sm:$0xff]
      %v278 = vld [vmem:[%s268 + $0x68] sm:$0xff]
      %v279 = vld [vmem:[%s268 + $0x78] sm:$0xff]
      %v280 = vld [vmem:[%s268 + $0x80] sm:$0xff]
      %v281 = vld [vmem:[%s268 + $0x90] sm:$0xff]
      %v282 = vld [vmem:[%s268 + $0x98] sm:$0xff]
      %v283 = vld [vmem:[%s268 + $0xa8] sm:$0xff]
      %v284 = vld [vmem:[%s268 + $0xb0] sm:$0xff]
      %v285 = vld [vmem:[%s268 + $0xc0] sm:$0xff]
      %v286 = vld [vmem:[%s268 + $0xc8] sm:$0xff]
      %v287 = vld [vmem:[%s268 + $0xd8] sm:$0xff]
      %v288 = vld [vmem:[%s268 + $0xe0] sm:$0xff]
      %v289 = vld [vmem:[%s268 + $0xf0] sm:$0xff]
      %v290 = vld [vmem:[%s268 + $0xf8] sm:$0xff]
      %v291 = vld [vmem:[%s268 + $0x108] sm:$0xff]
      %v292 = vld [vmem:[%s268 + $0x110] sm:$0xff]
      %v293 = vld [vmem:[%s268 + $0x120] sm:$0xff]
      %v294 = vld [vmem:[%s268 + $0x128] sm:$0xff]
      %v295 = vld [vmem:[%s268 + $0x138] sm:$0xff]
      %v296 = vld [vmem:[%s268 + $0x140] sm:$0xff]
      %v297 = vld [vmem:[%s268 + $0x150] sm:$0xff]
      %v298 = vld [vmem:[%s268 + $0x158] sm:$0xff]
      %v299 = vld [vmem:[%s268 + $0x168] sm:$0xff]
      %v300 = vld [vmem:[%s268 + $0x170] sm:$0xff]
      %v301 = vld [vmem:[%s268 + $0x1] sm:$0xff]
      %v302 = vld [vmem:[%s268 + $0x9] sm:$0xff]
      %v303 = vld [vmem:[%s268 + $0x19] sm:$0xff]
      %v304 = vld [vmem:[%s268 + $0x21] sm:$0xff]
      %v305 = vld [vmem:[%s268 + $0x31] sm:$0xff]
      %v306 = vld [vmem:[%s268 + $0x39] sm:$0xff]
      %v307 = vld [vmem:[%s268 + $0x49] sm:$0xff]
      %v308 = vld [vmem:[%s268 + $0x51] sm:$0xff]
      %v309 = vld [vmem:[%s268 + $0x61] sm:$0xff]
      %v310 = vld [vmem:[%s268 + $0x69] sm:$0xff]
      %v311 = vld [vmem:[%s268 + $0x79] sm:$0xff]
      %v312 = vld [vmem:[%s268 + $0x81] sm:$0xff]
      %v313 = vld [vmem:[%s268 + $0x91] sm:$0xff]
      %v314 = vld [vmem:[%s268 + $0x99] sm:$0xff]
      %v315 = vld [vmem:[%s268 + $0xa9] sm:$0xff]
      %v316 = vld [vmem:[%s268 + $0xb1] sm:$0xff]
      %v317 = vld [vmem:[%s268 + $0xc1] sm:$0xff]
      %v318 = vld [vmem:[%s268 + $0xc9] sm:$0xff]
      %v319 = vld [vmem:[%s268 + $0xd9] sm:$0xff]
      %v320 = vld [vmem:[%s268 + $0xe1] sm:$0xff]
      %v321 = vld [vmem:[%s268 + $0xf1] sm:$0xff]
      %v322 = vld [vmem:[%s268 + $0xf9] sm:$0xff]
      %v323 = vld [vmem:[%s268 + $0x109] sm:$0xff]
      %v324 = vld [vmem:[%s268 + $0x111] sm:$0xff]
      %v325 = vld [vmem:[%s268 + $0x121] sm:$0xff]
      %v326 = vld [vmem:[%s268 + $0x129] sm:$0xff]
      %v327 = vld [vmem:[%s268 + $0x139] sm:$0xff]
      %v328 = vld [vmem:[%s268 + $0x141] sm:$0xff]
      %v329 = vld [vmem:[%s268 + $0x151] sm:$0xff]
      %v330 = vld [vmem:[%s268 + $0x159] sm:$0xff]
      %v331 = vld [vmem:[%s268 + $0x169] sm:$0xff]
      %v332 = vld [vmem:[%s268 + $0x171] sm:$0xff]
      %v333 = vld [vmem:[%s268 + $0x2] sm:$0xff]
      %v334 = vld [vmem:[%s268 + $0xa] sm:$0xff]
      %v335 = vld [vmem:[%s268 + $0x1a] sm:$0xff]
      %v336 = vld [vmem:[%s268 + $0x22] sm:$0xff]
      %v337 = vld [vmem:[%s268 + $0x32] sm:$0xff]
      %v338 = vld [vmem:[%s268 + $0x3a] sm:$0xff]
      %v339 = vld [vmem:[%s268 + $0x4a] sm:$0xff]
      %v340 = vld [vmem:[%s268 + $0x52] sm:$0xff]
      %v341 = vld [vmem:[%s268 + $0x62] sm:$0xff]
      %v342 = vld [vmem:[%s268 + $0x6a] sm:$0xff]
      %v343 = vld [vmem:[%s268 + $0x7a] sm:$0xff]
      %v344 = vld [vmem:[%s268 + $0x82] sm:$0xff]
      %v345 = vld [vmem:[%s268 + $0x92] sm:$0xff]
      %v346 = vld [vmem:[%s268 + $0x9a] sm:$0xff]
      %v347 = vld [vmem:[%s268 + $0xaa] sm:$0xff]
      %v348 = vld [vmem:[%s268 + $0xb2] sm:$0xff]
      %v349 = vld [vmem:[%s268 + $0xc2] sm:$0xff]
      %v350 = vld [vmem:[%s268 + $0xca] sm:$0xff]
      %v351 = vld [vmem:[%s268 + $0xda] sm:$0xff]
      %v352 = vld [vmem:[%s268 + $0xe2] sm:$0xff]
      %v353 = vld [vmem:[%s268 + $0xf2] sm:$0xff]
      %v354 = vld [vmem:[%s268 + $0xfa] sm:$0xff]
      %v355 = vld [vmem:[%s268 + $0x10a] sm:$0xff]
      %v356 = vld [vmem:[%s268 + $0x112] sm:$0xff]
      %v357 = vld [vmem:[%s268 + $0x122] sm:$0xff]
      %v358 = vld [vmem:[%s268 + $0x12a] sm:$0xff]
      %v359 = vld [vmem:[%s268 + $0x13a] sm:$0xff]
      %v360 = vld [vmem:[%s268 + $0x142] sm:$0xff]
      %v361 = vld [vmem:[%s268 + $0x152] sm:$0xff]
      %v362 = vld [vmem:[%s268 + $0x15a] sm:$0xff]
      %v363 = vld [vmem:[%s268 + $0x16a] sm:$0xff]
      %v364 = vld [vmem:[%s268 + $0x172] sm:$0xff]
      %s365 = scalar_lea.vmem %s165, 48
      %v366 = vld [vmem:[%s365] sm:$0xff]
      %v367 = vld [vmem:[%s365 + $0x8] sm:$0xff]
      %v368 = vld [vmem:[%s365 + $0x18] sm:$0xff]
      %v369 = vld [vmem:[%s365 + $0x20] sm:$0xff]
      %v370 = vld [vmem:[%s365 + $0x30] sm:$0xff]
      %v371 = vld [vmem:[%s365 + $0x38] sm:$0xff]
      %v372 = vld [vmem:[%s365 + $0x48] sm:$0xff]
      %v373 = vld [vmem:[%s365 + $0x50] sm:$0xff]
      %v374 = vld [vmem:[%s365 + $0x60] sm:$0xff]
      %v375 = vld [vmem:[%s365 + $0x68] sm:$0xff]
      %v376 = vld [vmem:[%s365 + $0x78] sm:$0xff]
      %v377 = vld [vmem:[%s365 + $0x80] sm:$0xff]
      %v378 = vld [vmem:[%s365 + $0x90] sm:$0xff]
      %v379 = vld [vmem:[%s365 + $0x98] sm:$0xff]
      %v380 = vld [vmem:[%s365 + $0xa8] sm:$0xff]
      %v381 = vld [vmem:[%s365 + $0xb0] sm:$0xff]
      %v382 = vld [vmem:[%s365 + $0xc0] sm:$0xff]
      %v383 = vld [vmem:[%s365 + $0xc8] sm:$0xff]
      %v384 = vld [vmem:[%s365 + $0xd8] sm:$0xff]
      %v385 = vld [vmem:[%s365 + $0xe0] sm:$0xff]
      %v386 = vld [vmem:[%s365 + $0xf0] sm:$0xff]
      %v387 = vld [vmem:[%s365 + $0xf8] sm:$0xff]
      %v388 = vld [vmem:[%s365 + $0x108] sm:$0xff]
      %v389 = vld [vmem:[%s365 + $0x110] sm:$0xff]
      %v390 = vld [vmem:[%s365 + $0x120] sm:$0xff]
      %v391 = vld [vmem:[%s365 + $0x128] sm:$0xff]
      %v392 = vld [vmem:[%s365 + $0x138] sm:$0xff]
      %v393 = vld [vmem:[%s365 + $0x140] sm:$0xff]
      %v394 = vld [vmem:[%s365 + $0x150] sm:$0xff]
      %v395 = vld [vmem:[%s365 + $0x158] sm:$0xff]
      %v396 = vld [vmem:[%s365 + $0x168] sm:$0xff]
      %v397 = vld [vmem:[%s365 + $0x170] sm:$0xff]
      %v398 = vld [vmem:[%s365 + $0x1] sm:$0xff]
      %v399 = vld [vmem:[%s365 + $0x9] sm:$0xff]
      %v400 = vld [vmem:[%s365 + $0x19] sm:$0xff]
      %v401 = vld [vmem:[%s365 + $0x21] sm:$0xff]
      %v402 = vld [vmem:[%s365 + $0x31] sm:$0xff]
      %v403 = vld [vmem:[%s365 + $0x39] sm:$0xff]
      %v404 = vld [vmem:[%s365 + $0x49] sm:$0xff]
      %v405 = vld [vmem:[%s365 + $0x51] sm:$0xff]
      %v406 = vld [vmem:[%s365 + $0x61] sm:$0xff]
      %v407 = vld [vmem:[%s365 + $0x69] sm:$0xff]
      %v408 = vld [vmem:[%s365 + $0x79] sm:$0xff]
      %v409 = vld [vmem:[%s365 + $0x81] sm:$0xff]
      %v410 = vld [vmem:[%s365 + $0x91] sm:$0xff]
      %v411 = vld [vmem:[%s365 + $0x99] sm:$0xff]
      %v412 = vld [vmem:[%s365 + $0xa9] sm:$0xff]
      %v413 = vld [vmem:[%s365 + $0xb1] sm:$0xff]
      %v414 = vld [vmem:[%s365 + $0xc1] sm:$0xff]
      %v415 = vld [vmem:[%s365 + $0xc9] sm:$0xff]
      %v416 = vld [vmem:[%s365 + $0xd9] sm:$0xff]
      %v417 = vld [vmem:[%s365 + $0xe1] sm:$0xff]
      %v418 = vld [vmem:[%s365 + $0xf1] sm:$0xff]
      %v419 = vld [vmem:[%s365 + $0xf9] sm:$0xff]
      %v420 = vld [vmem:[%s365 + $0x109] sm:$0xff]
      %v421 = vld [vmem:[%s365 + $0x111] sm:$0xff]
      %v422 = vld [vmem:[%s365 + $0x121] sm:$0xff]
      %v423 = vld [vmem:[%s365 + $0x129] sm:$0xff]
      %v424 = vld [vmem:[%s365 + $0x139] sm:$0xff]
      %v425 = vld [vmem:[%s365 + $0x141] sm:$0xff]
      %v426 = vld [vmem:[%s365 + $0x151] sm:$0xff]
      %v427 = vld [vmem:[%s365 + $0x159] sm:$0xff]
      %v428 = vld [vmem:[%s365 + $0x169] sm:$0xff]
      %v429 = vld [vmem:[%s365 + $0x171] sm:$0xff]
      %v430 = vld [vmem:[%s365 + $0x2] sm:$0xff]
      %v431 = vld [vmem:[%s365 + $0xa] sm:$0xff]
      %v432 = vld [vmem:[%s365 + $0x1a] sm:$0xff]
      %v433 = vld [vmem:[%s365 + $0x22] sm:$0xff]
      %v434 = vld [vmem:[%s365 + $0x32] sm:$0xff]
      %v435 = vld [vmem:[%s365 + $0x3a] sm:$0xff]
      %v436 = vld [vmem:[%s365 + $0x4a] sm:$0xff]
      %v437 = vld [vmem:[%s365 + $0x52] sm:$0xff]
      %v438 = vld [vmem:[%s365 + $0x62] sm:$0xff]
      %v439 = vld [vmem:[%s365 + $0x6a] sm:$0xff]
      %v440 = vld [vmem:[%s365 + $0x7a] sm:$0xff]
      %v441 = vld [vmem:[%s365 + $0x82] sm:$0xff]
      %v442 = vld [vmem:[%s365 + $0x92] sm:$0xff]
      %v443 = vld [vmem:[%s365 + $0x9a] sm:$0xff]
      %v444 = vld [vmem:[%s365 + $0xaa] sm:$0xff]
      %v445 = vld [vmem:[%s365 + $0xb2] sm:$0xff]
      %v446 = vld [vmem:[%s365 + $0xc2] sm:$0xff]
      %v447 = vld [vmem:[%s365 + $0xca] sm:$0xff]
      %v448 = vld [vmem:[%s365 + $0xda] sm:$0xff]
      %v449 = vld [vmem:[%s365 + $0xe2] sm:$0xff]
      %v450 = vld [vmem:[%s365 + $0xf2] sm:$0xff]
      %v451 = vld [vmem:[%s365 + $0xfa] sm:$0xff]
      %v452 = vld [vmem:[%s365 + $0x10a] sm:$0xff]
      %v453 = vld [vmem:[%s365 + $0x112] sm:$0xff]
      %v454 = vld [vmem:[%s365 + $0x122] sm:$0xff]
      %v455 = vld [vmem:[%s365 + $0x12a] sm:$0xff]
      %v456 = vld [vmem:[%s365 + $0x13a] sm:$0xff]
      %v457 = vld [vmem:[%s365 + $0x142] sm:$0xff]
      %v458 = vld [vmem:[%s365 + $0x152] sm:$0xff]
      %v459 = vld [vmem:[%s365 + $0x15a] sm:$0xff]
      %v460 = vld [vmem:[%s365 + $0x16a] sm:$0xff]
      %v461 = vld [vmem:[%s365 + $0x172] sm:$0xff]
      %494 = vrot.lane.b32.xlu0 %v204, 4
      %v495 = vpop.permute.xlu0 %494
      %496 = vrot.lane.b32.xlu0 %v205, 4
      %v497 = vpop.permute.xlu0 %496
      %498 = vrot.lane.b32.xlu0 %v206, 4
      %v499 = vpop.permute.xlu0 %498
      %500 = vrot.lane.b32.xlu0 %v207, 4
      %v501 = vpop.permute.xlu0 %500
      %502 = vrot.lane.b32.xlu0 %v208, 4
      %v503 = vpop.permute.xlu0 %502
      %504 = vrot.lane.b32.xlu0 %v209, 4
      %v505 = vpop.permute.xlu0 %504
      %506 = vrot.lane.b32.xlu0 %v210, 4
      %v507 = vpop.permute.xlu0 %506
      %508 = vrot.lane.b32.xlu0 %v211, 4
      %v509 = vpop.permute.xlu0 %508
      %510 = vrot.lane.b32.xlu0 %v212, 4
      %v511 = vpop.permute.xlu0 %510
      %512 = vrot.lane.b32.xlu0 %v213, 4
      %v513 = vpop.permute.xlu0 %512
      %514 = vrot.lane.b32.xlu0 %v214, 4
      %v515 = vpop.permute.xlu0 %514
      %516 = vrot.lane.b32.xlu0 %v215, 4
      %v517 = vpop.permute.xlu0 %516
      %518 = vrot.lane.b32.xlu0 %v216, 4
      %v519 = vpop.permute.xlu0 %518
      %520 = vrot.lane.b32.xlu0 %v217, 4
      %v521 = vpop.permute.xlu0 %520
      %522 = vrot.lane.b32.xlu0 %v218, 4
      %v523 = vpop.permute.xlu0 %522
      %524 = vrot.lane.b32.xlu0 %v219, 4
      %v525 = vpop.permute.xlu0 %524
      %526 = vrot.lane.b32.xlu0 %v220, 4
      %v527 = vpop.permute.xlu0 %526
      %528 = vrot.lane.b32.xlu0 %v221, 4
      %v529 = vpop.permute.xlu0 %528
      %530 = vrot.lane.b32.xlu0 %v222, 4
      %v531 = vpop.permute.xlu0 %530
      %532 = vrot.lane.b32.xlu0 %v223, 4
      %v533 = vpop.permute.xlu0 %532
      %534 = vrot.lane.b32.xlu0 %v224, 4
      %v535 = vpop.permute.xlu0 %534
      %536 = vrot.lane.b32.xlu0 %v225, 4
      %v537 = vpop.permute.xlu0 %536
      %538 = vrot.lane.b32.xlu0 %v226, 4
      %v539 = vpop.permute.xlu0 %538
      %540 = vrot.lane.b32.xlu0 %v227, 4
      %v541 = vpop.permute.xlu0 %540
      %542 = vrot.lane.b32.xlu0 %v228, 4
      %v543 = vpop.permute.xlu0 %542
      %544 = vrot.lane.b32.xlu0 %v229, 4
      %v545 = vpop.permute.xlu0 %544
      %546 = vrot.lane.b32.xlu0 %v230, 4
      %v547 = vpop.permute.xlu0 %546
      %548 = vrot.lane.b32.xlu0 %v231, 4
      %v549 = vpop.permute.xlu0 %548
      %550 = vrot.lane.b32.xlu0 %v232, 4
      %v551 = vpop.permute.xlu0 %550
      %552 = vrot.lane.b32.xlu0 %v233, 4
      %v553 = vpop.permute.xlu0 %552
      %554 = vrot.lane.b32.xlu0 %v234, 4
      %v555 = vpop.permute.xlu0 %554
      %556 = vrot.lane.b32.xlu0 %v235, 4
      %v557 = vpop.permute.xlu0 %556
      %622 = vrot.lane.b32.xlu0 %v236, 8
      %v623 = vpop.permute.xlu0 %622
      %624 = vrot.lane.b32.xlu0 %v237, 8
      %v625 = vpop.permute.xlu0 %624
      %626 = vrot.lane.b32.xlu0 %v238, 8
      %v627 = vpop.permute.xlu0 %626
      %628 = vrot.lane.b32.xlu0 %v239, 8
      %v629 = vpop.permute.xlu0 %628
      %630 = vrot.lane.b32.xlu0 %v240, 8
      %v631 = vpop.permute.xlu0 %630
      %632 = vrot.lane.b32.xlu0 %v241, 8
      %v633 = vpop.permute.xlu0 %632
      %634 = vrot.lane.b32.xlu0 %v242, 8
      %v635 = vpop.permute.xlu0 %634
      %636 = vrot.lane.b32.xlu0 %v243, 8
      %v637 = vpop.permute.xlu0 %636
      %638 = vrot.lane.b32.xlu0 %v244, 8
      %v639 = vpop.permute.xlu0 %638
      %640 = vrot.lane.b32.xlu0 %v245, 8
      %v641 = vpop.permute.xlu0 %640
      %642 = vrot.lane.b32.xlu0 %v246, 8
      %v643 = vpop.permute.xlu0 %642
      %644 = vrot.lane.b32.xlu0 %v247, 8
      %v645 = vpop.permute.xlu0 %644
      %646 = vrot.lane.b32.xlu0 %v248, 8
      %v647 = vpop.permute.xlu0 %646
      %648 = vrot.lane.b32.xlu0 %v249, 8
      %v649 = vpop.permute.xlu0 %648
      %650 = vrot.lane.b32.xlu0 %v250, 8
      %v651 = vpop.permute.xlu0 %650
      %652 = vrot.lane.b32.xlu0 %v251, 8
      %v653 = vpop.permute.xlu0 %652
      %654 = vrot.lane.b32.xlu0 %v252, 8
      %v655 = vpop.permute.xlu0 %654
      %656 = vrot.lane.b32.xlu0 %v253, 8
      %v657 = vpop.permute.xlu0 %656
      %658 = vrot.lane.b32.xlu0 %v254, 8
      %v659 = vpop.permute.xlu0 %658
      %660 = vrot.lane.b32.xlu0 %v255, 8
      %v661 = vpop.permute.xlu0 %660
      %662 = vrot.lane.b32.xlu0 %v256, 8
      %v663 = vpop.permute.xlu0 %662
      %664 = vrot.lane.b32.xlu0 %v257, 8
      %v665 = vpop.permute.xlu0 %664
      %666 = vrot.lane.b32.xlu0 %v258, 8
      %v667 = vpop.permute.xlu0 %666
      %668 = vrot.lane.b32.xlu0 %v259, 8
      %v669 = vpop.permute.xlu0 %668
      %670 = vrot.lane.b32.xlu0 %v260, 8
      %v671 = vpop.permute.xlu0 %670
      %672 = vrot.lane.b32.xlu0 %v261, 8
      %v673 = vpop.permute.xlu0 %672
      %674 = vrot.lane.b32.xlu0 %v262, 8
      %v675 = vpop.permute.xlu0 %674
      %676 = vrot.lane.b32.xlu0 %v263, 8
      %v677 = vpop.permute.xlu0 %676
      %678 = vrot.lane.b32.xlu0 %v264, 8
      %v679 = vpop.permute.xlu0 %678
      %680 = vrot.lane.b32.xlu0 %v265, 8
      %v681 = vpop.permute.xlu0 %680
      %682 = vrot.lane.b32.xlu0 %v266, 8
      %v683 = vpop.permute.xlu0 %682
      %684 = vrot.lane.b32.xlu0 %v267, 8
      %v685 = vpop.permute.xlu0 %684
      %750 = vrot.lane.b32.xlu0 %v269, 12
      %v751 = vpop.permute.xlu0 %750
      %752 = vrot.lane.b32.xlu0 %v270, 12
      %v753 = vpop.permute.xlu0 %752
      %754 = vrot.lane.b32.xlu0 %v271, 12
      %v755 = vpop.permute.xlu0 %754
      %756 = vrot.lane.b32.xlu0 %v272, 12
      %v757 = vpop.permute.xlu0 %756
      %758 = vrot.lane.b32.xlu0 %v273, 12
      %v759 = vpop.permute.xlu0 %758
      %760 = vrot.lane.b32.xlu0 %v274, 12
      %v761 = vpop.permute.xlu0 %760
      %762 = vrot.lane.b32.xlu0 %v275, 12
      %v763 = vpop.permute.xlu0 %762
      %764 = vrot.lane.b32.xlu0 %v276, 12
      %v765 = vpop.permute.xlu0 %764
      %766 = vrot.lane.b32.xlu0 %v277, 12
      %v767 = vpop.permute.xlu0 %766
      %768 = vrot.lane.b32.xlu0 %v278, 12
      %v769 = vpop.permute.xlu0 %768
      %770 = vrot.lane.b32.xlu0 %v279, 12
      %v771 = vpop.permute.xlu0 %770
      %772 = vrot.lane.b32.xlu0 %v280, 12
      %v773 = vpop.permute.xlu0 %772
      %774 = vrot.lane.b32.xlu0 %v281, 12
      %v775 = vpop.permute.xlu0 %774
      %776 = vrot.lane.b32.xlu0 %v282, 12
      %v777 = vpop.permute.xlu0 %776
      %778 = vrot.lane.b32.xlu0 %v283, 12
      %v779 = vpop.permute.xlu0 %778
      %780 = vrot.lane.b32.xlu0 %v284, 12
      %v781 = vpop.permute.xlu0 %780
      %782 = vrot.lane.b32.xlu0 %v285, 12
      %v783 = vpop.permute.xlu0 %782
      %784 = vrot.lane.b32.xlu0 %v286, 12
      %v785 = vpop.permute.xlu0 %784
      %786 = vrot.lane.b32.xlu0 %v287, 12
      %v787 = vpop.permute.xlu0 %786
      %788 = vrot.lane.b32.xlu0 %v288, 12
      %v789 = vpop.permute.xlu0 %788
      %790 = vrot.lane.b32.xlu0 %v289, 12
      %v791 = vpop.permute.xlu0 %790
      %792 = vrot.lane.b32.xlu0 %v290, 12
      %v793 = vpop.permute.xlu0 %792
      %794 = vrot.lane.b32.xlu0 %v291, 12
      %v795 = vpop.permute.xlu0 %794
      %796 = vrot.lane.b32.xlu0 %v292, 12
      %v797 = vpop.permute.xlu0 %796
      %798 = vrot.lane.b32.xlu0 %v293, 12
      %v799 = vpop.permute.xlu0 %798
      %800 = vrot.lane.b32.xlu0 %v294, 12
      %v801 = vpop.permute.xlu0 %800
      %802 = vrot.lane.b32.xlu0 %v295, 12
      %v803 = vpop.permute.xlu0 %802
      %804 = vrot.lane.b32.xlu0 %v296, 12
      %v805 = vpop.permute.xlu0 %804
      %806 = vrot.lane.b32.xlu0 %v297, 12
      %v807 = vpop.permute.xlu0 %806
      %808 = vrot.lane.b32.xlu0 %v298, 12
      %v809 = vpop.permute.xlu0 %808
      %810 = vrot.lane.b32.xlu0 %v299, 12
      %v811 = vpop.permute.xlu0 %810
      %812 = vrot.lane.b32.xlu0 %v300, 12
      %v813 = vpop.permute.xlu0 %812
      %878 = vrot.lane.b32.xlu0 %v301, 16
      %v879 = vpop.permute.xlu0 %878
      %880 = vrot.lane.b32.xlu0 %v302, 16
      %v881 = vpop.permute.xlu0 %880
      %882 = vrot.lane.b32.xlu0 %v303, 16
      %v883 = vpop.permute.xlu0 %882
      %884 = vrot.lane.b32.xlu0 %v304, 16
      %v885 = vpop.permute.xlu0 %884
      %886 = vrot.lane.b32.xlu0 %v305, 16
      %v887 = vpop.permute.xlu0 %886
      %888 = vrot.lane.b32.xlu0 %v306, 16
      %v889 = vpop.permute.xlu0 %888
      %890 = vrot.lane.b32.xlu0 %v307, 16
      %v891 = vpop.permute.xlu0 %890
      %892 = vrot.lane.b32.xlu0 %v308, 16
      %v893 = vpop.permute.xlu0 %892
      %894 = vrot.lane.b32.xlu0 %v309, 16
      %v895 = vpop.permute.xlu0 %894
      %896 = vrot.lane.b32.xlu0 %v310, 16
      %v897 = vpop.permute.xlu0 %896
      %898 = vrot.lane.b32.xlu0 %v311, 16
      %v899 = vpop.permute.xlu0 %898
      %900 = vrot.lane.b32.xlu0 %v312, 16
      %v901 = vpop.permute.xlu0 %900
      %902 = vrot.lane.b32.xlu0 %v313, 16
      %v903 = vpop.permute.xlu0 %902
      %904 = vrot.lane.b32.xlu0 %v314, 16
      %v905 = vpop.permute.xlu0 %904
      %906 = vrot.lane.b32.xlu0 %v315, 16
      %v907 = vpop.permute.xlu0 %906
      %908 = vrot.lane.b32.xlu0 %v316, 16
      %v909 = vpop.permute.xlu0 %908
      %910 = vrot.lane.b32.xlu0 %v317, 16
      %v911 = vpop.permute.xlu0 %910
      %912 = vrot.lane.b32.xlu0 %v318, 16
      %v913 = vpop.permute.xlu0 %912
      %914 = vrot.lane.b32.xlu0 %v319, 16
      %v915 = vpop.permute.xlu0 %914
      %916 = vrot.lane.b32.xlu0 %v320, 16
      %v917 = vpop.permute.xlu0 %916
      %918 = vrot.lane.b32.xlu0 %v321, 16
      %v919 = vpop.permute.xlu0 %918
      %920 = vrot.lane.b32.xlu0 %v322, 16
      %v921 = vpop.permute.xlu0 %920
      %922 = vrot.lane.b32.xlu0 %v323, 16
      %v923 = vpop.permute.xlu0 %922
      %924 = vrot.lane.b32.xlu0 %v324, 16
      %v925 = vpop.permute.xlu0 %924
      %926 = vrot.lane.b32.xlu0 %v325, 16
      %v927 = vpop.permute.xlu0 %926
      %928 = vrot.lane.b32.xlu0 %v326, 16
      %v929 = vpop.permute.xlu0 %928
      %930 = vrot.lane.b32.xlu0 %v327, 16
      %v931 = vpop.permute.xlu0 %930
      %932 = vrot.lane.b32.xlu0 %v328, 16
      %v933 = vpop.permute.xlu0 %932
      %934 = vrot.lane.b32.xlu0 %v329, 16
      %v935 = vpop.permute.xlu0 %934
      %936 = vrot.lane.b32.xlu0 %v330, 16
      %v937 = vpop.permute.xlu0 %936
      %938 = vrot.lane.b32.xlu0 %v331, 16
      %v939 = vpop.permute.xlu0 %938
      %940 = vrot.lane.b32.xlu0 %v332, 16
      %v941 = vpop.permute.xlu0 %940
      %1006 = vrot.lane.b32.xlu0 %v333, 20
      %v1007 = vpop.permute.xlu0 %1006
      %1008 = vrot.lane.b32.xlu0 %v334, 20
      %v1009 = vpop.permute.xlu0 %1008
      %1010 = vrot.lane.b32.xlu0 %v335, 20
      %v1011 = vpop.permute.xlu0 %1010
      %1012 = vrot.lane.b32.xlu0 %v336, 20
      %v1013 = vpop.permute.xlu0 %1012
      %1014 = vrot.lane.b32.xlu0 %v337, 20
      %v1015 = vpop.permute.xlu0 %1014
      %1016 = vrot.lane.b32.xlu0 %v338, 20
      %v1017 = vpop.permute.xlu0 %1016
      %1018 = vrot.lane.b32.xlu0 %v339, 20
      %v1019 = vpop.permute.xlu0 %1018
      %1020 = vrot.lane.b32.xlu0 %v340, 20
      %v1021 = vpop.permute.xlu0 %1020
      %1022 = vrot.lane.b32.xlu0 %v341, 20
      %v1023 = vpop.permute.xlu0 %1022
      %1024 = vrot.lane.b32.xlu0 %v342, 20
      %v1025 = vpop.permute.xlu0 %1024
      %1026 = vrot.lane.b32.xlu0 %v343, 20
      %v1027 = vpop.permute.xlu0 %1026
      %1028 = vrot.lane.b32.xlu0 %v344, 20
      %v1029 = vpop.permute.xlu0 %1028
      %1030 = vrot.lane.b32.xlu0 %v345, 20
      %v1031 = vpop.permute.xlu0 %1030
      %1032 = vrot.lane.b32.xlu0 %v346, 20
      %v1033 = vpop.permute.xlu0 %1032
      %1034 = vrot.lane.b32.xlu0 %v347, 20
      %v1035 = vpop.permute.xlu0 %1034
      %1036 = vrot.lane.b32.xlu0 %v348, 20
      %v1037 = vpop.permute.xlu0 %1036
      %1038 = vrot.lane.b32.xlu0 %v349, 20
      %v1039 = vpop.permute.xlu0 %1038
      %1040 = vrot.lane.b32.xlu0 %v350, 20
      %v1041 = vpop.permute.xlu0 %1040
      %1042 = vrot.lane.b32.xlu0 %v351, 20
      %v1043 = vpop.permute.xlu0 %1042
      %1044 = vrot.lane.b32.xlu0 %v352, 20
      %v1045 = vpop.permute.xlu0 %1044
      %1046 = vrot.lane.b32.xlu0 %v353, 20
      %v1047 = vpop.permute.xlu0 %1046
      %1048 = vrot.lane.b32.xlu0 %v354, 20
      %v1049 = vpop.permute.xlu0 %1048
      %1050 = vrot.lane.b32.xlu0 %v355, 20
      %v1051 = vpop.permute.xlu0 %1050
      %1052 = vrot.lane.b32.xlu0 %v356, 20
      %v1053 = vpop.permute.xlu0 %1052
      %1054 = vrot.lane.b32.xlu0 %v357, 20
      %v1055 = vpop.permute.xlu0 %1054
      %1056 = vrot.lane.b32.xlu0 %v358, 20
      %v1057 = vpop.permute.xlu0 %1056
      %1058 = vrot.lane.b32.xlu0 %v359, 20
      %v1059 = vpop.permute.xlu0 %1058
      %1060 = vrot.lane.b32.xlu0 %v360, 20
      %v1061 = vpop.permute.xlu0 %1060
      %1062 = vrot.lane.b32.xlu0 %v361, 20
      %v1063 = vpop.permute.xlu0 %1062
      %1064 = vrot.lane.b32.xlu0 %v362, 20
      %v1065 = vpop.permute.xlu0 %1064
      %1066 = vrot.lane.b32.xlu0 %v363, 20
      %v1067 = vpop.permute.xlu0 %1066
      %1068 = vrot.lane.b32.xlu0 %v364, 20
      %v1069 = vpop.permute.xlu0 %1068
      %1134 = vrot.lane.b32.xlu0 %v366, 24
      %v1135 = vpop.permute.xlu0 %1134
      %1136 = vrot.lane.b32.xlu0 %v367, 24
      %v1137 = vpop.permute.xlu0 %1136
      %1138 = vrot.lane.b32.xlu0 %v368, 24
      %v1139 = vpop.permute.xlu0 %1138
      %1140 = vrot.lane.b32.xlu0 %v369, 24
      %v1141 = vpop.permute.xlu0 %1140
      %1142 = vrot.lane.b32.xlu0 %v370, 24
      %v1143 = vpop.permute.xlu0 %1142
      %1144 = vrot.lane.b32.xlu0 %v371, 24
      %v1145 = vpop.permute.xlu0 %1144
      %1146 = vrot.lane.b32.xlu0 %v372, 24
      %v1147 = vpop.permute.xlu0 %1146
      %1148 = vrot.lane.b32.xlu0 %v373, 24
      %v1149 = vpop.permute.xlu0 %1148
      %1150 = vrot.lane.b32.xlu0 %v374, 24
      %v1151 = vpop.permute.xlu0 %1150
      %1152 = vrot.lane.b32.xlu0 %v375, 24
      %v1153 = vpop.permute.xlu0 %1152
      %1154 = vrot.lane.b32.xlu0 %v376, 24
      %v1155 = vpop.permute.xlu0 %1154
      %1156 = vrot.lane.b32.xlu0 %v377, 24
      %v1157 = vpop.permute.xlu0 %1156
      %1158 = vrot.lane.b32.xlu0 %v378, 24
      %v1159 = vpop.permute.xlu0 %1158
      %1160 = vrot.lane.b32.xlu0 %v379, 24
      %v1161 = vpop.permute.xlu0 %1160
      %1162 = vrot.lane.b32.xlu0 %v380, 24
      %v1163 = vpop.permute.xlu0 %1162
      %1164 = vrot.lane.b32.xlu0 %v381, 24
      %v1165 = vpop.permute.xlu0 %1164
      %1166 = vrot.lane.b32.xlu0 %v382, 24
      %v1167 = vpop.permute.xlu0 %1166
      %1168 = vrot.lane.b32.xlu0 %v383, 24
      %v1169 = vpop.permute.xlu0 %1168
      %1170 = vrot.lane.b32.xlu0 %v384, 24
      %v1171 = vpop.permute.xlu0 %1170
      %1172 = vrot.lane.b32.xlu0 %v385, 24
      %v1173 = vpop.permute.xlu0 %1172
      %1174 = vrot.lane.b32.xlu0 %v386, 24
      %v1175 = vpop.permute.xlu0 %1174
      %1176 = vrot.lane.b32.xlu0 %v387, 24
      %v1177 = vpop.permute.xlu0 %1176
      %1178 = vrot.lane.b32.xlu0 %v388, 24
      %v1179 = vpop.permute.xlu0 %1178
      %1180 = vrot.lane.b32.xlu0 %v389, 24
      %v1181 = vpop.permute.xlu0 %1180
      %1182 = vrot.lane.b32.xlu0 %v390, 24
      %v1183 = vpop.permute.xlu0 %1182
      %1184 = vrot.lane.b32.xlu0 %v391, 24
      %v1185 = vpop.permute.xlu0 %1184
      %1186 = vrot.lane.b32.xlu0 %v392, 24
      %v1187 = vpop.permute.xlu0 %1186
      %1188 = vrot.lane.b32.xlu0 %v393, 24
      %v1189 = vpop.permute.xlu0 %1188
      %1190 = vrot.lane.b32.xlu0 %v394, 24
      %v1191 = vpop.permute.xlu0 %1190
      %1192 = vrot.lane.b32.xlu0 %v395, 24
      %v1193 = vpop.permute.xlu0 %1192
      %1194 = vrot.lane.b32.xlu0 %v396, 24
      %v1195 = vpop.permute.xlu0 %1194
      %1196 = vrot.lane.b32.xlu0 %v397, 24
      %v1197 = vpop.permute.xlu0 %1196
      %1262 = vrot.lane.b32.xlu0 %v398, 28
      %v1263 = vpop.permute.xlu0 %1262
      %1264 = vrot.lane.b32.xlu0 %v399, 28
      %v1265 = vpop.permute.xlu0 %1264
      %1266 = vrot.lane.b32.xlu0 %v400, 28
      %v1267 = vpop.permute.xlu0 %1266
      %1268 = vrot.lane.b32.xlu0 %v401, 28
      %v1269 = vpop.permute.xlu0 %1268
      %1270 = vrot.lane.b32.xlu0 %v402, 28
      %v1271 = vpop.permute.xlu0 %1270
      %1272 = vrot.lane.b32.xlu0 %v403, 28
      %v1273 = vpop.permute.xlu0 %1272
      %1274 = vrot.lane.b32.xlu0 %v404, 28
      %v1275 = vpop.permute.xlu0 %1274
      %1276 = vrot.lane.b32.xlu0 %v405, 28
      %v1277 = vpop.permute.xlu0 %1276
      %1278 = vrot.lane.b32.xlu0 %v406, 28
      %v1279 = vpop.permute.xlu0 %1278
      %1280 = vrot.lane.b32.xlu0 %v407, 28
      %v1281 = vpop.permute.xlu0 %1280
      %1282 = vrot.lane.b32.xlu0 %v408, 28
      %v1283 = vpop.permute.xlu0 %1282
      %1284 = vrot.lane.b32.xlu0 %v409, 28
      %v1285 = vpop.permute.xlu0 %1284
      %1286 = vrot.lane.b32.xlu0 %v410, 28
      %v1287 = vpop.permute.xlu0 %1286
      %1288 = vrot.lane.b32.xlu0 %v411, 28
      %v1289 = vpop.permute.xlu0 %1288
      %1290 = vrot.lane.b32.xlu0 %v412, 28
      %v1291 = vpop.permute.xlu0 %1290
      %1292 = vrot.lane.b32.xlu0 %v413, 28
      %v1293 = vpop.permute.xlu0 %1292
      %1294 = vrot.lane.b32.xlu0 %v414, 28
      %v1295 = vpop.permute.xlu0 %1294
      %1296 = vrot.lane.b32.xlu0 %v415, 28
      %v1297 = vpop.permute.xlu0 %1296
      %1298 = vrot.lane.b32.xlu0 %v416, 28
      %v1299 = vpop.permute.xlu0 %1298
      %1300 = vrot.lane.b32.xlu0 %v417, 28
      %v1301 = vpop.permute.xlu0 %1300
      %1302 = vrot.lane.b32.xlu0 %v418, 28
      %v1303 = vpop.permute.xlu0 %1302
      %1304 = vrot.lane.b32.xlu0 %v419, 28
      %v1305 = vpop.permute.xlu0 %1304
      %1306 = vrot.lane.b32.xlu0 %v420, 28
      %v1307 = vpop.permute.xlu0 %1306
      %1308 = vrot.lane.b32.xlu0 %v421, 28
      %v1309 = vpop.permute.xlu0 %1308
      %1310 = vrot.lane.b32.xlu0 %v422, 28
      %v1311 = vpop.permute.xlu0 %1310
      %1312 = vrot.lane.b32.xlu0 %v423, 28
      %v1313 = vpop.permute.xlu0 %1312
      %1314 = vrot.lane.b32.xlu0 %v424, 28
      %v1315 = vpop.permute.xlu0 %1314
      %1316 = vrot.lane.b32.xlu0 %v425, 28
      %v1317 = vpop.permute.xlu0 %1316
      %1318 = vrot.lane.b32.xlu0 %v426, 28
      %v1319 = vpop.permute.xlu0 %1318
      %1320 = vrot.lane.b32.xlu0 %v427, 28
      %v1321 = vpop.permute.xlu0 %1320
      %1322 = vrot.lane.b32.xlu0 %v428, 28
      %v1323 = vpop.permute.xlu0 %1322
      %1324 = vrot.lane.b32.xlu0 %v429, 28
      %v1325 = vpop.permute.xlu0 %1324
      %1390 = vrot.lane.b32.xlu0 %v430, 32
      %v1391 = vpop.permute.xlu0 %1390
      %1392 = vrot.lane.b32.xlu0 %v431, 32
      %v1393 = vpop.permute.xlu0 %1392
      %1394 = vrot.lane.b32.xlu0 %v432, 32
      %v1395 = vpop.permute.xlu0 %1394
      %1396 = vrot.lane.b32.xlu0 %v433, 32
      %v1397 = vpop.permute.xlu0 %1396
      %1398 = vrot.lane.b32.xlu0 %v434, 32
      %v1399 = vpop.permute.xlu0 %1398
      %1400 = vrot.lane.b32.xlu0 %v435, 32
      %v1401 = vpop.permute.xlu0 %1400
      %1402 = vrot.lane.b32.xlu0 %v436, 32
      %v1403 = vpop.permute.xlu0 %1402
      %1404 = vrot.lane.b32.xlu0 %v437, 32
      %v1405 = vpop.permute.xlu0 %1404
      %1406 = vrot.lane.b32.xlu0 %v438, 32
      %v1407 = vpop.permute.xlu0 %1406
      %1408 = vrot.lane.b32.xlu0 %v439, 32
      %v1409 = vpop.permute.xlu0 %1408
      %1410 = vrot.lane.b32.xlu0 %v440, 32
      %v1411 = vpop.permute.xlu0 %1410
      %1412 = vrot.lane.b32.xlu0 %v441, 32
      %v1413 = vpop.permute.xlu0 %1412
      %1414 = vrot.lane.b32.xlu0 %v442, 32
      %v1415 = vpop.permute.xlu0 %1414
      %1416 = vrot.lane.b32.xlu0 %v443, 32
      %v1417 = vpop.permute.xlu0 %1416
      %1418 = vrot.lane.b32.xlu0 %v444, 32
      %v1419 = vpop.permute.xlu0 %1418
      %1420 = vrot.lane.b32.xlu0 %v445, 32
      %v1421 = vpop.permute.xlu0 %1420
      %1422 = vrot.lane.b32.xlu0 %v446, 32
      %v1423 = vpop.permute.xlu0 %1422
      %1424 = vrot.lane.b32.xlu0 %v447, 32
      %v1425 = vpop.permute.xlu0 %1424
      %1426 = vrot.lane.b32.xlu0 %v448, 32
      %v1427 = vpop.permute.xlu0 %1426
      %1428 = vrot.lane.b32.xlu0 %v449, 32
      %v1429 = vpop.permute.xlu0 %1428
      %1430 = vrot.lane.b32.xlu0 %v450, 32
      %v1431 = vpop.permute.xlu0 %1430
      %1432 = vrot.lane.b32.xlu0 %v451, 32
      %v1433 = vpop.permute.xlu0 %1432
      %1434 = vrot.lane.b32.xlu0 %v452, 32
      %v1435 = vpop.permute.xlu0 %1434
      %1436 = vrot.lane.b32.xlu0 %v453, 32
      %v1437 = vpop.permute.xlu0 %1436
      %1438 = vrot.lane.b32.xlu0 %v454, 32
      %v1439 = vpop.permute.xlu0 %1438
      %1440 = vrot.lane.b32.xlu0 %v455, 32
      %v1441 = vpop.permute.xlu0 %1440
      %1442 = vrot.lane.b32.xlu0 %v456, 32
      %v1443 = vpop.permute.xlu0 %1442
      %1444 = vrot.lane.b32.xlu0 %v457, 32
      %v1445 = vpop.permute.xlu0 %1444
      %1446 = vrot.lane.b32.xlu0 %v458, 32
      %v1447 = vpop.permute.xlu0 %1446
      %1448 = vrot.lane.b32.xlu0 %v459, 32
      %v1449 = vpop.permute.xlu0 %1448
      %1450 = vrot.lane.b32.xlu0 %v460, 32
      %v1451 = vpop.permute.xlu0 %1450
      %1452 = vrot.lane.b32.xlu0 %v461, 32
      %v1453 = vpop.permute.xlu0 %1452
      %vm1486 = vcmask 31744
      %v1487 = vsel %vm1486, %v172, %v495
      %v1488 = vsel %vm1486, %v173, %v497
      %v1489 = vsel %vm1486, %v174, %v499
      %v1490 = vsel %vm1486, %v175, %v501
      %v1491 = vsel %vm1486, %v176, %v503
      %v1492 = vsel %vm1486, %v177, %v505
      %v1493 = vsel %vm1486, %v178, %v507
      %v1494 = vsel %vm1486, %v179, %v509
      %v1495 = vsel %vm1486, %v180, %v511
      %v1496 = vsel %vm1486, %v181, %v513
      %v1497 = vsel %vm1486, %v182, %v515
      %v1498 = vsel %vm1486, %v183, %v517
      %v1499 = vsel %vm1486, %v184, %v519
      %v1500 = vsel %vm1486, %v185, %v521
      %v1501 = vsel %vm1486, %v186, %v523
      %v1502 = vsel %vm1486, %v187, %v525
      %v1503 = vsel %vm1486, %v188, %v527
      %v1504 = vsel %vm1486, %v189, %v529
      %v1505 = vsel %vm1486, %v190, %v531
      %v1506 = vsel %vm1486, %v191, %v533
      %v1507 = vsel %vm1486, %v192, %v535
      %v1508 = vsel %vm1486, %v193, %v537
      %v1509 = vsel %vm1486, %v194, %v539
      %v1510 = vsel %vm1486, %v195, %v541
      %v1511 = vsel %vm1486, %v196, %v543
      %v1512 = vsel %vm1486, %v197, %v545
      %v1513 = vsel %vm1486, %v198, %v547
      %v1514 = vsel %vm1486, %v199, %v549
      %v1515 = vsel %vm1486, %v200, %v551
      %v1516 = vsel %vm1486, %v201, %v553
      %v1517 = vsel %vm1486, %v202, %v555
      %v1518 = vsel %vm1486, %v203, %v557
      %vm1519 = vcmask 64512
      %v1520 = vsel %vm1519, %v1487, %v623
      %v1521 = vsel %vm1519, %v1488, %v625
      %v1522 = vsel %vm1519, %v1489, %v627
      %v1523 = vsel %vm1519, %v1490, %v629
      %v1524 = vsel %vm1519, %v1491, %v631
      %v1525 = vsel %vm1519, %v1492, %v633
      %v1526 = vsel %vm1519, %v1493, %v635
      %v1527 = vsel %vm1519, %v1494, %v637
      %v1528 = vsel %vm1519, %v1495, %v639
      %v1529 = vsel %vm1519, %v1496, %v641
      %v1530 = vsel %vm1519, %v1497, %v643
      %v1531 = vsel %vm1519, %v1498, %v645
      %v1532 = vsel %vm1519, %v1499, %v647
      %v1533 = vsel %vm1519, %v1500, %v649
      %v1534 = vsel %vm1519, %v1501, %v651
      %v1535 = vsel %vm1519, %v1502, %v653
      %v1536 = vsel %vm1519, %v1503, %v655
      %v1537 = vsel %vm1519, %v1504, %v657
      %v1538 = vsel %vm1519, %v1505, %v659
      %v1539 = vsel %vm1519, %v1506, %v661
      %v1540 = vsel %vm1519, %v1507, %v663
      %v1541 = vsel %vm1519, %v1508, %v665
      %v1542 = vsel %vm1519, %v1509, %v667
      %v1543 = vsel %vm1519, %v1510, %v669
      %v1544 = vsel %vm1519, %v1511, %v671
      %v1545 = vsel %vm1519, %v1512, %v673
      %v1546 = vsel %vm1519, %v1513, %v675
      %v1547 = vsel %vm1519, %v1514, %v677
      %v1548 = vsel %vm1519, %v1515, %v679
      %v1549 = vsel %vm1519, %v1516, %v681
      %v1550 = vsel %vm1519, %v1517, %v683
      %v1551 = vsel %vm1519, %v1518, %v685
      %vm1552 = vcmask 97280
      %v1553 = vsel %vm1552, %v1520, %v751
      %v1554 = vsel %vm1552, %v1521, %v753
      %v1555 = vsel %vm1552, %v1522, %v755
      %v1556 = vsel %vm1552, %v1523, %v757
      %v1557 = vsel %vm1552, %v1524, %v759
      %v1558 = vsel %vm1552, %v1525, %v761
      %v1559 = vsel %vm1552, %v1526, %v763
      %v1560 = vsel %vm1552, %v1527, %v765
      %v1561 = vsel %vm1552, %v1528, %v767
      %v1562 = vsel %vm1552, %v1529, %v769
      %v1563 = vsel %vm1552, %v1530, %v771
      %v1564 = vsel %vm1552, %v1531, %v773
      %v1565 = vsel %vm1552, %v1532, %v775
      %v1566 = vsel %vm1552, %v1533, %v777
      %v1567 = vsel %vm1552, %v1534, %v779
      %v1568 = vsel %vm1552, %v1535, %v781
      %v1569 = vsel %vm1552, %v1536, %v783
      %v1570 = vsel %vm1552, %v1537, %v785
      %v1571 = vsel %vm1552, %v1538, %v787
      %v1572 = vsel %vm1552, %v1539, %v789
      %v1573 = vsel %vm1552, %v1540, %v791
      %v1574 = vsel %vm1552, %v1541, %v793
      %v1575 = vsel %vm1552, %v1542, %v795
      %v1576 = vsel %vm1552, %v1543, %v797
      %v1577 = vsel %vm1552, %v1544, %v799
      %v1578 = vsel %vm1552, %v1545, %v801
      %v1579 = vsel %vm1552, %v1546, %v803
      %v1580 = vsel %vm1552, %v1547, %v805
      %v1581 = vsel %vm1552, %v1548, %v807
      %v1582 = vsel %vm1552, %v1549, %v809
      %v1583 = vsel %vm1552, %v1550, %v811
      %v1584 = vsel %vm1552, %v1551, %v813
      %vm1585 = vcmask 130048
      %v1586 = vsel %vm1585, %v1553, %v879
      %v1587 = vsel %vm1585, %v1554, %v881
      %v1588 = vsel %vm1585, %v1555, %v883
      %v1589 = vsel %vm1585, %v1556, %v885
      %v1590 = vsel %vm1585, %v1557, %v887
      %v1591 = vsel %vm1585, %v1558, %v889
      %v1592 = vsel %vm1585, %v1559, %v891
      %v1593 = vsel %vm1585, %v1560, %v893
      %v1594 = vsel %vm1585, %v1561, %v895
      %v1595 = vsel %vm1585, %v1562, %v897
      %v1596 = vsel %vm1585, %v1563, %v899
      %v1597 = vsel %vm1585, %v1564, %v901
      %v1598 = vsel %vm1585, %v1565, %v903
      %v1599 = vsel %vm1585, %v1566, %v905
      %v1600 = vsel %vm1585, %v1567, %v907
      %v1601 = vsel %vm1585, %v1568, %v909
      %v1602 = vsel %vm1585, %v1569, %v911
      %v1603 = vsel %vm1585, %v1570, %v913
      %v1604 = vsel %vm1585, %v1571, %v915
      %v1605 = vsel %vm1585, %v1572, %v917
      %v1606 = vsel %vm1585, %v1573, %v919
      %v1607 = vsel %vm1585, %v1574, %v921
      %v1608 = vsel %vm1585, %v1575, %v923
      %v1609 = vsel %vm1585, %v1576, %v925
      %v1610 = vsel %vm1585, %v1577, %v927
      %v1611 = vsel %vm1585, %v1578, %v929
      %v1612 = vsel %vm1585, %v1579, %v931
      %v1613 = vsel %vm1585, %v1580, %v933
      %v1614 = vsel %vm1585, %v1581, %v935
      %v1615 = vsel %vm1585, %v1582, %v937
      %v1616 = vsel %vm1585, %v1583, %v939
      %v1617 = vsel %vm1585, %v1584, %v941
      %vm1618 = vcmask 162816
      %v1619 = vsel %vm1618, %v1586, %v1007
      %v1620 = vsel %vm1618, %v1587, %v1009
      %v1621 = vsel %vm1618, %v1588, %v1011
      %v1622 = vsel %vm1618, %v1589, %v1013
      %v1623 = vsel %vm1618, %v1590, %v1015
      %v1624 = vsel %vm1618, %v1591, %v1017
      %v1625 = vsel %vm1618, %v1592, %v1019
      %v1626 = vsel %vm1618, %v1593, %v1021
      %v1627 = vsel %vm1618, %v1594, %v1023
      %v1628 = vsel %vm1618, %v1595, %v1025
      %v1629 = vsel %vm1618, %v1596, %v1027
      %v1630 = vsel %vm1618, %v1597, %v1029
      %v1631 = vsel %vm1618, %v1598, %v1031
      %v1632 = vsel %vm1618, %v1599, %v1033
      %v1633 = vsel %vm1618, %v1600, %v1035
      %v1634 = vsel %vm1618, %v1601, %v1037
      %v1635 = vsel %vm1618, %v1602, %v1039
      %v1636 = vsel %vm1618, %v1603, %v1041
      %v1637 = vsel %vm1618, %v1604, %v1043
      %v1638 = vsel %vm1618, %v1605, %v1045
      %v1639 = vsel %vm1618, %v1606, %v1047
      %v1640 = vsel %vm1618, %v1607, %v1049
      %v1641 = vsel %vm1618, %v1608, %v1051
      %v1642 = vsel %vm1618, %v1609, %v1053
      %v1643 = vsel %vm1618, %v1610, %v1055
      %v1644 = vsel %vm1618, %v1611, %v1057
      %v1645 = vsel %vm1618, %v1612, %v1059
      %v1646 = vsel %vm1618, %v1613, %v1061
      %v1647 = vsel %vm1618, %v1614, %v1063
      %v1648 = vsel %vm1618, %v1615, %v1065
      %v1649 = vsel %vm1618, %v1616, %v1067
      %v1650 = vsel %vm1618, %v1617, %v1069
      %vm1651 = vcmask 195584
      %v1652 = vsel %vm1651, %v1619, %v1135
      %v1653 = vsel %vm1651, %v1620, %v1137
      %v1654 = vsel %vm1651, %v1621, %v1139
      %v1655 = vsel %vm1651, %v1622, %v1141
      %v1656 = vsel %vm1651, %v1623, %v1143
      %v1657 = vsel %vm1651, %v1624, %v1145
      %v1658 = vsel %vm1651, %v1625, %v1147
      %v1659 = vsel %vm1651, %v1626, %v1149
      %v1660 = vsel %vm1651, %v1627, %v1151
      %v1661 = vsel %vm1651, %v1628, %v1153
      %v1662 = vsel %vm1651, %v1629, %v1155
      %v1663 = vsel %vm1651, %v1630, %v1157
      %v1664 = vsel %vm1651, %v1631, %v1159
      %v1665 = vsel %vm1651, %v1632, %v1161
      %v1666 = vsel %vm1651, %v1633, %v1163
      %v1667 = vsel %vm1651, %v1634, %v1165
      %v1668 = vsel %vm1651, %v1635, %v1167
      %v1669 = vsel %vm1651, %v1636, %v1169
      %v1670 = vsel %vm1651, %v1637, %v1171
      %v1671 = vsel %vm1651, %v1638, %v1173
      %v1672 = vsel %vm1651, %v1639, %v1175
      %v1673 = vsel %vm1651, %v1640, %v1177
      %v1674 = vsel %vm1651, %v1641, %v1179
      %v1675 = vsel %vm1651, %v1642, %v1181
      %v1676 = vsel %vm1651, %v1643, %v1183
      %v1677 = vsel %vm1651, %v1644, %v1185
      %v1678 = vsel %vm1651, %v1645, %v1187
      %v1679 = vsel %vm1651, %v1646, %v1189
      %v1680 = vsel %vm1651, %v1647, %v1191
      %v1681 = vsel %vm1651, %v1648, %v1193
      %v1682 = vsel %vm1651, %v1649, %v1195
      %v1683 = vsel %vm1651, %v1650, %v1197
      %vm1684 = vcmask 228352
      %v1685 = vsel %vm1684, %v1652, %v1263
      %v1686 = vsel %vm1684, %v1653, %v1265
      %v1687 = vsel %vm1684, %v1654, %v1267
      %v1688 = vsel %vm1684, %v1655, %v1269
      %v1689 = vsel %vm1684, %v1656, %v1271
      %v1690 = vsel %vm1684, %v1657, %v1273
      %v1691 = vsel %vm1684, %v1658, %v1275
      %v1692 = vsel %vm1684, %v1659, %v1277
      %v1693 = vsel %vm1684, %v1660, %v1279
      %v1694 = vsel %vm1684, %v1661, %v1281
      %v1695 = vsel %vm1684, %v1662, %v1283
      %v1696 = vsel %vm1684, %v1663, %v1285
      %v1697 = vsel %vm1684, %v1664, %v1287
      %v1698 = vsel %vm1684, %v1665, %v1289
      %v1699 = vsel %vm1684, %v1666, %v1291
      %v1700 = vsel %vm1684, %v1667, %v1293
      %v1701 = vsel %vm1684, %v1668, %v1295
      %v1702 = vsel %vm1684, %v1669, %v1297
      %v1703 = vsel %vm1684, %v1670, %v1299
      %v1704 = vsel %vm1684, %v1671, %v1301
      %v1705 = vsel %vm1684, %v1672, %v1303
      %v1706 = vsel %vm1684, %v1673, %v1305
      %v1707 = vsel %vm1684, %v1674, %v1307
      %v1708 = vsel %vm1684, %v1675, %v1309
      %v1709 = vsel %vm1684, %v1676, %v1311
      %v1710 = vsel %vm1684, %v1677, %v1313
      %v1711 = vsel %vm1684, %v1678, %v1315
      %v1712 = vsel %vm1684, %v1679, %v1317
      %v1713 = vsel %vm1684, %v1680, %v1319
      %v1714 = vsel %vm1684, %v1681, %v1321
      %v1715 = vsel %vm1684, %v1682, %v1323
      %v1716 = vsel %vm1684, %v1683, %v1325
      %vm1717 = vcmask 261120
      %v1718 = vsel %vm1717, %v1685, %v1391
      %v1719 = vsel %vm1717, %v1686, %v1393
      %v1720 = vsel %vm1717, %v1687, %v1395
      %v1721 = vsel %vm1717, %v1688, %v1397
      %v1722 = vsel %vm1717, %v1689, %v1399
      %v1723 = vsel %vm1717, %v1690, %v1401
      %v1724 = vsel %vm1717, %v1691, %v1403
      %v1725 = vsel %vm1717, %v1692, %v1405
      %v1726 = vsel %vm1717, %v1693, %v1407
      %v1727 = vsel %vm1717, %v1694, %v1409
      %v1728 = vsel %vm1717, %v1695, %v1411
      %v1729 = vsel %vm1717, %v1696, %v1413
      %v1730 = vsel %vm1717, %v1697, %v1415
      %v1731 = vsel %vm1717, %v1698, %v1417
      %v1732 = vsel %vm1717, %v1699, %v1419
      %v1733 = vsel %vm1717, %v1700, %v1421
      %v1734 = vsel %vm1717, %v1701, %v1423
      %v1735 = vsel %vm1717, %v1702, %v1425
      %v1736 = vsel %vm1717, %v1703, %v1427
      %v1737 = vsel %vm1717, %v1704, %v1429
      %v1738 = vsel %vm1717, %v1705, %v1431
      %v1739 = vsel %vm1717, %v1706, %v1433
      %v1740 = vsel %vm1717, %v1707, %v1435
      %v1741 = vsel %vm1717, %v1708, %v1437
      %v1742 = vsel %vm1717, %v1709, %v1439
      %v1743 = vsel %vm1717, %v1710, %v1441
      %v1744 = vsel %vm1717, %v1711, %v1443
      %v1745 = vsel %vm1717, %v1712, %v1445
      %v1746 = vsel %vm1717, %v1713, %v1447
      %v1747 = vsel %vm1717, %v1714, %v1449
      %v1748 = vsel %vm1717, %v1715, %v1451
      %v1749 = vsel %vm1717, %v1716, %v1453
      %v1750 = vpack.c.bf16 %v1719, %v1718
      %v1751 = vpack.c.bf16 %v1721, %v1720
      %v1752 = vpack.c.bf16 %v1723, %v1722
      %v1753 = vpack.c.bf16 %v1725, %v1724
      %v1754 = vpack.c.bf16 %v1727, %v1726
      %v1755 = vpack.c.bf16 %v1729, %v1728
      %v1756 = vpack.c.bf16 %v1731, %v1730
      %v1757 = vpack.c.bf16 %v1733, %v1732
      %v1758 = vpack.c.bf16 %v1735, %v1734
      %v1759 = vpack.c.bf16 %v1737, %v1736
      %v1760 = vpack.c.bf16 %v1739, %v1738
      %v1761 = vpack.c.bf16 %v1741, %v1740
      %v1762 = vpack.c.bf16 %v1743, %v1742
      %v1763 = vpack.c.bf16 %v1745, %v1744
      %v1764 = vpack.c.bf16 %v1747, %v1746
      %v1765 = vpack.c.bf16 %v1749, %v1748
      %v1766 = vld [vmem:[%s1] sm:$0xf]
      %v1767 = vld [vmem:[%s1 + $0x4] sm:$0xf]
      %v1768 = vld [vmem:[%s1 + $0x8] sm:$0xf]
      %v1769 = vld [vmem:[%s1 + $0xc] sm:$0xf]
      %v1770 = vld [vmem:[%s1 + $0x10] sm:$0x3]
      %v1776 = vunpack.c.l.b16 %v1766
      %v1777 = vunpack.c.l.b16 %v1767
      %v1778 = vunpack.c.l.b16 %v1768
      %v1779 = vunpack.c.l.b16 %v1769
      %v1780 = vunpack.c.l.b16 %v1770
      %v1781 = vpack.c.b16 %v1777, %v1776
      %v1782 = vpack.c.b16 %v1779, %v1778
      %v1783 = vpack.c.b16 %v1780, %v1780
      %vm1786 = vcmask 293888
      %v1788 = vsel %vm1786, %v1750, 0
      %v1791 = vsel %vm1786, %v1751, 0
      %v1794 = vsel %vm1786, %v1752, 0
      %v1797 = vsel %vm1786, %v1753, 0
      %v1800 = vsel %vm1786, %v1754, 0
      %v1803 = vsel %vm1786, %v1755, 0
      %v1806 = vsel %vm1786, %v1756, 0
      %v1809 = vsel %vm1786, %v1757, 0
      %v1812 = vsel %vm1786, %v1758, 0
      %v1815 = vsel %vm1786, %v1759, 0
      %v1818 = vsel %vm1786, %v1760, 0
      %v1821 = vsel %vm1786, %v1761, 0
      %v1824 = vsel %vm1786, %v1762, 0
      %v1827 = vsel %vm1786, %v1763, 0
      %v1830 = vsel %vm1786, %v1764, 0
      %v1833 = vsel %vm1786, %v1765, 0
      %vm1835 = vcmask 1041408
      %v1837 = vsel %vm1835, %v1783, 0
      %1839 = vmatpush.bf16.msra.mxu0 0
      %1840 = vmatpush.bf16.msra.mxu0 0
      %1841 = vmatpush.bf16.msra.mxu0 0
      %1842 = vmatpush.bf16.msra.mxu0 0
      %1843 = vmatpush.bf16.msra.mxu0 0
      %1844 = vmatpush.bf16.msra.mxu0 %v1837
      %1845 = vmatpush.bf16.msra.mxu0 %v1782
      %1846 = vmatpush.bf16.msra.mxu0 %v1781
      %1847 = vmatmul.bf16.gmra.mxu0 %v1788
      %v1848 = vpop.f32.mrf.mxu0
      %v1849 = vadd.f32 0.0, %v1848
      %v1850 = vpop.f32.mrf.mxu0
      %v1851 = vadd.f32 0.0, %v1850
      %1852 = vmatmul.bf16.gmra.mxu0 %v1791
      %v1853 = vpop.f32.mrf.mxu0
      %v1854 = vadd.f32 0.0, %v1853
      %v1855 = vpop.f32.mrf.mxu0
      %v1856 = vadd.f32 0.0, %v1855
      %1857 = vmatmul.bf16.gmra.mxu0 %v1794
      %v1858 = vpop.f32.mrf.mxu0
      %v1859 = vadd.f32 0.0, %v1858
      %v1860 = vpop.f32.mrf.mxu0
      %v1861 = vadd.f32 0.0, %v1860
      %1862 = vmatmul.bf16.gmra.mxu0 %v1797
      %v1863 = vpop.f32.mrf.mxu0
      %v1864 = vadd.f32 0.0, %v1863
      %v1865 = vpop.f32.mrf.mxu0
      %v1866 = vadd.f32 0.0, %v1865
      %1867 = vmatmul.bf16.gmra.mxu0 %v1800
      %v1868 = vpop.f32.mrf.mxu0
      %v1869 = vadd.f32 0.0, %v1868
      %v1870 = vpop.f32.mrf.mxu0
      %v1871 = vadd.f32 0.0, %v1870
      %1872 = vmatmul.bf16.gmra.mxu0 %v1803
      %v1873 = vpop.f32.mrf.mxu0
      %v1874 = vadd.f32 0.0, %v1873
      %v1875 = vpop.f32.mrf.mxu0
      %v1876 = vadd.f32 0.0, %v1875
      %1877 = vmatmul.bf16.gmra.mxu0 %v1806
      %v1878 = vpop.f32.mrf.mxu0
      %v1879 = vadd.f32 0.0, %v1878
      %v1880 = vpop.f32.mrf.mxu0
      %v1881 = vadd.f32 0.0, %v1880
      %1882 = vmatmul.bf16.gmra.mxu0 %v1809
      %v1883 = vpop.f32.mrf.mxu0
      %v1884 = vadd.f32 0.0, %v1883
      %v1885 = vpop.f32.mrf.mxu0
      %v1886 = vadd.f32 0.0, %v1885
      %1887 = vmatmul.bf16.gmra.mxu0 %v1812
      %v1888 = vpop.f32.mrf.mxu0
      %v1889 = vadd.f32 0.0, %v1888
      %v1890 = vpop.f32.mrf.mxu0
      %v1891 = vadd.f32 0.0, %v1890
      %1892 = vmatmul.bf16.gmra.mxu0 %v1815
      %v1893 = vpop.f32.mrf.mxu0
      %v1894 = vadd.f32 0.0, %v1893
      %v1895 = vpop.f32.mrf.mxu0
      %v1896 = vadd.f32 0.0, %v1895
      %1897 = vmatmul.bf16.gmra.mxu0 %v1818
      %v1898 = vpop.f32.mrf.mxu0
      %v1899 = vadd.f32 0.0, %v1898
      %v1900 = vpop.f32.mrf.mxu0
      %v1901 = vadd.f32 0.0, %v1900
      %1902 = vmatmul.bf16.gmra.mxu0 %v1821
      %v1903 = vpop.f32.mrf.mxu0
      %v1904 = vadd.f32 0.0, %v1903
      %v1905 = vpop.f32.mrf.mxu0
      %v1906 = vadd.f32 0.0, %v1905
      %1907 = vmatmul.bf16.gmra.mxu0 %v1824
      %v1908 = vpop.f32.mrf.mxu0
      %v1909 = vadd.f32 0.0, %v1908
      %v1910 = vpop.f32.mrf.mxu0
      %v1911 = vadd.f32 0.0, %v1910
      %1912 = vmatmul.bf16.gmra.mxu0 %v1827
      %v1913 = vpop.f32.mrf.mxu0
      %v1914 = vadd.f32 0.0, %v1913
      %v1915 = vpop.f32.mrf.mxu0
      %v1916 = vadd.f32 0.0, %v1915
      %1917 = vmatmul.bf16.gmra.mxu0 %v1830
      %v1918 = vpop.f32.mrf.mxu0
      %v1919 = vadd.f32 0.0, %v1918
      %v1920 = vpop.f32.mrf.mxu0
      %v1921 = vadd.f32 0.0, %v1920
      %1922 = vmatmul.bf16.gmra.mxu0 %v1833
      %v1923 = vpop.f32.mrf.mxu0
      %v1924 = vadd.f32 0.0, %v1923
      %v1925 = vpop.f32.mrf.mxu0
      %v1926 = vadd.f32 0.0, %v1925
      %1927 = vdwg.mxu0
      %v1928 = vsel %vm1486, %v1849, 0.0
      %v1929 = vsel %vm1486, %v1851, 0.0
      %v1930 = vadd.f32 %v1928, %v1929
      %v1931 = vsel %vm1486, %v1854, 0.0
      %v1932 = vadd.f32 %v1930, %v1931
      %v1933 = vsel %vm1486, %v1856, 0.0
      %v1934 = vadd.f32 %v1932, %v1933
      %v1935 = vsel %vm1486, %v1859, 0.0
      %v1936 = vadd.f32 %v1934, %v1935
      %v1937 = vsel %vm1486, %v1861, 0.0
      %v1938 = vadd.f32 %v1936, %v1937
      %v1939 = vsel %vm1486, %v1864, 0.0
      %v1940 = vadd.f32 %v1938, %v1939
      %v1941 = vsel %vm1486, %v1866, 0.0
      %v1942 = vadd.f32 %v1940, %v1941
      %v1943 = vsel %vm1486, %v1869, 0.0
      %v1944 = vadd.f32 %v1942, %v1943
      %v1945 = vsel %vm1486, %v1871, 0.0
      %v1946 = vadd.f32 %v1944, %v1945
      %v1947 = vsel %vm1486, %v1874, 0.0
      %v1948 = vadd.f32 %v1946, %v1947
      %v1949 = vsel %vm1486, %v1876, 0.0
      %v1950 = vadd.f32 %v1948, %v1949
      %v1951 = vsel %vm1486, %v1879, 0.0
      %v1952 = vadd.f32 %v1950, %v1951
      %v1953 = vsel %vm1486, %v1881, 0.0
      %v1954 = vadd.f32 %v1952, %v1953
      %v1955 = vsel %vm1486, %v1884, 0.0
      %v1956 = vadd.f32 %v1954, %v1955
      %v1957 = vsel %vm1486, %v1886, 0.0
      %v1958 = vadd.f32 %v1956, %v1957
      %v1959 = vsel %vm1486, %v1889, 0.0
      %v1960 = vadd.f32 %v1958, %v1959
      %v1961 = vsel %vm1486, %v1891, 0.0
      %v1962 = vadd.f32 %v1960, %v1961
      %v1963 = vsel %vm1486, %v1894, 0.0
      %v1964 = vadd.f32 %v1962, %v1963
      %v1965 = vsel %vm1486, %v1896, 0.0
      %v1966 = vadd.f32 %v1964, %v1965
      %v1967 = vsel %vm1486, %v1899, 0.0
      %v1968 = vadd.f32 %v1966, %v1967
      %v1969 = vsel %vm1486, %v1901, 0.0
      %v1970 = vadd.f32 %v1968, %v1969
      %v1971 = vsel %vm1486, %v1904, 0.0
      %v1972 = vadd.f32 %v1970, %v1971
      %v1973 = vsel %vm1486, %v1906, 0.0
      %v1974 = vadd.f32 %v1972, %v1973
      %v1975 = vsel %vm1486, %v1909, 0.0
      %v1976 = vadd.f32 %v1974, %v1975
      %v1977 = vsel %vm1486, %v1911, 0.0
      %v1978 = vadd.f32 %v1976, %v1977
      %v1979 = vsel %vm1486, %v1914, 0.0
      %v1980 = vadd.f32 %v1978, %v1979
      %v1981 = vsel %vm1486, %v1916, 0.0
      %v1982 = vadd.f32 %v1980, %v1981
      %v1983 = vsel %vm1486, %v1919, 0.0
      %v1984 = vadd.f32 %v1982, %v1983
      %v1985 = vsel %vm1486, %v1921, 0.0
      %v1986 = vadd.f32 %v1984, %v1985
      %v1987 = vsel %vm1486, %v1924, 0.0
      %v1988 = vadd.f32 %v1986, %v1987
      %v1989 = vsel %vm1486, %v1926, 0.0
      %v1990 = vadd.f32 %v1988, %v1989
      %v1991 = vrot.slane %v1990, 4
      %v1992 = vadd.f32 %v1990, %v1991
      %v1993 = vrot.slane %v1992, 2
      %v1994 = vadd.f32 %v1992, %v1993
      %v1995 = vrot.slane %v1994, 1
      %v1996 = vadd.f32 %v1994, %v1995
      %v1997 = vrcp.pop 256.0
      %v1998 = vmul.f32 256.0, %v1997
      %v1999 = vsub.f32 1.0, %v1998
      %v2000 = vmul.f32 %v1997, %v1999
      %v2001 = vadd.f32 %v1997, %v2000
      %vm2002 = vweird.f32 %v1997
      %v2003 = vsel %vm2002, %v1997, %v2001
      %v2004 = vmul.f32 %v1996, %v2003
      %v2005 = vsub.f32 %v1849, %v2004
      %v2006 = vsub.f32 %v1851, %v2004
      %v2007 = vsub.f32 %v1854, %v2004
      %v2008 = vsub.f32 %v1856, %v2004
      %v2009 = vsub.f32 %v1859, %v2004
      %v2010 = vsub.f32 %v1861, %v2004
      %v2011 = vsub.f32 %v1864, %v2004
      %v2012 = vsub.f32 %v1866, %v2004
      %v2013 = vsub.f32 %v1869, %v2004
      %v2014 = vsub.f32 %v1871, %v2004
      %v2015 = vsub.f32 %v1874, %v2004
      %v2016 = vsub.f32 %v1876, %v2004
      %v2017 = vsub.f32 %v1879, %v2004
      %v2018 = vsub.f32 %v1881, %v2004
      %v2019 = vsub.f32 %v1884, %v2004
      %v2020 = vsub.f32 %v1886, %v2004
      %v2021 = vsub.f32 %v1889, %v2004
      %v2022 = vsub.f32 %v1891, %v2004
      %v2023 = vsub.f32 %v1894, %v2004
      %v2024 = vsub.f32 %v1896, %v2004
      %v2025 = vsub.f32 %v1899, %v2004
      %v2026 = vsub.f32 %v1901, %v2004
      %v2027 = vsub.f32 %v1904, %v2004
      %v2028 = vsub.f32 %v1906, %v2004
      %v2029 = vsub.f32 %v1909, %v2004
      %v2030 = vsub.f32 %v1911, %v2004
      %v2031 = vsub.f32 %v1914, %v2004
      %v2032 = vsub.f32 %v1916, %v2004
      %v2033 = vsub.f32 %v1919, %v2004
      %v2034 = vsub.f32 %v1921, %v2004
      %v2035 = vsub.f32 %v1924, %v2004
      %v2036 = vsub.f32 %v1926, %v2004
      %v2037 = vmul.f32 %v2005, %v2005
      %v2038 = vmul.f32 %v2006, %v2006
      %v2039 = vmul.f32 %v2007, %v2007
      %v2040 = vmul.f32 %v2008, %v2008
      %v2041 = vmul.f32 %v2009, %v2009
      %v2042 = vmul.f32 %v2010, %v2010
      %v2043 = vmul.f32 %v2011, %v2011
      %v2044 = vmul.f32 %v2012, %v2012
      %v2045 = vmul.f32 %v2013, %v2013
      %v2046 = vmul.f32 %v2014, %v2014
      %v2047 = vmul.f32 %v2015, %v2015
      %v2048 = vmul.f32 %v2016, %v2016
      %v2049 = vmul.f32 %v2017, %v2017
      %v2050 = vmul.f32 %v2018, %v2018
      %v2051 = vmul.f32 %v2019, %v2019
      %v2052 = vmul.f32 %v2020, %v2020
      %v2053 = vmul.f32 %v2021, %v2021
      %v2054 = vmul.f32 %v2022, %v2022
      %v2055 = vmul.f32 %v2023, %v2023
      %v2056 = vmul.f32 %v2024, %v2024
      %v2057 = vmul.f32 %v2025, %v2025
      %v2058 = vmul.f32 %v2026, %v2026
      %v2059 = vmul.f32 %v2027, %v2027
      %v2060 = vmul.f32 %v2028, %v2028
      %v2061 = vmul.f32 %v2029, %v2029
      %v2062 = vmul.f32 %v2030, %v2030
      %v2063 = vmul.f32 %v2031, %v2031
      %v2064 = vmul.f32 %v2032, %v2032
      %v2065 = vmul.f32 %v2033, %v2033
      %v2066 = vmul.f32 %v2034, %v2034
      %v2067 = vmul.f32 %v2035, %v2035
      %v2068 = vmul.f32 %v2036, %v2036
      %v2069 = vsel %vm1486, %v2037, 0.0
      %v2070 = vsel %vm1486, %v2038, 0.0
      %v2071 = vadd.f32 %v2069, %v2070
      %v2072 = vsel %vm1486, %v2039, 0.0
      %v2073 = vadd.f32 %v2071, %v2072
      %v2074 = vsel %vm1486, %v2040, 0.0
      %v2075 = vadd.f32 %v2073, %v2074
      %v2076 = vsel %vm1486, %v2041, 0.0
      %v2077 = vadd.f32 %v2075, %v2076
      %v2078 = vsel %vm1486, %v2042, 0.0
      %v2079 = vadd.f32 %v2077, %v2078
      %v2080 = vsel %vm1486, %v2043, 0.0
      %v2081 = vadd.f32 %v2079, %v2080
      %v2082 = vsel %vm1486, %v2044, 0.0
      %v2083 = vadd.f32 %v2081, %v2082
      %v2084 = vsel %vm1486, %v2045, 0.0
      %v2085 = vadd.f32 %v2083, %v2084
      %v2086 = vsel %vm1486, %v2046, 0.0
      %v2087 = vadd.f32 %v2085, %v2086
      %v2088 = vsel %vm1486, %v2047, 0.0
      %v2089 = vadd.f32 %v2087, %v2088
      %v2090 = vsel %vm1486, %v2048, 0.0
      %v2091 = vadd.f32 %v2089, %v2090
      %v2092 = vsel %vm1486, %v2049, 0.0
      %v2093 = vadd.f32 %v2091, %v2092
      %v2094 = vsel %vm1486, %v2050, 0.0
      %v2095 = vadd.f32 %v2093, %v2094
      %v2096 = vsel %vm1486, %v2051, 0.0
      %v2097 = vadd.f32 %v2095, %v2096
      %v2098 = vsel %vm1486, %v2052, 0.0
      %v2099 = vadd.f32 %v2097, %v2098
      %v2100 = vsel %vm1486, %v2053, 0.0
      %v2101 = vadd.f32 %v2099, %v2100
      %v2102 = vsel %vm1486, %v2054, 0.0
      %v2103 = vadd.f32 %v2101, %v2102
      %v2104 = vsel %vm1486, %v2055, 0.0
      %v2105 = vadd.f32 %v2103, %v2104
      %v2106 = vsel %vm1486, %v2056, 0.0
      %v2107 = vadd.f32 %v2105, %v2106
      %v2108 = vsel %vm1486, %v2057, 0.0
      %v2109 = vadd.f32 %v2107, %v2108
      %v2110 = vsel %vm1486, %v2058, 0.0
      %v2111 = vadd.f32 %v2109, %v2110
      %v2112 = vsel %vm1486, %v2059, 0.0
      %v2113 = vadd.f32 %v2111, %v2112
      %v2114 = vsel %vm1486, %v2060, 0.0
      %v2115 = vadd.f32 %v2113, %v2114
      %v2116 = vsel %vm1486, %v2061, 0.0
      %v2117 = vadd.f32 %v2115, %v2116
      %v2118 = vsel %vm1486, %v2062, 0.0
      %v2119 = vadd.f32 %v2117, %v2118
      %v2120 = vsel %vm1486, %v2063, 0.0
      %v2121 = vadd.f32 %v2119, %v2120
      %v2122 = vsel %vm1486, %v2064, 0.0
      %v2123 = vadd.f32 %v2121, %v2122
      %v2124 = vsel %vm1486, %v2065, 0.0
      %v2125 = vadd.f32 %v2123, %v2124
      %v2126 = vsel %vm1486, %v2066, 0.0
      %v2127 = vadd.f32 %v2125, %v2126
      %v2128 = vsel %vm1486, %v2067, 0.0
      %v2129 = vadd.f32 %v2127, %v2128
      %v2130 = vsel %vm1486, %v2068, 0.0
      %v2131 = vadd.f32 %v2129, %v2130
      %v2132 = vrot.slane %v2131, 4
      %v2133 = vadd.f32 %v2131, %v2132
      %v2134 = vrot.slane %v2133, 2
      %v2135 = vadd.f32 %v2133, %v2134
      %v2136 = vrot.slane %v2135, 1
      %v2137 = vadd.f32 %v2135, %v2136
      %v2138 = vmul.f32 %v2137, %v2003
      %v2139 = vadd.f32 %v2138, 1e-05
      %v2140 = vrsqrt.pop %v2139
      %v2141 = vmul.f32 %v2140, %v2139
      %v2142 = vmul.f32 %v2141, %v2140
      %v2143 = vmul.f32 0.5, %v2142
      %v2144 = vsub.f32 1.5, %v2143
      %v2145 = vmul.f32 %v2140, %v2144
      %vm2146 = vweird.f32 %v2139
      %vm2147 = vweird.f32 %v2140
      %vm2148 = vmor %vm2146, %vm2147
      %v2149 = vsel %vm2148, %v2140, %v2145
      %v2150 = vmul.f32 %v2005, %v2149
      %v2151 = vmul.f32 %v2006, %v2149
      %v2152 = vmul.f32 %v2007, %v2149
      %v2153 = vmul.f32 %v2008, %v2149
      %v2154 = vmul.f32 %v2009, %v2149
      %v2155 = vmul.f32 %v2010, %v2149
      %v2156 = vmul.f32 %v2011, %v2149
      %v2157 = vmul.f32 %v2012, %v2149
      %v2158 = vmul.f32 %v2013, %v2149
      %v2159 = vmul.f32 %v2014, %v2149
      %v2160 = vmul.f32 %v2015, %v2149
      %v2161 = vmul.f32 %v2016, %v2149
      %v2162 = vmul.f32 %v2017, %v2149
      %v2163 = vmul.f32 %v2018, %v2149
      %v2164 = vmul.f32 %v2019, %v2149
      %v2165 = vmul.f32 %v2020, %v2149
      %v2166 = vmul.f32 %v2021, %v2149
      %v2167 = vmul.f32 %v2022, %v2149
      %v2168 = vmul.f32 %v2023, %v2149
      %v2169 = vmul.f32 %v2024, %v2149
      %v2170 = vmul.f32 %v2025, %v2149
      %v2171 = vmul.f32 %v2026, %v2149
      %v2172 = vmul.f32 %v2027, %v2149
      %v2173 = vmul.f32 %v2028, %v2149
      %v2174 = vmul.f32 %v2029, %v2149
      %v2175 = vmul.f32 %v2030, %v2149
      %v2176 = vmul.f32 %v2031, %v2149
      %v2177 = vmul.f32 %v2032, %v2149
      %v2178 = vmul.f32 %v2033, %v2149
      %v2179 = vmul.f32 %v2034, %v2149
      %v2180 = vmul.f32 %v2035, %v2149
      %v2181 = vmul.f32 %v2036, %v2149
      %v2182 = vmax.f32 %v2150, 0.0
      %v2183 = vmax.f32 %v2151, 0.0
      %v2184 = vmax.f32 %v2152, 0.0
      %v2185 = vmax.f32 %v2153, 0.0
      %v2186 = vmax.f32 %v2154, 0.0
      %v2187 = vmax.f32 %v2155, 0.0
      %v2188 = vmax.f32 %v2156, 0.0
      %v2189 = vmax.f32 %v2157, 0.0
      %v2190 = vmax.f32 %v2158, 0.0
      %v2191 = vmax.f32 %v2159, 0.0
      %v2192 = vmax.f32 %v2160, 0.0
      %v2193 = vmax.f32 %v2161, 0.0
      %v2194 = vmax.f32 %v2162, 0.0
      %v2195 = vmax.f32 %v2163, 0.0
      %v2196 = vmax.f32 %v2164, 0.0
      %v2197 = vmax.f32 %v2165, 0.0
      %v2198 = vmax.f32 %v2166, 0.0
      %v2199 = vmax.f32 %v2167, 0.0
      %v2200 = vmax.f32 %v2168, 0.0
      %v2201 = vmax.f32 %v2169, 0.0
      %v2202 = vmax.f32 %v2170, 0.0
      %v2203 = vmax.f32 %v2171, 0.0
      %v2204 = vmax.f32 %v2172, 0.0
      %v2205 = vmax.f32 %v2173, 0.0
      %v2206 = vmax.f32 %v2174, 0.0
      %v2207 = vmax.f32 %v2175, 0.0
      %v2208 = vmax.f32 %v2176, 0.0
      %v2209 = vmax.f32 %v2177, 0.0
      %v2210 = vmax.f32 %v2178, 0.0
      %v2211 = vmax.f32 %v2179, 0.0
      %v2212 = vmax.f32 %v2180, 0.0
      %v2213 = vmax.f32 %v2181, 0.0
      %s2214 = scalar_lea.vmem [#allocation2], 24
      %2215 = vst.msk [vmem:[%s2214 + $0x1] sm:$0xff] %vm1486, %v2182
      %2216 = vst.msk [vmem:[%s2214 + $0x9] sm:$0xff] %vm1486, %v2183
      %2217 = vst.msk [vmem:[%s2214 + $0x19] sm:$0xff] %vm1486, %v2184
      %2218 = vst.msk [vmem:[%s2214 + $0x21] sm:$0xff] %vm1486, %v2185
      %2219 = vst.msk [vmem:[%s2214 + $0x31] sm:$0xff] %vm1486, %v2186
      %2220 = vst.msk [vmem:[%s2214 + $0x39] sm:$0xff] %vm1486, %v2187
      %2221 = vst.msk [vmem:[%s2214 + $0x49] sm:$0xff] %vm1486, %v2188
      %2222 = vst.msk [vmem:[%s2214 + $0x51] sm:$0xff] %vm1486, %v2189
      %2223 = vst.msk [vmem:[%s2214 + $0x61] sm:$0xff] %vm1486, %v2190
      %2224 = vst.msk [vmem:[%s2214 + $0x69] sm:$0xff] %vm1486, %v2191
      %2225 = vst.msk [vmem:[%s2214 + $0x79] sm:$0xff] %vm1486, %v2192
      %2226 = vst.msk [vmem:[%s2214 + $0x81] sm:$0xff] %vm1486, %v2193
      %2227 = vst.msk [vmem:[%s2214 + $0x91] sm:$0xff] %vm1486, %v2194
      %2228 = vst.msk [vmem:[%s2214 + $0x99] sm:$0xff] %vm1486, %v2195
      %2229 = vst.msk [vmem:[%s2214 + $0xa9] sm:$0xff] %vm1486, %v2196
      %2230 = vst.msk [vmem:[%s2214 + $0xb1] sm:$0xff] %vm1486, %v2197
      %2231 = vst.msk [vmem:[%s2214 + $0xc1] sm:$0xff] %vm1486, %v2198
      %2232 = vst.msk [vmem:[%s2214 + $0xc9] sm:$0xff] %vm1486, %v2199
      %2233 = vst.msk [vmem:[%s2214 + $0xd9] sm:$0xff] %vm1486, %v2200
      %2234 = vst.msk [vmem:[%s2214 + $0xe1] sm:$0xff] %vm1486, %v2201
      %2235 = vst.msk [vmem:[%s2214 + $0xf1] sm:$0xff] %vm1486, %v2202
      %2236 = vst.msk [vmem:[%s2214 + $0xf9] sm:$0xff] %vm1486, %v2203
      %2237 = vst.msk [vmem:[%s2214 + $0x109] sm:$0xff] %vm1486, %v2204
      %2238 = vst.msk [vmem:[%s2214 + $0x111] sm:$0xff] %vm1486, %v2205
      %2239 = vst.msk [vmem:[%s2214 + $0x121] sm:$0xff] %vm1486, %v2206
      %2240 = vst.msk [vmem:[%s2214 + $0x129] sm:$0xff] %vm1486, %v2207
      %2241 = vst.msk [vmem:[%s2214 + $0x139] sm:$0xff] %vm1486, %v2208
      %2242 = vst.msk [vmem:[%s2214 + $0x141] sm:$0xff] %vm1486, %v2209
      %2243 = vst.msk [vmem:[%s2214 + $0x151] sm:$0xff] %vm1486, %v2210
      %2244 = vst.msk [vmem:[%s2214 + $0x159] sm:$0xff] %vm1486, %v2211
      %2245 = vst.msk [vmem:[%s2214 + $0x169] sm:$0xff] %vm1486, %v2212
      %2246 = vst.msk [vmem:[%s2214 + $0x171] sm:$0xff] %vm1486, %v2213
      %2247 = vst.msk [vmem:[#allocation2 + $0x1] sm:$0xff] %vm1486, %v2184
      %2248 = vst.msk [vmem:[#allocation2 + $0x9] sm:$0xff] %vm1486, %v2185
      %s2249 = scalar_lea.vmem [#allocation2], 408
      %2250 = vst.msk [vmem:[%s2249 + $0x1] sm:$0xff] %vm1486, %v2210
      %2251 = vst.msk [vmem:[%s2249 + $0x9] sm:$0xff] %vm1486, %v2211
      %v2252 = vld [vmem:[#allocation2 + $0x2] sm:$0x1]
      %v2253 = vld [vmem:[#allocation2 + $0x1a] sm:$0x1]
      %v2254 = vld [vmem:[#allocation2 + $0x32] sm:$0x1]
      %v2255 = vld [vmem:[#allocation2 + $0x4a] sm:$0x1]
      %v2256 = vld [vmem:[#allocation2 + $0x62] sm:$0x1]
      %v2257 = vld [vmem:[#allocation2 + $0x7a] sm:$0x1]
      %v2258 = vld [vmem:[#allocation2 + $0x92] sm:$0x1]
      %v2259 = vld [vmem:[#allocation2 + $0xaa] sm:$0x1]
      %v2260 = vld [vmem:[#allocation2 + $0xc2] sm:$0x1]
      %v2261 = vld [vmem:[#allocation2 + $0xda] sm:$0x1]
      %v2262 = vld [vmem:[#allocation2 + $0xf2] sm:$0x1]
      %v2263 = vld [vmem:[#allocation2 + $0x10a] sm:$0x1]
      %v2264 = vld [vmem:[#allocation2 + $0x122] sm:$0x1]
      %v2265 = vld [vmem:[#allocation2 + $0x13a] sm:$0x1]
      %v2266 = vld [vmem:[#allocation2 + $0x152] sm:$0x1]
      %v2267 = vld [vmem:[#allocation2 + $0x16a] sm:$0x1]
      %v2268 = vld [vmem:[#allocation2 + $0x182] sm:$0x1]
      %v2269 = vld [vmem:[#allocation2 + $0x19a] sm:$0x1]
      %vm2270 = vcmask 24576
      %2271 = vst.msk [vmem:[#allocation2] sm:$0x1] %vm2270, %v2252
      %2272 = vst.msk [vmem:[#allocation2 + $0x18] sm:$0x1] %vm2270, %v2253
      %2273 = vst.msk [vmem:[#allocation2 + $0x30] sm:$0x1] %vm2270, %v2254
      %2274 = vst.msk [vmem:[#allocation2 + $0x48] sm:$0x1] %vm2270, %v2255
      %2275 = vst.msk [vmem:[#allocation2 + $0x60] sm:$0x1] %vm2270, %v2256
      %2276 = vst.msk [vmem:[#allocation2 + $0x78] sm:$0x1] %vm2270, %v2257
      %2277 = vst.msk [vmem:[#allocation2 + $0x90] sm:$0x1] %vm2270, %v2258
      %2278 = vst.msk [vmem:[#allocation2 + $0xa8] sm:$0x1] %vm2270, %v2259
      %2279 = vst.msk [vmem:[#allocation2 + $0xc0] sm:$0x1] %vm2270, %v2260
      %2280 = vst.msk [vmem:[#allocation2 + $0xd8] sm:$0x1] %vm2270, %v2261
      %2281 = vst.msk [vmem:[#allocation2 + $0xf0] sm:$0x1] %vm2270, %v2262
      %2282 = vst.msk [vmem:[#allocation2 + $0x108] sm:$0x1] %vm2270, %v2263
      %2283 = vst.msk [vmem:[#allocation2 + $0x120] sm:$0x1] %vm2270, %v2264
      %2284 = vst.msk [vmem:[#allocation2 + $0x138] sm:$0x1] %vm2270, %v2265
      %2285 = vst.msk [vmem:[#allocation2 + $0x150] sm:$0x1] %vm2270, %v2266
      %2286 = vst.msk [vmem:[#allocation2 + $0x168] sm:$0x1] %vm2270, %v2267
      %2287 = vst.msk [vmem:[#allocation2 + $0x180] sm:$0x1] %vm2270, %v2268
      %2288 = vst.msk [vmem:[#allocation2 + $0x198] sm:$0x1] %vm2270, %v2269
      %v2289 = vld [vmem:[#allocation2 + $0xf] sm:$0x1]
      %v2290 = vld [vmem:[#allocation2 + $0x27] sm:$0x1]
      %v2291 = vld [vmem:[#allocation2 + $0x3f] sm:$0x1]
      %v2292 = vld [vmem:[#allocation2 + $0x57] sm:$0x1]
      %v2293 = vld [vmem:[#allocation2 + $0x6f] sm:$0x1]
      %v2294 = vld [vmem:[#allocation2 + $0x87] sm:$0x1]
      %v2295 = vld [vmem:[#allocation2 + $0x9f] sm:$0x1]
      %v2296 = vld [vmem:[#allocation2 + $0xb7] sm:$0x1]
      %v2297 = vld [vmem:[#allocation2 + $0xcf] sm:$0x1]
      %v2298 = vld [vmem:[#allocation2 + $0xe7] sm:$0x1]
      %v2299 = vld [vmem:[#allocation2 + $0xff] sm:$0x1]
      %v2300 = vld [vmem:[#allocation2 + $0x117] sm:$0x1]
      %v2301 = vld [vmem:[#allocation2 + $0x12f] sm:$0x1]
      %v2302 = vld [vmem:[#allocation2 + $0x147] sm:$0x1]
      %v2303 = vld [vmem:[#allocation2 + $0x15f] sm:$0x1]
      %v2304 = vld [vmem:[#allocation2 + $0x177] sm:$0x1]
      %v2305 = vld [vmem:[#allocation2 + $0x18f] sm:$0x1]
      %v2306 = vld [vmem:[#allocation2 + $0x1a7] sm:$0x1]
      %2307 = vst.msk [vmem:[#allocation2 + $0x11] sm:$0x1] %vm2270, %v2289
      %2308 = vst.msk [vmem:[#allocation2 + $0x29] sm:$0x1] %vm2270, %v2290
      %2309 = vst.msk [vmem:[#allocation2 + $0x41] sm:$0x1] %vm2270, %v2291
      %2310 = vst.msk [vmem:[#allocation2 + $0x59] sm:$0x1] %vm2270, %v2292
      %2311 = vst.msk [vmem:[#allocation2 + $0x71] sm:$0x1] %vm2270, %v2293
      %2312 = vst.msk [vmem:[#allocation2 + $0x89] sm:$0x1] %vm2270, %v2294
      %2313 = vst.msk [vmem:[#allocation2 + $0xa1] sm:$0x1] %vm2270, %v2295
      %2314 = vst.msk [vmem:[#allocation2 + $0xb9] sm:$0x1] %vm2270, %v2296
      %2315 = vst.msk [vmem:[#allocation2 + $0xd1] sm:$0x1] %vm2270, %v2297
      %2316 = vst.msk [vmem:[#allocation2 + $0xe9] sm:$0x1] %vm2270, %v2298
      %2317 = vst.msk [vmem:[#allocation2 + $0x101] sm:$0x1] %vm2270, %v2299
      %2318 = vst.msk [vmem:[#allocation2 + $0x119] sm:$0x1] %vm2270, %v2300
      %2319 = vst.msk [vmem:[#allocation2 + $0x131] sm:$0x1] %vm2270, %v2301
      %2320 = vst.msk [vmem:[#allocation2 + $0x149] sm:$0x1] %vm2270, %v2302
      %2321 = vst.msk [vmem:[#allocation2 + $0x161] sm:$0x1] %vm2270, %v2303
      %2322 = vst.msk [vmem:[#allocation2 + $0x179] sm:$0x1] %vm2270, %v2304
      %2323 = vst.msk [vmem:[#allocation2 + $0x191] sm:$0x1] %vm2270, %v2305
      %2324 = vst.msk [vmem:[#allocation2 + $0x1a9] sm:$0x1] %vm2270, %v2306
      %v2325 = vld [vmem:[#allocation2] sm:$0xff]
      %v2326 = vld [vmem:[#allocation2 + $0x8] sm:$0xff]
      %v2327 = vld [vmem:[#allocation2 + $0x18] sm:$0xff]
      %v2328 = vld [vmem:[#allocation2 + $0x20] sm:$0xff]
      %v2329 = vld [vmem:[#allocation2 + $0x30] sm:$0xff]
      %v2330 = vld [vmem:[#allocation2 + $0x38] sm:$0xff]
      %v2331 = vld [vmem:[#allocation2 + $0x48] sm:$0xff]
      %v2332 = vld [vmem:[#allocation2 + $0x50] sm:$0xff]
      %v2333 = vld [vmem:[#allocation2 + $0x60] sm:$0xff]
      %v2334 = vld [vmem:[#allocation2 + $0x68] sm:$0xff]
      %v2335 = vld [vmem:[#allocation2 + $0x78] sm:$0xff]
      %v2336 = vld [vmem:[#allocation2 + $0x80] sm:$0xff]
      %v2337 = vld [vmem:[#allocation2 + $0x90] sm:$0xff]
      %v2338 = vld [vmem:[#allocation2 + $0x98] sm:$0xff]
      %v2339 = vld [vmem:[#allocation2 + $0xa8] sm:$0xff]
      %v2340 = vld [vmem:[#allocation2 + $0xb0] sm:$0xff]
      %v2341 = vld [vmem:[#allocation2 + $0xc0] sm:$0xff]
      %v2342 = vld [vmem:[#allocation2 + $0xc8] sm:$0xff]
      %v2343 = vld [vmem:[#allocation2 + $0xd8] sm:$0xff]
      %v2344 = vld [vmem:[#allocation2 + $0xe0] sm:$0xff]
      %v2345 = vld [vmem:[#allocation2 + $0xf0] sm:$0xff]
      %v2346 = vld [vmem:[#allocation2 + $0xf8] sm:$0xff]
      %v2347 = vld [vmem:[#allocation2 + $0x108] sm:$0xff]
      %v2348 = vld [vmem:[#allocation2 + $0x110] sm:$0xff]
      %v2349 = vld [vmem:[#allocation2 + $0x120] sm:$0xff]
      %v2350 = vld [vmem:[#allocation2 + $0x128] sm:$0xff]
      %v2351 = vld [vmem:[#allocation2 + $0x138] sm:$0xff]
      %v2352 = vld [vmem:[#allocation2 + $0x140] sm:$0xff]
      %v2353 = vld [vmem:[#allocation2 + $0x150] sm:$0xff]
      %v2354 = vld [vmem:[#allocation2 + $0x158] sm:$0xff]
      %v2355 = vld [vmem:[#allocation2 + $0x168] sm:$0xff]
      %v2356 = vld [vmem:[#allocation2 + $0x170] sm:$0xff]
      %v2357 = vld [vmem:[#allocation2 + $0x1] sm:$0xff]
      %v2358 = vld [vmem:[#allocation2 + $0x9] sm:$0xff]
      %v2359 = vld [vmem:[#allocation2 + $0x19] sm:$0xff]
      %v2360 = vld [vmem:[#allocation2 + $0x21] sm:$0xff]
      %v2361 = vld [vmem:[#allocation2 + $0x31] sm:$0xff]
      %v2362 = vld [vmem:[#allocation2 + $0x39] sm:$0xff]
      %v2363 = vld [vmem:[#allocation2 + $0x49] sm:$0xff]
      %v2364 = vld [vmem:[#allocation2 + $0x51] sm:$0xff]
      %v2365 = vld [vmem:[#allocation2 + $0x61] sm:$0xff]
      %v2366 = vld [vmem:[#allocation2 + $0x69] sm:$0xff]
      %v2367 = vld [vmem:[#allocation2 + $0x79] sm:$0xff]
      %v2368 = vld [vmem:[#allocation2 + $0x81] sm:$0xff]
      %v2369 = vld [vmem:[#allocation2 + $0x91] sm:$0xff]
      %v2370 = vld [vmem:[#allocation2 + $0x99] sm:$0xff]
      %v2371 = vld [vmem:[#allocation2 + $0xa9] sm:$0xff]
      %v2372 = vld [vmem:[#allocation2 + $0xb1] sm:$0xff]
      %v2373 = vld [vmem:[#allocation2 + $0xc1] sm:$0xff]
      %v2374 = vld [vmem:[#allocation2 + $0xc9] sm:$0xff]
      %v2375 = vld [vmem:[#allocation2 + $0xd9] sm:$0xff]
      %v2376 = vld [vmem:[#allocation2 + $0xe1] sm:$0xff]
      %v2377 = vld [vmem:[#allocation2 + $0xf1] sm:$0xff]
      %v2378 = vld [vmem:[#allocation2 + $0xf9] sm:$0xff]
      %v2379 = vld [vmem:[#allocation2 + $0x109] sm:$0xff]
      %v2380 = vld [vmem:[#allocation2 + $0x111] sm:$0xff]
      %v2381 = vld [vmem:[#allocation2 + $0x121] sm:$0xff]
      %v2382 = vld [vmem:[#allocation2 + $0x129] sm:$0xff]
      %v2383 = vld [vmem:[#allocation2 + $0x139] sm:$0xff]
      %v2384 = vld [vmem:[#allocation2 + $0x141] sm:$0xff]
      %v2385 = vld [vmem:[#allocation2 + $0x151] sm:$0xff]
      %v2386 = vld [vmem:[#allocation2 + $0x159] sm:$0xff]
      %v2387 = vld [vmem:[#allocation2 + $0x169] sm:$0xff]
      %v2388 = vld [vmem:[#allocation2 + $0x171] sm:$0xff]
      %v2389 = vld [vmem:[#allocation2 + $0x2] sm:$0xff]
      %v2390 = vld [vmem:[#allocation2 + $0xa] sm:$0xff]
      %v2391 = vld [vmem:[#allocation2 + $0x1a] sm:$0xff]
      %v2392 = vld [vmem:[#allocation2 + $0x22] sm:$0xff]
      %v2393 = vld [vmem:[#allocation2 + $0x32] sm:$0xff]
      %v2394 = vld [vmem:[#allocation2 + $0x3a] sm:$0xff]
      %v2395 = vld [vmem:[#allocation2 + $0x4a] sm:$0xff]
      %v2396 = vld [vmem:[#allocation2 + $0x52] sm:$0xff]
      %v2397 = vld [vmem:[#allocation2 + $0x62] sm:$0xff]
      %v2398 = vld [vmem:[#allocation2 + $0x6a] sm:$0xff]
      %v2399 = vld [vmem:[#allocation2 + $0x7a] sm:$0xff]
      %v2400 = vld [vmem:[#allocation2 + $0x82] sm:$0xff]
      %v2401 = vld [vmem:[#allocation2 + $0x92] sm:$0xff]
      %v2402 = vld [vmem:[#allocation2 + $0x9a] sm:$0xff]
      %v2403 = vld [vmem:[#allocation2 + $0xaa] sm:$0xff]
      %v2404 = vld [vmem:[#allocation2 + $0xb2] sm:$0xff]
      %v2405 = vld [vmem:[#allocation2 + $0xc2] sm:$0xff]
      %v2406 = vld [vmem:[#allocation2 + $0xca] sm:$0xff]
      %v2407 = vld [vmem:[#allocation2 + $0xda] sm:$0xff]
      %v2408 = vld [vmem:[#allocation2 + $0xe2] sm:$0xff]
      %v2409 = vld [vmem:[#allocation2 + $0xf2] sm:$0xff]
      %v2410 = vld [vmem:[#allocation2 + $0xfa] sm:$0xff]
      %v2411 = vld [vmem:[#allocation2 + $0x10a] sm:$0xff]
      %v2412 = vld [vmem:[#allocation2 + $0x112] sm:$0xff]
      %v2413 = vld [vmem:[#allocation2 + $0x122] sm:$0xff]
      %v2414 = vld [vmem:[#allocation2 + $0x12a] sm:$0xff]
      %v2415 = vld [vmem:[#allocation2 + $0x13a] sm:$0xff]
      %v2416 = vld [vmem:[#allocation2 + $0x142] sm:$0xff]
      %v2417 = vld [vmem:[#allocation2 + $0x152] sm:$0xff]
      %v2418 = vld [vmem:[#allocation2 + $0x15a] sm:$0xff]
      %v2419 = vld [vmem:[#allocation2 + $0x16a] sm:$0xff]
      %v2420 = vld [vmem:[#allocation2 + $0x172] sm:$0xff]
      %v2421 = vld [vmem:[%s2214] sm:$0xff]
      %v2422 = vld [vmem:[%s2214 + $0x8] sm:$0xff]
      %v2423 = vld [vmem:[%s2214 + $0x18] sm:$0xff]
      %v2424 = vld [vmem:[%s2214 + $0x20] sm:$0xff]
      %v2425 = vld [vmem:[%s2214 + $0x30] sm:$0xff]
      %v2426 = vld [vmem:[%s2214 + $0x38] sm:$0xff]
      %v2427 = vld [vmem:[%s2214 + $0x48] sm:$0xff]
      %v2428 = vld [vmem:[%s2214 + $0x50] sm:$0xff]
      %v2429 = vld [vmem:[%s2214 + $0x60] sm:$0xff]
      %v2430 = vld [vmem:[%s2214 + $0x68] sm:$0xff]
      %v2431 = vld [vmem:[%s2214 + $0x78] sm:$0xff]
      %v2432 = vld [vmem:[%s2214 + $0x80] sm:$0xff]
      %v2433 = vld [vmem:[%s2214 + $0x90] sm:$0xff]
      %v2434 = vld [vmem:[%s2214 + $0x98] sm:$0xff]
      %v2435 = vld [vmem:[%s2214 + $0xa8] sm:$0xff]
      %v2436 = vld [vmem:[%s2214 + $0xb0] sm:$0xff]
      %v2437 = vld [vmem:[%s2214 + $0xc0] sm:$0xff]
      %v2438 = vld [vmem:[%s2214 + $0xc8] sm:$0xff]
      %v2439 = vld [vmem:[%s2214 + $0xd8] sm:$0xff]
      %v2440 = vld [vmem:[%s2214 + $0xe0] sm:$0xff]
      %v2441 = vld [vmem:[%s2214 + $0xf0] sm:$0xff]
      %v2442 = vld [vmem:[%s2214 + $0xf8] sm:$0xff]
      %v2443 = vld [vmem:[%s2214 + $0x108] sm:$0xff]
      %v2444 = vld [vmem:[%s2214 + $0x110] sm:$0xff]
      %v2445 = vld [vmem:[%s2214 + $0x120] sm:$0xff]
      %v2446 = vld [vmem:[%s2214 + $0x128] sm:$0xff]
      %v2447 = vld [vmem:[%s2214 + $0x138] sm:$0xff]
      %v2448 = vld [vmem:[%s2214 + $0x140] sm:$0xff]
      %v2449 = vld [vmem:[%s2214 + $0x150] sm:$0xff]
      %v2450 = vld [vmem:[%s2214 + $0x158] sm:$0xff]
      %v2451 = vld [vmem:[%s2214 + $0x168] sm:$0xff]
      %v2452 = vld [vmem:[%s2214 + $0x170] sm:$0xff]
      %v2453 = vld [vmem:[%s2214 + $0x1] sm:$0xff]
      %v2454 = vld [vmem:[%s2214 + $0x9] sm:$0xff]
      %v2455 = vld [vmem:[%s2214 + $0x19] sm:$0xff]
      %v2456 = vld [vmem:[%s2214 + $0x21] sm:$0xff]
      %v2457 = vld [vmem:[%s2214 + $0x31] sm:$0xff]
      %v2458 = vld [vmem:[%s2214 + $0x39] sm:$0xff]
      %v2459 = vld [vmem:[%s2214 + $0x49] sm:$0xff]
      %v2460 = vld [vmem:[%s2214 + $0x51] sm:$0xff]
      %v2461 = vld [vmem:[%s2214 + $0x61] sm:$0xff]
      %v2462 = vld [vmem:[%s2214 + $0x69] sm:$0xff]
      %v2463 = vld [vmem:[%s2214 + $0x79] sm:$0xff]
      %v2464 = vld [vmem:[%s2214 + $0x81] sm:$0xff]
      %v2465 = vld [vmem:[%s2214 + $0x91] sm:$0xff]
      %v2466 = vld [vmem:[%s2214 + $0x99] sm:$0xff]
      %v2467 = vld [vmem:[%s2214 + $0xa9] sm:$0xff]
      %v2468 = vld [vmem:[%s2214 + $0xb1] sm:$0xff]
      %v2469 = vld [vmem:[%s2214 + $0xc1] sm:$0xff]
      %v2470 = vld [vmem:[%s2214 + $0xc9] sm:$0xff]
      %v2471 = vld [vmem:[%s2214 + $0xd9] sm:$0xff]
      %v2472 = vld [vmem:[%s2214 + $0xe1] sm:$0xff]
      %v2473 = vld [vmem:[%s2214 + $0xf1] sm:$0xff]
      %v2474 = vld [vmem:[%s2214 + $0xf9] sm:$0xff]
      %v2475 = vld [vmem:[%s2214 + $0x109] sm:$0xff]
      %v2476 = vld [vmem:[%s2214 + $0x111] sm:$0xff]
      %v2477 = vld [vmem:[%s2214 + $0x121] sm:$0xff]
      %v2478 = vld [vmem:[%s2214 + $0x129] sm:$0xff]
      %v2479 = vld [vmem:[%s2214 + $0x139] sm:$0xff]
      %v2480 = vld [vmem:[%s2214 + $0x141] sm:$0xff]
      %v2481 = vld [vmem:[%s2214 + $0x151] sm:$0xff]
      %v2482 = vld [vmem:[%s2214 + $0x159] sm:$0xff]
      %v2483 = vld [vmem:[%s2214 + $0x169] sm:$0xff]
      %v2484 = vld [vmem:[%s2214 + $0x171] sm:$0xff]
      %v2485 = vld [vmem:[%s2214 + $0x2] sm:$0xff]
      %v2486 = vld [vmem:[%s2214 + $0xa] sm:$0xff]
      %v2487 = vld [vmem:[%s2214 + $0x1a] sm:$0xff]
      %v2488 = vld [vmem:[%s2214 + $0x22] sm:$0xff]
      %v2489 = vld [vmem:[%s2214 + $0x32] sm:$0xff]
      %v2490 = vld [vmem:[%s2214 + $0x3a] sm:$0xff]
      %v2491 = vld [vmem:[%s2214 + $0x4a] sm:$0xff]
      %v2492 = vld [vmem:[%s2214 + $0x52] sm:$0xff]
      %v2493 = vld [vmem:[%s2214 + $0x62] sm:$0xff]
      %v2494 = vld [vmem:[%s2214 + $0x6a] sm:$0xff]
      %v2495 = vld [vmem:[%s2214 + $0x7a] sm:$0xff]
      %v2496 = vld [vmem:[%s2214 + $0x82] sm:$0xff]
      %v2497 = vld [vmem:[%s2214 + $0x92] sm:$0xff]
      %v2498 = vld [vmem:[%s2214 + $0x9a] sm:$0xff]
      %v2499 = vld [vmem:[%s2214 + $0xaa] sm:$0xff]
      %v2500 = vld [vmem:[%s2214 + $0xb2] sm:$0xff]
      %v2501 = vld [vmem:[%s2214 + $0xc2] sm:$0xff]
      %v2502 = vld [vmem:[%s2214 + $0xca] sm:$0xff]
      %v2503 = vld [vmem:[%s2214 + $0xda] sm:$0xff]
      %v2504 = vld [vmem:[%s2214 + $0xe2] sm:$0xff]
      %v2505 = vld [vmem:[%s2214 + $0xf2] sm:$0xff]
      %v2506 = vld [vmem:[%s2214 + $0xfa] sm:$0xff]
      %v2507 = vld [vmem:[%s2214 + $0x10a] sm:$0xff]
      %v2508 = vld [vmem:[%s2214 + $0x112] sm:$0xff]
      %v2509 = vld [vmem:[%s2214 + $0x122] sm:$0xff]
      %v2510 = vld [vmem:[%s2214 + $0x12a] sm:$0xff]
      %v2511 = vld [vmem:[%s2214 + $0x13a] sm:$0xff]
      %v2512 = vld [vmem:[%s2214 + $0x142] sm:$0xff]
      %v2513 = vld [vmem:[%s2214 + $0x152] sm:$0xff]
      %v2514 = vld [vmem:[%s2214 + $0x15a] sm:$0xff]
      %v2515 = vld [vmem:[%s2214 + $0x16a] sm:$0xff]
      %v2516 = vld [vmem:[%s2214 + $0x172] sm:$0xff]
      %s2517 = scalar_lea.vmem [#allocation2], 48
      %v2518 = vld [vmem:[%s2517] sm:$0xff]
      %v2519 = vld [vmem:[%s2517 + $0x8] sm:$0xff]
      %v2520 = vld [vmem:[%s2517 + $0x18] sm:$0xff]
      %v2521 = vld [vmem:[%s2517 + $0x20] sm:$0xff]
      %v2522 = vld [vmem:[%s2517 + $0x30] sm:$0xff]
      %v2523 = vld [vmem:[%s2517 + $0x38] sm:$0xff]
      %v2524 = vld [vmem:[%s2517 + $0x48] sm:$0xff]
      %v2525 = vld [vmem:[%s2517 + $0x50] sm:$0xff]
      %v2526 = vld [vmem:[%s2517 + $0x60] sm:$0xff]
      %v2527 = vld [vmem:[%s2517 + $0x68] sm:$0xff]
      %v2528 = vld [vmem:[%s2517 + $0x78] sm:$0xff]
      %v2529 = vld [vmem:[%s2517 + $0x80] sm:$0xff]
      %v2530 = vld [vmem:[%s2517 + $0x90] sm:$0xff]
      %v2531 = vld [vmem:[%s2517 + $0x98] sm:$0xff]
      %v2532 = vld [vmem:[%s2517 + $0xa8] sm:$0xff]
      %v2533 = vld [vmem:[%s2517 + $0xb0] sm:$0xff]
      %v2534 = vld [vmem:[%s2517 + $0xc0] sm:$0xff]
      %v2535 = vld [vmem:[%s2517 + $0xc8] sm:$0xff]
      %v2536 = vld [vmem:[%s2517 + $0xd8] sm:$0xff]
      %v2537 = vld [vmem:[%s2517 + $0xe0] sm:$0xff]
      %v2538 = vld [vmem:[%s2517 + $0xf0] sm:$0xff]
      %v2539 = vld [vmem:[%s2517 + $0xf8] sm:$0xff]
      %v2540 = vld [vmem:[%s2517 + $0x108] sm:$0xff]
      %v2541 = vld [vmem:[%s2517 + $0x110] sm:$0xff]
      %v2542 = vld [vmem:[%s2517 + $0x120] sm:$0xff]
      %v2543 = vld [vmem:[%s2517 + $0x128] sm:$0xff]
      %v2544 = vld [vmem:[%s2517 + $0x138] sm:$0xff]
      %v2545 = vld [vmem:[%s2517 + $0x140] sm:$0xff]
      %v2546 = vld [vmem:[%s2517 + $0x150] sm:$0xff]
      %v2547 = vld [vmem:[%s2517 + $0x158] sm:$0xff]
      %v2548 = vld [vmem:[%s2517 + $0x168] sm:$0xff]
      %v2549 = vld [vmem:[%s2517 + $0x170] sm:$0xff]
      %v2550 = vld [vmem:[%s2517 + $0x1] sm:$0xff]
      %v2551 = vld [vmem:[%s2517 + $0x9] sm:$0xff]
      %v2552 = vld [vmem:[%s2517 + $0x19] sm:$0xff]
      %v2553 = vld [vmem:[%s2517 + $0x21] sm:$0xff]
      %v2554 = vld [vmem:[%s2517 + $0x31] sm:$0xff]
      %v2555 = vld [vmem:[%s2517 + $0x39] sm:$0xff]
      %v2556 = vld [vmem:[%s2517 + $0x49] sm:$0xff]
      %v2557 = vld [vmem:[%s2517 + $0x51] sm:$0xff]
      %v2558 = vld [vmem:[%s2517 + $0x61] sm:$0xff]
      %v2559 = vld [vmem:[%s2517 + $0x69] sm:$0xff]
      %v2560 = vld [vmem:[%s2517 + $0x79] sm:$0xff]
      %v2561 = vld [vmem:[%s2517 + $0x81] sm:$0xff]
      %v2562 = vld [vmem:[%s2517 + $0x91] sm:$0xff]
      %v2563 = vld [vmem:[%s2517 + $0x99] sm:$0xff]
      %v2564 = vld [vmem:[%s2517 + $0xa9] sm:$0xff]
      %v2565 = vld [vmem:[%s2517 + $0xb1] sm:$0xff]
      %v2566 = vld [vmem:[%s2517 + $0xc1] sm:$0xff]
      %v2567 = vld [vmem:[%s2517 + $0xc9] sm:$0xff]
      %v2568 = vld [vmem:[%s2517 + $0xd9] sm:$0xff]
      %v2569 = vld [vmem:[%s2517 + $0xe1] sm:$0xff]
      %v2570 = vld [vmem:[%s2517 + $0xf1] sm:$0xff]
      %v2571 = vld [vmem:[%s2517 + $0xf9] sm:$0xff]
      %v2572 = vld [vmem:[%s2517 + $0x109] sm:$0xff]
      %v2573 = vld [vmem:[%s2517 + $0x111] sm:$0xff]
      %v2574 = vld [vmem:[%s2517 + $0x121] sm:$0xff]
      %v2575 = vld [vmem:[%s2517 + $0x129] sm:$0xff]
      %v2576 = vld [vmem:[%s2517 + $0x139] sm:$0xff]
      %v2577 = vld [vmem:[%s2517 + $0x141] sm:$0xff]
      %v2578 = vld [vmem:[%s2517 + $0x151] sm:$0xff]
      %v2579 = vld [vmem:[%s2517 + $0x159] sm:$0xff]
      %v2580 = vld [vmem:[%s2517 + $0x169] sm:$0xff]
      %v2581 = vld [vmem:[%s2517 + $0x171] sm:$0xff]
      %v2582 = vld [vmem:[%s2517 + $0x2] sm:$0xff]
      %v2583 = vld [vmem:[%s2517 + $0xa] sm:$0xff]
      %v2584 = vld [vmem:[%s2517 + $0x1a] sm:$0xff]
      %v2585 = vld [vmem:[%s2517 + $0x22] sm:$0xff]
      %v2586 = vld [vmem:[%s2517 + $0x32] sm:$0xff]
      %v2587 = vld [vmem:[%s2517 + $0x3a] sm:$0xff]
      %v2588 = vld [vmem:[%s2517 + $0x4a] sm:$0xff]
      %v2589 = vld [vmem:[%s2517 + $0x52] sm:$0xff]
      %v2590 = vld [vmem:[%s2517 + $0x62] sm:$0xff]
      %v2591 = vld [vmem:[%s2517 + $0x6a] sm:$0xff]
      %v2592 = vld [vmem:[%s2517 + $0x7a] sm:$0xff]
      %v2593 = vld [vmem:[%s2517 + $0x82] sm:$0xff]
      %v2594 = vld [vmem:[%s2517 + $0x92] sm:$0xff]
      %v2595 = vld [vmem:[%s2517 + $0x9a] sm:$0xff]
      %v2596 = vld [vmem:[%s2517 + $0xaa] sm:$0xff]
      %v2597 = vld [vmem:[%s2517 + $0xb2] sm:$0xff]
      %v2598 = vld [vmem:[%s2517 + $0xc2] sm:$0xff]
      %v2599 = vld [vmem:[%s2517 + $0xca] sm:$0xff]
      %v2600 = vld [vmem:[%s2517 + $0xda] sm:$0xff]
      %v2601 = vld [vmem:[%s2517 + $0xe2] sm:$0xff]
      %v2602 = vld [vmem:[%s2517 + $0xf2] sm:$0xff]
      %v2603 = vld [vmem:[%s2517 + $0xfa] sm:$0xff]
      %v2604 = vld [vmem:[%s2517 + $0x10a] sm:$0xff]
      %v2605 = vld [vmem:[%s2517 + $0x112] sm:$0xff]
      %v2606 = vld [vmem:[%s2517 + $0x122] sm:$0xff]
      %v2607 = vld [vmem:[%s2517 + $0x12a] sm:$0xff]
      %v2608 = vld [vmem:[%s2517 + $0x13a] sm:$0xff]
      %v2609 = vld [vmem:[%s2517 + $0x142] sm:$0xff]
      %v2610 = vld [vmem:[%s2517 + $0x152] sm:$0xff]
      %v2611 = vld [vmem:[%s2517 + $0x15a] sm:$0xff]
      %v2612 = vld [vmem:[%s2517 + $0x16a] sm:$0xff]
      %v2613 = vld [vmem:[%s2517 + $0x172] sm:$0xff]
      %2646 = vrot.lane.b32.xlu0 %v2357, 4
      %v2647 = vpop.permute.xlu0 %2646
      %2648 = vrot.lane.b32.xlu0 %v2358, 4
      %v2649 = vpop.permute.xlu0 %2648
      %2650 = vrot.lane.b32.xlu0 %v2359, 4
      %v2651 = vpop.permute.xlu0 %2650
      %2652 = vrot.lane.b32.xlu0 %v2360, 4
      %v2653 = vpop.permute.xlu0 %2652
      %2654 = vrot.lane.b32.xlu0 %v2361, 4
      %v2655 = vpop.permute.xlu0 %2654
      %2656 = vrot.lane.b32.xlu0 %v2362, 4
      %v2657 = vpop.permute.xlu0 %2656
      %2658 = vrot.lane.b32.xlu0 %v2363, 4
      %v2659 = vpop.permute.xlu0 %2658
      %2660 = vrot.lane.b32.xlu0 %v2364, 4
      %v2661 = vpop.permute.xlu0 %2660
      %2662 = vrot.lane.b32.xlu0 %v2365, 4
      %v2663 = vpop.permute.xlu0 %2662
      %2664 = vrot.lane.b32.xlu0 %v2366, 4
      %v2665 = vpop.permute.xlu0 %2664
      %2666 = vrot.lane.b32.xlu0 %v2367, 4
      %v2667 = vpop.permute.xlu0 %2666
      %2668 = vrot.lane.b32.xlu0 %v2368, 4
      %v2669 = vpop.permute.xlu0 %2668
      %2670 = vrot.lane.b32.xlu0 %v2369, 4
      %v2671 = vpop.permute.xlu0 %2670
      %2672 = vrot.lane.b32.xlu0 %v2370, 4
      %v2673 = vpop.permute.xlu0 %2672
      %2674 = vrot.lane.b32.xlu0 %v2371, 4
      %v2675 = vpop.permute.xlu0 %2674
      %2676 = vrot.lane.b32.xlu0 %v2372, 4
      %v2677 = vpop.permute.xlu0 %2676
      %2678 = vrot.lane.b32.xlu0 %v2373, 4
      %v2679 = vpop.permute.xlu0 %2678
      %2680 = vrot.lane.b32.xlu0 %v2374, 4
      %v2681 = vpop.permute.xlu0 %2680
      %2682 = vrot.lane.b32.xlu0 %v2375, 4
      %v2683 = vpop.permute.xlu0 %2682
      %2684 = vrot.lane.b32.xlu0 %v2376, 4
      %v2685 = vpop.permute.xlu0 %2684
      %2686 = vrot.lane.b32.xlu0 %v2377, 4
      %v2687 = vpop.permute.xlu0 %2686
      %2688 = vrot.lane.b32.xlu0 %v2378, 4
      %v2689 = vpop.permute.xlu0 %2688
      %2690 = vrot.lane.b32.xlu0 %v2379, 4
      %v2691 = vpop.permute.xlu0 %2690
      %2692 = vrot.lane.b32.xlu0 %v2380, 4
      %v2693 = vpop.permute.xlu0 %2692
      %2694 = vrot.lane.b32.xlu0 %v2381, 4
      %v2695 = vpop.permute.xlu0 %2694
      %2696 = vrot.lane.b32.xlu0 %v2382, 4
      %v2697 = vpop.permute.xlu0 %2696
      %2698 = vrot.lane.b32.xlu0 %v2383, 4
      %v2699 = vpop.permute.xlu0 %2698
      %2700 = vrot.lane.b32.xlu0 %v2384, 4
      %v2701 = vpop.permute.xlu0 %2700
      %2702 = vrot.lane.b32.xlu0 %v2385, 4
      %v2703 = vpop.permute.xlu0 %2702
      %2704 = vrot.lane.b32.xlu0 %v2386, 4
      %v2705 = vpop.permute.xlu0 %2704
      %2706 = vrot.lane.b32.xlu0 %v2387, 4
      %v2707 = vpop.permute.xlu0 %2706
      %2708 = vrot.lane.b32.xlu0 %v2388, 4
      %v2709 = vpop.permute.xlu0 %2708
      %2774 = vrot.lane.b32.xlu0 %v2389, 8
      %v2775 = vpop.permute.xlu0 %2774
      %2776 = vrot.lane.b32.xlu0 %v2390, 8
      %v2777 = vpop.permute.xlu0 %2776
      %2778 = vrot.lane.b32.xlu0 %v2391, 8
      %v2779 = vpop.permute.xlu0 %2778
      %2780 = vrot.lane.b32.xlu0 %v2392, 8
      %v2781 = vpop.permute.xlu0 %2780
      %2782 = vrot.lane.b32.xlu0 %v2393, 8
      %v2783 = vpop.permute.xlu0 %2782
      %2784 = vrot.lane.b32.xlu0 %v2394, 8
      %v2785 = vpop.permute.xlu0 %2784
      %2786 = vrot.lane.b32.xlu0 %v2395, 8
      %v2787 = vpop.permute.xlu0 %2786
      %2788 = vrot.lane.b32.xlu0 %v2396, 8
      %v2789 = vpop.permute.xlu0 %2788
      %2790 = vrot.lane.b32.xlu0 %v2397, 8
      %v2791 = vpop.permute.xlu0 %2790
      %2792 = vrot.lane.b32.xlu0 %v2398, 8
      %v2793 = vpop.permute.xlu0 %2792
      %2794 = vrot.lane.b32.xlu0 %v2399, 8
      %v2795 = vpop.permute.xlu0 %2794
      %2796 = vrot.lane.b32.xlu0 %v2400, 8
      %v2797 = vpop.permute.xlu0 %2796
      %2798 = vrot.lane.b32.xlu0 %v2401, 8
      %v2799 = vpop.permute.xlu0 %2798
      %2800 = vrot.lane.b32.xlu0 %v2402, 8
      %v2801 = vpop.permute.xlu0 %2800
      %2802 = vrot.lane.b32.xlu0 %v2403, 8
      %v2803 = vpop.permute.xlu0 %2802
      %2804 = vrot.lane.b32.xlu0 %v2404, 8
      %v2805 = vpop.permute.xlu0 %2804
      %2806 = vrot.lane.b32.xlu0 %v2405, 8
      %v2807 = vpop.permute.xlu0 %2806
      %2808 = vrot.lane.b32.xlu0 %v2406, 8
      %v2809 = vpop.permute.xlu0 %2808
      %2810 = vrot.lane.b32.xlu0 %v2407, 8
      %v2811 = vpop.permute.xlu0 %2810
      %2812 = vrot.lane.b32.xlu0 %v2408, 8
      %v2813 = vpop.permute.xlu0 %2812
      %2814 = vrot.lane.b32.xlu0 %v2409, 8
      %v2815 = vpop.permute.xlu0 %2814
      %2816 = vrot.lane.b32.xlu0 %v2410, 8
      %v2817 = vpop.permute.xlu0 %2816
      %2818 = vrot.lane.b32.xlu0 %v2411, 8
      %v2819 = vpop.permute.xlu0 %2818
      %2820 = vrot.lane.b32.xlu0 %v2412, 8
      %v2821 = vpop.permute.xlu0 %2820
      %2822 = vrot.lane.b32.xlu0 %v2413, 8
      %v2823 = vpop.permute.xlu0 %2822
      %2824 = vrot.lane.b32.xlu0 %v2414, 8
      %v2825 = vpop.permute.xlu0 %2824
      %2826 = vrot.lane.b32.xlu0 %v2415, 8
      %v2827 = vpop.permute.xlu0 %2826
      %2828 = vrot.lane.b32.xlu0 %v2416, 8
      %v2829 = vpop.permute.xlu0 %2828
      %2830 = vrot.lane.b32.xlu0 %v2417, 8
      %v2831 = vpop.permute.xlu0 %2830
      %2832 = vrot.lane.b32.xlu0 %v2418, 8
      %v2833 = vpop.permute.xlu0 %2832
      %2834 = vrot.lane.b32.xlu0 %v2419, 8
      %v2835 = vpop.permute.xlu0 %2834
      %2836 = vrot.lane.b32.xlu0 %v2420, 8
      %v2837 = vpop.permute.xlu0 %2836
      %2902 = vrot.lane.b32.xlu0 %v2421, 12
      %v2903 = vpop.permute.xlu0 %2902
      %2904 = vrot.lane.b32.xlu0 %v2422, 12
      %v2905 = vpop.permute.xlu0 %2904
      %2906 = vrot.lane.b32.xlu0 %v2423, 12
      %v2907 = vpop.permute.xlu0 %2906
      %2908 = vrot.lane.b32.xlu0 %v2424, 12
      %v2909 = vpop.permute.xlu0 %2908
      %2910 = vrot.lane.b32.xlu0 %v2425, 12
      %v2911 = vpop.permute.xlu0 %2910
      %2912 = vrot.lane.b32.xlu0 %v2426, 12
      %v2913 = vpop.permute.xlu0 %2912
      %2914 = vrot.lane.b32.xlu0 %v2427, 12
      %v2915 = vpop.permute.xlu0 %2914
      %2916 = vrot.lane.b32.xlu0 %v2428, 12
      %v2917 = vpop.permute.xlu0 %2916
      %2918 = vrot.lane.b32.xlu0 %v2429, 12
      %v2919 = vpop.permute.xlu0 %2918
      %2920 = vrot.lane.b32.xlu0 %v2430, 12
      %v2921 = vpop.permute.xlu0 %2920
      %2922 = vrot.lane.b32.xlu0 %v2431, 12
      %v2923 = vpop.permute.xlu0 %2922
      %2924 = vrot.lane.b32.xlu0 %v2432, 12
      %v2925 = vpop.permute.xlu0 %2924
      %2926 = vrot.lane.b32.xlu0 %v2433, 12
      %v2927 = vpop.permute.xlu0 %2926
      %2928 = vrot.lane.b32.xlu0 %v2434, 12
      %v2929 = vpop.permute.xlu0 %2928
      %2930 = vrot.lane.b32.xlu0 %v2435, 12
      %v2931 = vpop.permute.xlu0 %2930
      %2932 = vrot.lane.b32.xlu0 %v2436, 12
      %v2933 = vpop.permute.xlu0 %2932
      %2934 = vrot.lane.b32.xlu0 %v2437, 12
      %v2935 = vpop.permute.xlu0 %2934
      %2936 = vrot.lane.b32.xlu0 %v2438, 12
      %v2937 = vpop.permute.xlu0 %2936
      %2938 = vrot.lane.b32.xlu0 %v2439, 12
      %v2939 = vpop.permute.xlu0 %2938
      %2940 = vrot.lane.b32.xlu0 %v2440, 12
      %v2941 = vpop.permute.xlu0 %2940
      %2942 = vrot.lane.b32.xlu0 %v2441, 12
      %v2943 = vpop.permute.xlu0 %2942
      %2944 = vrot.lane.b32.xlu0 %v2442, 12
      %v2945 = vpop.permute.xlu0 %2944
      %2946 = vrot.lane.b32.xlu0 %v2443, 12
      %v2947 = vpop.permute.xlu0 %2946
      %2948 = vrot.lane.b32.xlu0 %v2444, 12
      %v2949 = vpop.permute.xlu0 %2948
      %2950 = vrot.lane.b32.xlu0 %v2445, 12
      %v2951 = vpop.permute.xlu0 %2950
      %2952 = vrot.lane.b32.xlu0 %v2446, 12
      %v2953 = vpop.permute.xlu0 %2952
      %2954 = vrot.lane.b32.xlu0 %v2447, 12
      %v2955 = vpop.permute.xlu0 %2954
      %2956 = vrot.lane.b32.xlu0 %v2448, 12
      %v2957 = vpop.permute.xlu0 %2956
      %2958 = vrot.lane.b32.xlu0 %v2449, 12
      %v2959 = vpop.permute.xlu0 %2958
      %2960 = vrot.lane.b32.xlu0 %v2450, 12
      %v2961 = vpop.permute.xlu0 %2960
      %2962 = vrot.lane.b32.xlu0 %v2451, 12
      %v2963 = vpop.permute.xlu0 %2962
      %2964 = vrot.lane.b32.xlu0 %v2452, 12
      %v2965 = vpop.permute.xlu0 %2964
      %3030 = vrot.lane.b32.xlu0 %v2453, 16
      %v3031 = vpop.permute.xlu0 %3030
      %3032 = vrot.lane.b32.xlu0 %v2454, 16
      %v3033 = vpop.permute.xlu0 %3032
      %3034 = vrot.lane.b32.xlu0 %v2455, 16
      %v3035 = vpop.permute.xlu0 %3034
      %3036 = vrot.lane.b32.xlu0 %v2456, 16
      %v3037 = vpop.permute.xlu0 %3036
      %3038 = vrot.lane.b32.xlu0 %v2457, 16
      %v3039 = vpop.permute.xlu0 %3038
      %3040 = vrot.lane.b32.xlu0 %v2458, 16
      %v3041 = vpop.permute.xlu0 %3040
      %3042 = vrot.lane.b32.xlu0 %v2459, 16
      %v3043 = vpop.permute.xlu0 %3042
      %3044 = vrot.lane.b32.xlu0 %v2460, 16
      %v3045 = vpop.permute.xlu0 %3044
      %3046 = vrot.lane.b32.xlu0 %v2461, 16
      %v3047 = vpop.permute.xlu0 %3046
      %3048 = vrot.lane.b32.xlu0 %v2462, 16
      %v3049 = vpop.permute.xlu0 %3048
      %3050 = vrot.lane.b32.xlu0 %v2463, 16
      %v3051 = vpop.permute.xlu0 %3050
      %3052 = vrot.lane.b32.xlu0 %v2464, 16
      %v3053 = vpop.permute.xlu0 %3052
      %3054 = vrot.lane.b32.xlu0 %v2465, 16
      %v3055 = vpop.permute.xlu0 %3054
      %3056 = vrot.lane.b32.xlu0 %v2466, 16
      %v3057 = vpop.permute.xlu0 %3056
      %3058 = vrot.lane.b32.xlu0 %v2467, 16
      %v3059 = vpop.permute.xlu0 %3058
      %3060 = vrot.lane.b32.xlu0 %v2468, 16
      %v3061 = vpop.permute.xlu0 %3060
      %3062 = vrot.lane.b32.xlu0 %v2469, 16
      %v3063 = vpop.permute.xlu0 %3062
      %3064 = vrot.lane.b32.xlu0 %v2470, 16
      %v3065 = vpop.permute.xlu0 %3064
      %3066 = vrot.lane.b32.xlu0 %v2471, 16
      %v3067 = vpop.permute.xlu0 %3066
      %3068 = vrot.lane.b32.xlu0 %v2472, 16
      %v3069 = vpop.permute.xlu0 %3068
      %3070 = vrot.lane.b32.xlu0 %v2473, 16
      %v3071 = vpop.permute.xlu0 %3070
      %3072 = vrot.lane.b32.xlu0 %v2474, 16
      %v3073 = vpop.permute.xlu0 %3072
      %3074 = vrot.lane.b32.xlu0 %v2475, 16
      %v3075 = vpop.permute.xlu0 %3074
      %3076 = vrot.lane.b32.xlu0 %v2476, 16
      %v3077 = vpop.permute.xlu0 %3076
      %3078 = vrot.lane.b32.xlu0 %v2477, 16
      %v3079 = vpop.permute.xlu0 %3078
      %3080 = vrot.lane.b32.xlu0 %v2478, 16
      %v3081 = vpop.permute.xlu0 %3080
      %3082 = vrot.lane.b32.xlu0 %v2479, 16
      %v3083 = vpop.permute.xlu0 %3082
      %3084 = vrot.lane.b32.xlu0 %v2480, 16
      %v3085 = vpop.permute.xlu0 %3084
      %3086 = vrot.lane.b32.xlu0 %v2481, 16
      %v3087 = vpop.permute.xlu0 %3086
      %3088 = vrot.lane.b32.xlu0 %v2482, 16
      %v3089 = vpop.permute.xlu0 %3088
      %3090 = vrot.lane.b32.xlu0 %v2483, 16
      %v3091 = vpop.permute.xlu0 %3090
      %3092 = vrot.lane.b32.xlu0 %v2484, 16
      %v3093 = vpop.permute.xlu0 %3092
      %3158 = vrot.lane.b32.xlu0 %v2485, 20
      %v3159 = vpop.permute.xlu0 %3158
      %3160 = vrot.lane.b32.xlu0 %v2486, 20
      %v3161 = vpop.permute.xlu0 %3160
      %3162 = vrot.lane.b32.xlu0 %v2487, 20
      %v3163 = vpop.permute.xlu0 %3162
      %3164 = vrot.lane.b32.xlu0 %v2488, 20
      %v3165 = vpop.permute.xlu0 %3164
      %3166 = vrot.lane.b32.xlu0 %v2489, 20
      %v3167 = vpop.permute.xlu0 %3166
      %3168 = vrot.lane.b32.xlu0 %v2490, 20
      %v3169 = vpop.permute.xlu0 %3168
      %3170 = vrot.lane.b32.xlu0 %v2491, 20
      %v3171 = vpop.permute.xlu0 %3170
      %3172 = vrot.lane.b32.xlu0 %v2492, 20
      %v3173 = vpop.permute.xlu0 %3172
      %3174 = vrot.lane.b32.xlu0 %v2493, 20
      %v3175 = vpop.permute.xlu0 %3174
      %3176 = vrot.lane.b32.xlu0 %v2494, 20
      %v3177 = vpop.permute.xlu0 %3176
      %3178 = vrot.lane.b32.xlu0 %v2495, 20
      %v3179 = vpop.permute.xlu0 %3178
      %3180 = vrot.lane.b32.xlu0 %v2496, 20
      %v3181 = vpop.permute.xlu0 %3180
      %3182 = vrot.lane.b32.xlu0 %v2497, 20
      %v3183 = vpop.permute.xlu0 %3182
      %3184 = vrot.lane.b32.xlu0 %v2498, 20
      %v3185 = vpop.permute.xlu0 %3184
      %3186 = vrot.lane.b32.xlu0 %v2499, 20
      %v3187 = vpop.permute.xlu0 %3186
      %3188 = vrot.lane.b32.xlu0 %v2500, 20
      %v3189 = vpop.permute.xlu0 %3188
      %3190 = vrot.lane.b32.xlu0 %v2501, 20
      %v3191 = vpop.permute.xlu0 %3190
      %3192 = vrot.lane.b32.xlu0 %v2502, 20
      %v3193 = vpop.permute.xlu0 %3192
      %3194 = vrot.lane.b32.xlu0 %v2503, 20
      %v3195 = vpop.permute.xlu0 %3194
      %3196 = vrot.lane.b32.xlu0 %v2504, 20
      %v3197 = vpop.permute.xlu0 %3196
      %3198 = vrot.lane.b32.xlu0 %v2505, 20
      %v3199 = vpop.permute.xlu0 %3198
      %3200 = vrot.lane.b32.xlu0 %v2506, 20
      %v3201 = vpop.permute.xlu0 %3200
      %3202 = vrot.lane.b32.xlu0 %v2507, 20
      %v3203 = vpop.permute.xlu0 %3202
      %3204 = vrot.lane.b32.xlu0 %v2508, 20
      %v3205 = vpop.permute.xlu0 %3204
      %3206 = vrot.lane.b32.xlu0 %v2509, 20
      %v3207 = vpop.permute.xlu0 %3206
      %3208 = vrot.lane.b32.xlu0 %v2510, 20
      %v3209 = vpop.permute.xlu0 %3208
      %3210 = vrot.lane.b32.xlu0 %v2511, 20
      %v3211 = vpop.permute.xlu0 %3210
      %3212 = vrot.lane.b32.xlu0 %v2512, 20
      %v3213 = vpop.permute.xlu0 %3212
      %3214 = vrot.lane.b32.xlu0 %v2513, 20
      %v3215 = vpop.permute.xlu0 %3214
      %3216 = vrot.lane.b32.xlu0 %v2514, 20
      %v3217 = vpop.permute.xlu0 %3216
      %3218 = vrot.lane.b32.xlu0 %v2515, 20
      %v3219 = vpop.permute.xlu0 %3218
      %3220 = vrot.lane.b32.xlu0 %v2516, 20
      %v3221 = vpop.permute.xlu0 %3220
      %3286 = vrot.lane.b32.xlu0 %v2518, 24
      %v3287 = vpop.permute.xlu0 %3286
      %3288 = vrot.lane.b32.xlu0 %v2519, 24
      %v3289 = vpop.permute.xlu0 %3288
      %3290 = vrot.lane.b32.xlu0 %v2520, 24
      %v3291 = vpop.permute.xlu0 %3290
      %3292 = vrot.lane.b32.xlu0 %v2521, 24
      %v3293 = vpop.permute.xlu0 %3292
      %3294 = vrot.lane.b32.xlu0 %v2522, 24
      %v3295 = vpop.permute.xlu0 %3294
      %3296 = vrot.lane.b32.xlu0 %v2523, 24
      %v3297 = vpop.permute.xlu0 %3296
      %3298 = vrot.lane.b32.xlu0 %v2524, 24
      %v3299 = vpop.permute.xlu0 %3298
      %3300 = vrot.lane.b32.xlu0 %v2525, 24
      %v3301 = vpop.permute.xlu0 %3300
      %3302 = vrot.lane.b32.xlu0 %v2526, 24
      %v3303 = vpop.permute.xlu0 %3302
      %3304 = vrot.lane.b32.xlu0 %v2527, 24
      %v3305 = vpop.permute.xlu0 %3304
      %3306 = vrot.lane.b32.xlu0 %v2528, 24
      %v3307 = vpop.permute.xlu0 %3306
      %3308 = vrot.lane.b32.xlu0 %v2529, 24
      %v3309 = vpop.permute.xlu0 %3308
      %3310 = vrot.lane.b32.xlu0 %v2530, 24
      %v3311 = vpop.permute.xlu0 %3310
      %3312 = vrot.lane.b32.xlu0 %v2531, 24
      %v3313 = vpop.permute.xlu0 %3312
      %3314 = vrot.lane.b32.xlu0 %v2532, 24
      %v3315 = vpop.permute.xlu0 %3314
      %3316 = vrot.lane.b32.xlu0 %v2533, 24
      %v3317 = vpop.permute.xlu0 %3316
      %3318 = vrot.lane.b32.xlu0 %v2534, 24
      %v3319 = vpop.permute.xlu0 %3318
      %3320 = vrot.lane.b32.xlu0 %v2535, 24
      %v3321 = vpop.permute.xlu0 %3320
      %3322 = vrot.lane.b32.xlu0 %v2536, 24
      %v3323 = vpop.permute.xlu0 %3322
      %3324 = vrot.lane.b32.xlu0 %v2537, 24
      %v3325 = vpop.permute.xlu0 %3324
      %3326 = vrot.lane.b32.xlu0 %v2538, 24
      %v3327 = vpop.permute.xlu0 %3326
      %3328 = vrot.lane.b32.xlu0 %v2539, 24
      %v3329 = vpop.permute.xlu0 %3328
      %3330 = vrot.lane.b32.xlu0 %v2540, 24
      %v3331 = vpop.permute.xlu0 %3330
      %3332 = vrot.lane.b32.xlu0 %v2541, 24
      %v3333 = vpop.permute.xlu0 %3332
      %3334 = vrot.lane.b32.xlu0 %v2542, 24
      %v3335 = vpop.permute.xlu0 %3334
      %3336 = vrot.lane.b32.xlu0 %v2543, 24
      %v3337 = vpop.permute.xlu0 %3336
      %3338 = vrot.lane.b32.xlu0 %v2544, 24
      %v3339 = vpop.permute.xlu0 %3338
      %3340 = vrot.lane.b32.xlu0 %v2545, 24
      %v3341 = vpop.permute.xlu0 %3340
      %3342 = vrot.lane.b32.xlu0 %v2546, 24
      %v3343 = vpop.permute.xlu0 %3342
      %3344 = vrot.lane.b32.xlu0 %v2547, 24
      %v3345 = vpop.permute.xlu0 %3344
      %3346 = vrot.lane.b32.xlu0 %v2548, 24
      %v3347 = vpop.permute.xlu0 %3346
      %3348 = vrot.lane.b32.xlu0 %v2549, 24
      %v3349 = vpop.permute.xlu0 %3348
      %3414 = vrot.lane.b32.xlu0 %v2550, 28
      %v3415 = vpop.permute.xlu0 %3414
      %3416 = vrot.lane.b32.xlu0 %v2551, 28
      %v3417 = vpop.permute.xlu0 %3416
      %3418 = vrot.lane.b32.xlu0 %v2552, 28
      %v3419 = vpop.permute.xlu0 %3418
      %3420 = vrot.lane.b32.xlu0 %v2553, 28
      %v3421 = vpop.permute.xlu0 %3420
      %3422 = vrot.lane.b32.xlu0 %v2554, 28
      %v3423 = vpop.permute.xlu0 %3422
      %3424 = vrot.lane.b32.xlu0 %v2555, 28
      %v3425 = vpop.permute.xlu0 %3424
      %3426 = vrot.lane.b32.xlu0 %v2556, 28
      %v3427 = vpop.permute.xlu0 %3426
      %3428 = vrot.lane.b32.xlu0 %v2557, 28
      %v3429 = vpop.permute.xlu0 %3428
      %3430 = vrot.lane.b32.xlu0 %v2558, 28
      %v3431 = vpop.permute.xlu0 %3430
      %3432 = vrot.lane.b32.xlu0 %v2559, 28
      %v3433 = vpop.permute.xlu0 %3432
      %3434 = vrot.lane.b32.xlu0 %v2560, 28
      %v3435 = vpop.permute.xlu0 %3434
      %3436 = vrot.lane.b32.xlu0 %v2561, 28
      %v3437 = vpop.permute.xlu0 %3436
      %3438 = vrot.lane.b32.xlu0 %v2562, 28
      %v3439 = vpop.permute.xlu0 %3438
      %3440 = vrot.lane.b32.xlu0 %v2563, 28
      %v3441 = vpop.permute.xlu0 %3440
      %3442 = vrot.lane.b32.xlu0 %v2564, 28
      %v3443 = vpop.permute.xlu0 %3442
      %3444 = vrot.lane.b32.xlu0 %v2565, 28
      %v3445 = vpop.permute.xlu0 %3444
      %3446 = vrot.lane.b32.xlu0 %v2566, 28
      %v3447 = vpop.permute.xlu0 %3446
      %3448 = vrot.lane.b32.xlu0 %v2567, 28
      %v3449 = vpop.permute.xlu0 %3448
      %3450 = vrot.lane.b32.xlu0 %v2568, 28
      %v3451 = vpop.permute.xlu0 %3450
      %3452 = vrot.lane.b32.xlu0 %v2569, 28
      %v3453 = vpop.permute.xlu0 %3452
      %3454 = vrot.lane.b32.xlu0 %v2570, 28
      %v3455 = vpop.permute.xlu0 %3454
      %3456 = vrot.lane.b32.xlu0 %v2571, 28
      %v3457 = vpop.permute.xlu0 %3456
      %3458 = vrot.lane.b32.xlu0 %v2572, 28
      %v3459 = vpop.permute.xlu0 %3458
      %3460 = vrot.lane.b32.xlu0 %v2573, 28
      %v3461 = vpop.permute.xlu0 %3460
      %3462 = vrot.lane.b32.xlu0 %v2574, 28
      %v3463 = vpop.permute.xlu0 %3462
      %3464 = vrot.lane.b32.xlu0 %v2575, 28
      %v3465 = vpop.permute.xlu0 %3464
      %3466 = vrot.lane.b32.xlu0 %v2576, 28
      %v3467 = vpop.permute.xlu0 %3466
      %3468 = vrot.lane.b32.xlu0 %v2577, 28
      %v3469 = vpop.permute.xlu0 %3468
      %3470 = vrot.lane.b32.xlu0 %v2578, 28
      %v3471 = vpop.permute.xlu0 %3470
      %3472 = vrot.lane.b32.xlu0 %v2579, 28
      %v3473 = vpop.permute.xlu0 %3472
      %3474 = vrot.lane.b32.xlu0 %v2580, 28
      %v3475 = vpop.permute.xlu0 %3474
      %3476 = vrot.lane.b32.xlu0 %v2581, 28
      %v3477 = vpop.permute.xlu0 %3476
      %3542 = vrot.lane.b32.xlu0 %v2582, 32
      %v3543 = vpop.permute.xlu0 %3542
      %3544 = vrot.lane.b32.xlu0 %v2583, 32
      %v3545 = vpop.permute.xlu0 %3544
      %3546 = vrot.lane.b32.xlu0 %v2584, 32
      %v3547 = vpop.permute.xlu0 %3546
      %3548 = vrot.lane.b32.xlu0 %v2585, 32
      %v3549 = vpop.permute.xlu0 %3548
      %3550 = vrot.lane.b32.xlu0 %v2586, 32
      %v3551 = vpop.permute.xlu0 %3550
      %3552 = vrot.lane.b32.xlu0 %v2587, 32
      %v3553 = vpop.permute.xlu0 %3552
      %3554 = vrot.lane.b32.xlu0 %v2588, 32
      %v3555 = vpop.permute.xlu0 %3554
      %3556 = vrot.lane.b32.xlu0 %v2589, 32
      %v3557 = vpop.permute.xlu0 %3556
      %3558 = vrot.lane.b32.xlu0 %v2590, 32
      %v3559 = vpop.permute.xlu0 %3558
      %3560 = vrot.lane.b32.xlu0 %v2591, 32
      %v3561 = vpop.permute.xlu0 %3560
      %3562 = vrot.lane.b32.xlu0 %v2592, 32
      %v3563 = vpop.permute.xlu0 %3562
      %3564 = vrot.lane.b32.xlu0 %v2593, 32
      %v3565 = vpop.permute.xlu0 %3564
      %3566 = vrot.lane.b32.xlu0 %v2594, 32
      %v3567 = vpop.permute.xlu0 %3566
      %3568 = vrot.lane.b32.xlu0 %v2595, 32
      %v3569 = vpop.permute.xlu0 %3568
      %3570 = vrot.lane.b32.xlu0 %v2596, 32
      %v3571 = vpop.permute.xlu0 %3570
      %3572 = vrot.lane.b32.xlu0 %v2597, 32
      %v3573 = vpop.permute.xlu0 %3572
      %3574 = vrot.lane.b32.xlu0 %v2598, 32
      %v3575 = vpop.permute.xlu0 %3574
      %3576 = vrot.lane.b32.xlu0 %v2599, 32
      %v3577 = vpop.permute.xlu0 %3576
      %3578 = vrot.lane.b32.xlu0 %v2600, 32
      %v3579 = vpop.permute.xlu0 %3578
      %3580 = vrot.lane.b32.xlu0 %v2601, 32
      %v3581 = vpop.permute.xlu0 %3580
      %3582 = vrot.lane.b32.xlu0 %v2602, 32
      %v3583 = vpop.permute.xlu0 %3582
      %3584 = vrot.lane.b32.xlu0 %v2603, 32
      %v3585 = vpop.permute.xlu0 %3584
      %3586 = vrot.lane.b32.xlu0 %v2604, 32
      %v3587 = vpop.permute.xlu0 %3586
      %3588 = vrot.lane.b32.xlu0 %v2605, 32
      %v3589 = vpop.permute.xlu0 %3588
      %3590 = vrot.lane.b32.xlu0 %v2606, 32
      %v3591 = vpop.permute.xlu0 %3590
      %3592 = vrot.lane.b32.xlu0 %v2607, 32
      %v3593 = vpop.permute.xlu0 %3592
      %3594 = vrot.lane.b32.xlu0 %v2608, 32
      %v3595 = vpop.permute.xlu0 %3594
      %3596 = vrot.lane.b32.xlu0 %v2609, 32
      %v3597 = vpop.permute.xlu0 %3596
      %3598 = vrot.lane.b32.xlu0 %v2610, 32
      %v3599 = vpop.permute.xlu0 %3598
      %3600 = vrot.lane.b32.xlu0 %v2611, 32
      %v3601 = vpop.permute.xlu0 %3600
      %3602 = vrot.lane.b32.xlu0 %v2612, 32
      %v3603 = vpop.permute.xlu0 %3602
      %3604 = vrot.lane.b32.xlu0 %v2613, 32
      %v3605 = vpop.permute.xlu0 %3604
      %v3638 = vsel %vm1486, %v2325, %v2647
      %v3639 = vsel %vm1486, %v2326, %v2649
      %v3640 = vsel %vm1486, %v2327, %v2651
      %v3641 = vsel %vm1486, %v2328, %v2653
      %v3642 = vsel %vm1486, %v2329, %v2655
      %v3643 = vsel %vm1486, %v2330, %v2657
      %v3644 = vsel %vm1486, %v2331, %v2659
      %v3645 = vsel %vm1486, %v2332, %v2661
      %v3646 = vsel %vm1486, %v2333, %v2663
      %v3647 = vsel %vm1486, %v2334, %v2665
      %v3648 = vsel %vm1486, %v2335, %v2667
      %v3649 = vsel %vm1486, %v2336, %v2669
      %v3650 = vsel %vm1486, %v2337, %v2671
      %v3651 = vsel %vm1486, %v2338, %v2673
      %v3652 = vsel %vm1486, %v2339, %v2675
      %v3653 = vsel %vm1486, %v2340, %v2677
      %v3654 = vsel %vm1486, %v2341, %v2679
      %v3655 = vsel %vm1486, %v2342, %v2681
      %v3656 = vsel %vm1486, %v2343, %v2683
      %v3657 = vsel %vm1486, %v2344, %v2685
      %v3658 = vsel %vm1486, %v2345, %v2687
      %v3659 = vsel %vm1486, %v2346, %v2689
      %v3660 = vsel %vm1486, %v2347, %v2691
      %v3661 = vsel %vm1486, %v2348, %v2693
      %v3662 = vsel %vm1486, %v2349, %v2695
      %v3663 = vsel %vm1486, %v2350, %v2697
      %v3664 = vsel %vm1486, %v2351, %v2699
      %v3665 = vsel %vm1486, %v2352, %v2701
      %v3666 = vsel %vm1486, %v2353, %v2703
      %v3667 = vsel %vm1486, %v2354, %v2705
      %v3668 = vsel %vm1486, %v2355, %v2707
      %v3669 = vsel %vm1486, %v2356, %v2709
      %v3670 = vsel %vm1519, %v3638, %v2775
      %v3671 = vsel %vm1519, %v3639, %v2777
      %v3672 = vsel %vm1519, %v3640, %v2779
      %v3673 = vsel %vm1519, %v3641, %v2781
      %v3674 = vsel %vm1519, %v3642, %v2783
      %v3675 = vsel %vm1519, %v3643, %v2785
      %v3676 = vsel %vm1519, %v3644, %v2787
      %v3677 = vsel %vm1519, %v3645, %v2789
      %v3678 = vsel %vm1519, %v3646, %v2791
      %v3679 = vsel %vm1519, %v3647, %v2793
      %v3680 = vsel %vm1519, %v3648, %v2795
      %v3681 = vsel %vm1519, %v3649, %v2797
      %v3682 = vsel %vm1519, %v3650, %v2799
      %v3683 = vsel %vm1519, %v3651, %v2801
      %v3684 = vsel %vm1519, %v3652, %v2803
      %v3685 = vsel %vm1519, %v3653, %v2805
      %v3686 = vsel %vm1519, %v3654, %v2807
      %v3687 = vsel %vm1519, %v3655, %v2809
      %v3688 = vsel %vm1519, %v3656, %v2811
      %v3689 = vsel %vm1519, %v3657, %v2813
      %v3690 = vsel %vm1519, %v3658, %v2815
      %v3691 = vsel %vm1519, %v3659, %v2817
      %v3692 = vsel %vm1519, %v3660, %v2819
      %v3693 = vsel %vm1519, %v3661, %v2821
      %v3694 = vsel %vm1519, %v3662, %v2823
      %v3695 = vsel %vm1519, %v3663, %v2825
      %v3696 = vsel %vm1519, %v3664, %v2827
      %v3697 = vsel %vm1519, %v3665, %v2829
      %v3698 = vsel %vm1519, %v3666, %v2831
      %v3699 = vsel %vm1519, %v3667, %v2833
      %v3700 = vsel %vm1519, %v3668, %v2835
      %v3701 = vsel %vm1519, %v3669, %v2837
      %v3702 = vsel %vm1552, %v3670, %v2903
      %v3703 = vsel %vm1552, %v3671, %v2905
      %v3704 = vsel %vm1552, %v3672, %v2907
      %v3705 = vsel %vm1552, %v3673, %v2909
      %v3706 = vsel %vm1552, %v3674, %v2911
      %v3707 = vsel %vm1552, %v3675, %v2913
      %v3708 = vsel %vm1552, %v3676, %v2915
      %v3709 = vsel %vm1552, %v3677, %v2917
      %v3710 = vsel %vm1552, %v3678, %v2919
      %v3711 = vsel %vm1552, %v3679, %v2921
      %v3712 = vsel %vm1552, %v3680, %v2923
      %v3713 = vsel %vm1552, %v3681, %v2925
      %v3714 = vsel %vm1552, %v3682, %v2927
      %v3715 = vsel %vm1552, %v3683, %v2929
      %v3716 = vsel %vm1552, %v3684, %v2931
      %v3717 = vsel %vm1552, %v3685, %v2933
      %v3718 = vsel %vm1552, %v3686, %v2935
      %v3719 = vsel %vm1552, %v3687, %v2937
      %v3720 = vsel %vm1552, %v3688, %v2939
      %v3721 = vsel %vm1552, %v3689, %v2941
      %v3722 = vsel %vm1552, %v3690, %v2943
      %v3723 = vsel %vm1552, %v3691, %v2945
      %v3724 = vsel %vm1552, %v3692, %v2947
      %v3725 = vsel %vm1552, %v3693, %v2949
      %v3726 = vsel %vm1552, %v3694, %v2951
      %v3727 = vsel %vm1552, %v3695, %v2953
      %v3728 = vsel %vm1552, %v3696, %v2955
      %v3729 = vsel %vm1552, %v3697, %v2957
      %v3730 = vsel %vm1552, %v3698, %v2959
      %v3731 = vsel %vm1552, %v3699, %v2961
      %v3732 = vsel %vm1552, %v3700, %v2963
      %v3733 = vsel %vm1552, %v3701, %v2965
      %v3734 = vsel %vm1585, %v3702, %v3031
      %v3735 = vsel %vm1585, %v3703, %v3033
      %v3736 = vsel %vm1585, %v3704, %v3035
      %v3737 = vsel %vm1585, %v3705, %v3037
      %v3738 = vsel %vm1585, %v3706, %v3039
      %v3739 = vsel %vm1585, %v3707, %v3041
      %v3740 = vsel %vm1585, %v3708, %v3043
      %v3741 = vsel %vm1585, %v3709, %v3045
      %v3742 = vsel %vm1585, %v3710, %v3047
      %v3743 = vsel %vm1585, %v3711, %v3049
      %v3744 = vsel %vm1585, %v3712, %v3051
      %v3745 = vsel %vm1585, %v3713, %v3053
      %v3746 = vsel %vm1585, %v3714, %v3055
      %v3747 = vsel %vm1585, %v3715, %v3057
      %v3748 = vsel %vm1585, %v3716, %v3059
      %v3749 = vsel %vm1585, %v3717, %v3061
      %v3750 = vsel %vm1585, %v3718, %v3063
      %v3751 = vsel %vm1585, %v3719, %v3065
      %v3752 = vsel %vm1585, %v3720, %v3067
      %v3753 = vsel %vm1585, %v3721, %v3069
      %v3754 = vsel %vm1585, %v3722, %v3071
      %v3755 = vsel %vm1585, %v3723, %v3073
      %v3756 = vsel %vm1585, %v3724, %v3075
      %v3757 = vsel %vm1585, %v3725, %v3077
      %v3758 = vsel %vm1585, %v3726, %v3079
      %v3759 = vsel %vm1585, %v3727, %v3081
      %v3760 = vsel %vm1585, %v3728, %v3083
      %v3761 = vsel %vm1585, %v3729, %v3085
      %v3762 = vsel %vm1585, %v3730, %v3087
      %v3763 = vsel %vm1585, %v3731, %v3089
      %v3764 = vsel %vm1585, %v3732, %v3091
      %v3765 = vsel %vm1585, %v3733, %v3093
      %v3766 = vsel %vm1618, %v3734, %v3159
      %v3767 = vsel %vm1618, %v3735, %v3161
      %v3768 = vsel %vm1618, %v3736, %v3163
      %v3769 = vsel %vm1618, %v3737, %v3165
      %v3770 = vsel %vm1618, %v3738, %v3167
      %v3771 = vsel %vm1618, %v3739, %v3169
      %v3772 = vsel %vm1618, %v3740, %v3171
      %v3773 = vsel %vm1618, %v3741, %v3173
      %v3774 = vsel %vm1618, %v3742, %v3175
      %v3775 = vsel %vm1618, %v3743, %v3177
      %v3776 = vsel %vm1618, %v3744, %v3179
      %v3777 = vsel %vm1618, %v3745, %v3181
      %v3778 = vsel %vm1618, %v3746, %v3183
      %v3779 = vsel %vm1618, %v3747, %v3185
      %v3780 = vsel %vm1618, %v3748, %v3187
      %v3781 = vsel %vm1618, %v3749, %v3189
      %v3782 = vsel %vm1618, %v3750, %v3191
      %v3783 = vsel %vm1618, %v3751, %v3193
      %v3784 = vsel %vm1618, %v3752, %v3195
      %v3785 = vsel %vm1618, %v3753, %v3197
      %v3786 = vsel %vm1618, %v3754, %v3199
      %v3787 = vsel %vm1618, %v3755, %v3201
      %v3788 = vsel %vm1618, %v3756, %v3203
      %v3789 = vsel %vm1618, %v3757, %v3205
      %v3790 = vsel %vm1618, %v3758, %v3207
      %v3791 = vsel %vm1618, %v3759, %v3209
      %v3792 = vsel %vm1618, %v3760, %v3211
      %v3793 = vsel %vm1618, %v3761, %v3213
      %v3794 = vsel %vm1618, %v3762, %v3215
      %v3795 = vsel %vm1618, %v3763, %v3217
      %v3796 = vsel %vm1618, %v3764, %v3219
      %v3797 = vsel %vm1618, %v3765, %v3221
      %v3798 = vsel %vm1651, %v3766, %v3287
      %v3799 = vsel %vm1651, %v3767, %v3289
      %v3800 = vsel %vm1651, %v3768, %v3291
      %v3801 = vsel %vm1651, %v3769, %v3293
      %v3802 = vsel %vm1651, %v3770, %v3295
      %v3803 = vsel %vm1651, %v3771, %v3297
      %v3804 = vsel %vm1651, %v3772, %v3299
      %v3805 = vsel %vm1651, %v3773, %v3301
      %v3806 = vsel %vm1651, %v3774, %v3303
      %v3807 = vsel %vm1651, %v3775, %v3305
      %v3808 = vsel %vm1651, %v3776, %v3307
      %v3809 = vsel %vm1651, %v3777, %v3309
      %v3810 = vsel %vm1651, %v3778, %v3311
      %v3811 = vsel %vm1651, %v3779, %v3313
      %v3812 = vsel %vm1651, %v3780, %v3315
      %v3813 = vsel %vm1651, %v3781, %v3317
      %v3814 = vsel %vm1651, %v3782, %v3319
      %v3815 = vsel %vm1651, %v3783, %v3321
      %v3816 = vsel %vm1651, %v3784, %v3323
      %v3817 = vsel %vm1651, %v3785, %v3325
      %v3818 = vsel %vm1651, %v3786, %v3327
      %v3819 = vsel %vm1651, %v3787, %v3329
      %v3820 = vsel %vm1651, %v3788, %v3331
      %v3821 = vsel %vm1651, %v3789, %v3333
      %v3822 = vsel %vm1651, %v3790, %v3335
      %v3823 = vsel %vm1651, %v3791, %v3337
      %v3824 = vsel %vm1651, %v3792, %v3339
      %v3825 = vsel %vm1651, %v3793, %v3341
      %v3826 = vsel %vm1651, %v3794, %v3343
      %v3827 = vsel %vm1651, %v3795, %v3345
      %v3828 = vsel %vm1651, %v3796, %v3347
      %v3829 = vsel %vm1651, %v3797, %v3349
      %v3830 = vsel %vm1684, %v3798, %v3415
      %v3831 = vsel %vm1684, %v3799, %v3417
      %v3832 = vsel %vm1684, %v3800, %v3419
      %v3833 = vsel %vm1684, %v3801, %v3421
      %v3834 = vsel %vm1684, %v3802, %v3423
      %v3835 = vsel %vm1684, %v3803, %v3425
      %v3836 = vsel %vm1684, %v3804, %v3427
      %v3837 = vsel %vm1684, %v3805, %v3429
      %v3838 = vsel %vm1684, %v3806, %v3431
      %v3839 = vsel %vm1684, %v3807, %v3433
      %v3840 = vsel %vm1684, %v3808, %v3435
      %v3841 = vsel %vm1684, %v3809, %v3437
      %v3842 = vsel %vm1684, %v3810, %v3439
      %v3843 = vsel %vm1684, %v3811, %v3441
      %v3844 = vsel %vm1684, %v3812, %v3443
      %v3845 = vsel %vm1684, %v3813, %v3445
      %v3846 = vsel %vm1684, %v3814, %v3447
      %v3847 = vsel %vm1684, %v3815, %v3449
      %v3848 = vsel %vm1684, %v3816, %v3451
      %v3849 = vsel %vm1684, %v3817, %v3453
      %v3850 = vsel %vm1684, %v3818, %v3455
      %v3851 = vsel %vm1684, %v3819, %v3457
      %v3852 = vsel %vm1684, %v3820, %v3459
      %v3853 = vsel %vm1684, %v3821, %v3461
      %v3854 = vsel %vm1684, %v3822, %v3463
      %v3855 = vsel %vm1684, %v3823, %v3465
      %v3856 = vsel %vm1684, %v3824, %v3467
      %v3857 = vsel %vm1684, %v3825, %v3469
      %v3858 = vsel %vm1684, %v3826, %v3471
      %v3859 = vsel %vm1684, %v3827, %v3473
      %v3860 = vsel %vm1684, %v3828, %v3475
      %v3861 = vsel %vm1684, %v3829, %v3477
      %v3862 = vsel %vm1717, %v3830, %v3543
      %v3863 = vsel %vm1717, %v3831, %v3545
      %v3864 = vsel %vm1717, %v3832, %v3547
      %v3865 = vsel %vm1717, %v3833, %v3549
      %v3866 = vsel %vm1717, %v3834, %v3551
      %v3867 = vsel %vm1717, %v3835, %v3553
      %v3868 = vsel %vm1717, %v3836, %v3555
      %v3869 = vsel %vm1717, %v3837, %v3557
      %v3870 = vsel %vm1717, %v3838, %v3559
      %v3871 = vsel %vm1717, %v3839, %v3561
      %v3872 = vsel %vm1717, %v3840, %v3563
      %v3873 = vsel %vm1717, %v3841, %v3565
      %v3874 = vsel %vm1717, %v3842, %v3567
      %v3875 = vsel %vm1717, %v3843, %v3569
      %v3876 = vsel %vm1717, %v3844, %v3571
      %v3877 = vsel %vm1717, %v3845, %v3573
      %v3878 = vsel %vm1717, %v3846, %v3575
      %v3879 = vsel %vm1717, %v3847, %v3577
      %v3880 = vsel %vm1717, %v3848, %v3579
      %v3881 = vsel %vm1717, %v3849, %v3581
      %v3882 = vsel %vm1717, %v3850, %v3583
      %v3883 = vsel %vm1717, %v3851, %v3585
      %v3884 = vsel %vm1717, %v3852, %v3587
      %v3885 = vsel %vm1717, %v3853, %v3589
      %v3886 = vsel %vm1717, %v3854, %v3591
      %v3887 = vsel %vm1717, %v3855, %v3593
      %v3888 = vsel %vm1717, %v3856, %v3595
      %v3889 = vsel %vm1717, %v3857, %v3597
      %v3890 = vsel %vm1717, %v3858, %v3599
      %v3891 = vsel %vm1717, %v3859, %v3601
      %v3892 = vsel %vm1717, %v3860, %v3603
      %v3893 = vsel %vm1717, %v3861, %v3605
      %v3894 = vpack.c.bf16 %v3863, %v3862
      %v3895 = vpack.c.bf16 %v3865, %v3864
      %v3896 = vpack.c.bf16 %v3867, %v3866
      %v3897 = vpack.c.bf16 %v3869, %v3868
      %v3898 = vpack.c.bf16 %v3871, %v3870
      %v3899 = vpack.c.bf16 %v3873, %v3872
      %v3900 = vpack.c.bf16 %v3875, %v3874
      %v3901 = vpack.c.bf16 %v3877, %v3876
      %v3902 = vpack.c.bf16 %v3879, %v3878
      %v3903 = vpack.c.bf16 %v3881, %v3880
      %v3904 = vpack.c.bf16 %v3883, %v3882
      %v3905 = vpack.c.bf16 %v3885, %v3884
      %v3906 = vpack.c.bf16 %v3887, %v3886
      %v3907 = vpack.c.bf16 %v3889, %v3888
      %v3908 = vpack.c.bf16 %v3891, %v3890
      %v3909 = vpack.c.bf16 %v3893, %v3892
      %v3910 = vld [vmem:[%s2] sm:$0xf]
      %v3911 = vld [vmem:[%s2 + $0x4] sm:$0xf]
      %v3912 = vld [vmem:[%s2 + $0x8] sm:$0xf]
      %v3913 = vld [vmem:[%s2 + $0xc] sm:$0xf]
      %v3914 = vld [vmem:[%s2 + $0x10] sm:$0x3]
      %v3920 = vunpack.c.l.b16 %v3910
      %v3921 = vunpack.c.l.b16 %v3911
      %v3922 = vunpack.c.l.b16 %v3912
      %v3923 = vunpack.c.l.b16 %v3913
      %v3924 = vunpack.c.l.b16 %v3914
      %v3925 = vpack.c.b16 %v3921, %v3920
      %v3926 = vpack.c.b16 %v3923, %v3922
      %v3927 = vpack.c.b16 %v3924, %v3924
      %v3931 = vsel %vm1786, %v3894, 0
      %v3934 = vsel %vm1786, %v3895, 0
      %v3937 = vsel %vm1786, %v3896, 0
      %v3940 = vsel %vm1786, %v3897, 0
      %v3943 = vsel %vm1786, %v3898, 0
      %v3946 = vsel %vm1786, %v3899, 0
      %v3949 = vsel %vm1786, %v3900, 0
      %v3952 = vsel %vm1786, %v3901, 0
      %v3955 = vsel %vm1786, %v3902, 0
      %v3958 = vsel %vm1786, %v3903, 0
      %v3961 = vsel %vm1786, %v3904, 0
      %v3964 = vsel %vm1786, %v3905, 0
      %v3967 = vsel %vm1786, %v3906, 0
      %v3970 = vsel %vm1786, %v3907, 0
      %v3973 = vsel %vm1786, %v3908, 0
      %v3976 = vsel %vm1786, %v3909, 0
      %v3979 = vsel %vm1835, %v3927, 0
      %3981 = vmatpush.bf16.msra.mxu0 0
      %3982 = vmatpush.bf16.msra.mxu0 0
      %3983 = vmatpush.bf16.msra.mxu0 0
      %3984 = vmatpush.bf16.msra.mxu0 0
      %3985 = vmatpush.bf16.msra.mxu0 0
      %3986 = vmatpush.bf16.msra.mxu0 %v3979
      %3987 = vmatpush.bf16.msra.mxu0 %v3926
      %3988 = vmatpush.bf16.msra.mxu0 %v3925
      %3989 = vmatmul.bf16.gmra.mxu0 %v3931
      %v3990 = vpop.f32.mrf.mxu0
      %v3991 = vadd.f32 0.0, %v3990
      %v3992 = vpop.f32.mrf.mxu0
      %v3993 = vadd.f32 0.0, %v3992
      %3994 = vmatmul.bf16.gmra.mxu0 %v3934
      %v3995 = vpop.f32.mrf.mxu0
      %v3996 = vadd.f32 0.0, %v3995
      %v3997 = vpop.f32.mrf.mxu0
      %v3998 = vadd.f32 0.0, %v3997
      %3999 = vmatmul.bf16.gmra.mxu0 %v3937
      %v4000 = vpop.f32.mrf.mxu0
      %v4001 = vadd.f32 0.0, %v4000
      %v4002 = vpop.f32.mrf.mxu0
      %v4003 = vadd.f32 0.0, %v4002
      %4004 = vmatmul.bf16.gmra.mxu0 %v3940
      %v4005 = vpop.f32.mrf.mxu0
      %v4006 = vadd.f32 0.0, %v4005
      %v4007 = vpop.f32.mrf.mxu0
      %v4008 = vadd.f32 0.0, %v4007
      %4009 = vmatmul.bf16.gmra.mxu0 %v3943
      %v4010 = vpop.f32.mrf.mxu0
      %v4011 = vadd.f32 0.0, %v4010
      %v4012 = vpop.f32.mrf.mxu0
      %v4013 = vadd.f32 0.0, %v4012
      %4014 = vmatmul.bf16.gmra.mxu0 %v3946
      %v4015 = vpop.f32.mrf.mxu0
      %v4016 = vadd.f32 0.0, %v4015
      %v4017 = vpop.f32.mrf.mxu0
      %v4018 = vadd.f32 0.0, %v4017
      %4019 = vmatmul.bf16.gmra.mxu0 %v3949
      %v4020 = vpop.f32.mrf.mxu0
      %v4021 = vadd.f32 0.0, %v4020
      %v4022 = vpop.f32.mrf.mxu0
      %v4023 = vadd.f32 0.0, %v4022
      %4024 = vmatmul.bf16.gmra.mxu0 %v3952
      %v4025 = vpop.f32.mrf.mxu0
      %v4026 = vadd.f32 0.0, %v4025
      %v4027 = vpop.f32.mrf.mxu0
      %v4028 = vadd.f32 0.0, %v4027
      %4029 = vmatmul.bf16.gmra.mxu0 %v3955
      %v4030 = vpop.f32.mrf.mxu0
      %v4031 = vadd.f32 0.0, %v4030
      %v4032 = vpop.f32.mrf.mxu0
      %v4033 = vadd.f32 0.0, %v4032
      %4034 = vmatmul.bf16.gmra.mxu0 %v3958
      %v4035 = vpop.f32.mrf.mxu0
      %v4036 = vadd.f32 0.0, %v4035
      %v4037 = vpop.f32.mrf.mxu0
      %v4038 = vadd.f32 0.0, %v4037
      %4039 = vmatmul.bf16.gmra.mxu0 %v3961
      %v4040 = vpop.f32.mrf.mxu0
      %v4041 = vadd.f32 0.0, %v4040
      %v4042 = vpop.f32.mrf.mxu0
      %v4043 = vadd.f32 0.0, %v4042
      %4044 = vmatmul.bf16.gmra.mxu0 %v3964
      %v4045 = vpop.f32.mrf.mxu0
      %v4046 = vadd.f32 0.0, %v4045
      %v4047 = vpop.f32.mrf.mxu0
      %v4048 = vadd.f32 0.0, %v4047
      %4049 = vmatmul.bf16.gmra.mxu0 %v3967
      %v4050 = vpop.f32.mrf.mxu0
      %v4051 = vadd.f32 0.0, %v4050
      %v4052 = vpop.f32.mrf.mxu0
      %v4053 = vadd.f32 0.0, %v4052
      %4054 = vmatmul.bf16.gmra.mxu0 %v3970
      %v4055 = vpop.f32.mrf.mxu0
      %v4056 = vadd.f32 0.0, %v4055
      %v4057 = vpop.f32.mrf.mxu0
      %v4058 = vadd.f32 0.0, %v4057
      %4059 = vmatmul.bf16.gmra.mxu0 %v3973
      %v4060 = vpop.f32.mrf.mxu0
      %v4061 = vadd.f32 0.0, %v4060
      %v4062 = vpop.f32.mrf.mxu0
      %v4063 = vadd.f32 0.0, %v4062
      %4064 = vmatmul.bf16.gmra.mxu0 %v3976
      %v4065 = vpop.f32.mrf.mxu0
      %v4066 = vadd.f32 0.0, %v4065
      %v4067 = vpop.f32.mrf.mxu0
      %v4068 = vadd.f32 0.0, %v4067
      %4069 = vdwg.mxu0
      %v4070 = vsel %vm1486, %v3991, 0.0
      %v4071 = vsel %vm1486, %v3993, 0.0
      %v4072 = vadd.f32 %v4070, %v4071
      %v4073 = vsel %vm1486, %v3996, 0.0
      %v4074 = vadd.f32 %v4072, %v4073
      %v4075 = vsel %vm1486, %v3998, 0.0
      %v4076 = vadd.f32 %v4074, %v4075
      %v4077 = vsel %vm1486, %v4001, 0.0
      %v4078 = vadd.f32 %v4076, %v4077
      %v4079 = vsel %vm1486, %v4003, 0.0
      %v4080 = vadd.f32 %v4078, %v4079
      %v4081 = vsel %vm1486, %v4006, 0.0
      %v4082 = vadd.f32 %v4080, %v4081
      %v4083 = vsel %vm1486, %v4008, 0.0
      %v4084 = vadd.f32 %v4082, %v4083
      %v4085 = vsel %vm1486, %v4011, 0.0
      %v4086 = vadd.f32 %v4084, %v4085
      %v4087 = vsel %vm1486, %v4013, 0.0
      %v4088 = vadd.f32 %v4086, %v4087
      %v4089 = vsel %vm1486, %v4016, 0.0
      %v4090 = vadd.f32 %v4088, %v4089
      %v4091 = vsel %vm1486, %v4018, 0.0
      %v4092 = vadd.f32 %v4090, %v4091
      %v4093 = vsel %vm1486, %v4021, 0.0
      %v4094 = vadd.f32 %v4092, %v4093
      %v4095 = vsel %vm1486, %v4023, 0.0
      %v4096 = vadd.f32 %v4094, %v4095
      %v4097 = vsel %vm1486, %v4026, 0.0
      %v4098 = vadd.f32 %v4096, %v4097
      %v4099 = vsel %vm1486, %v4028, 0.0
      %v4100 = vadd.f32 %v4098, %v4099
      %v4101 = vsel %vm1486, %v4031, 0.0
      %v4102 = vadd.f32 %v4100, %v4101
      %v4103 = vsel %vm1486, %v4033, 0.0
      %v4104 = vadd.f32 %v4102, %v4103
      %v4105 = vsel %vm1486, %v4036, 0.0
      %v4106 = vadd.f32 %v4104, %v4105
      %v4107 = vsel %vm1486, %v4038, 0.0
      %v4108 = vadd.f32 %v4106, %v4107
      %v4109 = vsel %vm1486, %v4041, 0.0
      %v4110 = vadd.f32 %v4108, %v4109
      %v4111 = vsel %vm1486, %v4043, 0.0
      %v4112 = vadd.f32 %v4110, %v4111
      %v4113 = vsel %vm1486, %v4046, 0.0
      %v4114 = vadd.f32 %v4112, %v4113
      %v4115 = vsel %vm1486, %v4048, 0.0
      %v4116 = vadd.f32 %v4114, %v4115
      %v4117 = vsel %vm1486, %v4051, 0.0
      %v4118 = vadd.f32 %v4116, %v4117
      %v4119 = vsel %vm1486, %v4053, 0.0
      %v4120 = vadd.f32 %v4118, %v4119
      %v4121 = vsel %vm1486, %v4056, 0.0
      %v4122 = vadd.f32 %v4120, %v4121
      %v4123 = vsel %vm1486, %v4058, 0.0
      %v4124 = vadd.f32 %v4122, %v4123
      %v4125 = vsel %vm1486, %v4061, 0.0
      %v4126 = vadd.f32 %v4124, %v4125
      %v4127 = vsel %vm1486, %v4063, 0.0
      %v4128 = vadd.f32 %v4126, %v4127
      %v4129 = vsel %vm1486, %v4066, 0.0
      %v4130 = vadd.f32 %v4128, %v4129
      %v4131 = vsel %vm1486, %v4068, 0.0
      %v4132 = vadd.f32 %v4130, %v4131
      %v4133 = vrot.slane %v4132, 4
      %v4134 = vadd.f32 %v4132, %v4133
      %v4135 = vrot.slane %v4134, 2
      %v4136 = vadd.f32 %v4134, %v4135
      %v4137 = vrot.slane %v4136, 1
      %v4138 = vadd.f32 %v4136, %v4137
      %v4139 = vmul.f32 %v4138, %v2003
      %v4140 = vsub.f32 %v3991, %v4139
      %v4141 = vsub.f32 %v3993, %v4139
      %v4142 = vsub.f32 %v3996, %v4139
      %v4143 = vsub.f32 %v3998, %v4139
      %v4144 = vsub.f32 %v4001, %v4139
      %v4145 = vsub.f32 %v4003, %v4139
      %v4146 = vsub.f32 %v4006, %v4139
      %v4147 = vsub.f32 %v4008, %v4139
      %v4148 = vsub.f32 %v4011, %v4139
      %v4149 = vsub.f32 %v4013, %v4139
      %v4150 = vsub.f32 %v4016, %v4139
      %v4151 = vsub.f32 %v4018, %v4139
      %v4152 = vsub.f32 %v4021, %v4139
      %v4153 = vsub.f32 %v4023, %v4139
      %v4154 = vsub.f32 %v4026, %v4139
      %v4155 = vsub.f32 %v4028, %v4139
      %v4156 = vsub.f32 %v4031, %v4139
      %v4157 = vsub.f32 %v4033, %v4139
      %v4158 = vsub.f32 %v4036, %v4139
      %v4159 = vsub.f32 %v4038, %v4139
      %v4160 = vsub.f32 %v4041, %v4139
      %v4161 = vsub.f32 %v4043, %v4139
      %v4162 = vsub.f32 %v4046, %v4139
      %v4163 = vsub.f32 %v4048, %v4139
      %v4164 = vsub.f32 %v4051, %v4139
      %v4165 = vsub.f32 %v4053, %v4139
      %v4166 = vsub.f32 %v4056, %v4139
      %v4167 = vsub.f32 %v4058, %v4139
      %v4168 = vsub.f32 %v4061, %v4139
      %v4169 = vsub.f32 %v4063, %v4139
      %v4170 = vsub.f32 %v4066, %v4139
      %v4171 = vsub.f32 %v4068, %v4139
      %v4172 = vmul.f32 %v4140, %v4140
      %v4173 = vmul.f32 %v4141, %v4141
      %v4174 = vmul.f32 %v4142, %v4142
      %v4175 = vmul.f32 %v4143, %v4143
      %v4176 = vmul.f32 %v4144, %v4144
      %v4177 = vmul.f32 %v4145, %v4145
      %v4178 = vmul.f32 %v4146, %v4146
      %v4179 = vmul.f32 %v4147, %v4147
      %v4180 = vmul.f32 %v4148, %v4148
      %v4181 = vmul.f32 %v4149, %v4149
      %v4182 = vmul.f32 %v4150, %v4150
      %v4183 = vmul.f32 %v4151, %v4151
      %v4184 = vmul.f32 %v4152, %v4152
      %v4185 = vmul.f32 %v4153, %v4153
      %v4186 = vmul.f32 %v4154, %v4154
      %v4187 = vmul.f32 %v4155, %v4155
      %v4188 = vmul.f32 %v4156, %v4156
      %v4189 = vmul.f32 %v4157, %v4157
      %v4190 = vmul.f32 %v4158, %v4158
      %v4191 = vmul.f32 %v4159, %v4159
      %v4192 = vmul.f32 %v4160, %v4160
      %v4193 = vmul.f32 %v4161, %v4161
      %v4194 = vmul.f32 %v4162, %v4162
      %v4195 = vmul.f32 %v4163, %v4163
      %v4196 = vmul.f32 %v4164, %v4164
      %v4197 = vmul.f32 %v4165, %v4165
      %v4198 = vmul.f32 %v4166, %v4166
      %v4199 = vmul.f32 %v4167, %v4167
      %v4200 = vmul.f32 %v4168, %v4168
      %v4201 = vmul.f32 %v4169, %v4169
      %v4202 = vmul.f32 %v4170, %v4170
      %v4203 = vmul.f32 %v4171, %v4171
      %v4204 = vsel %vm1486, %v4172, 0.0
      %v4205 = vsel %vm1486, %v4173, 0.0
      %v4206 = vadd.f32 %v4204, %v4205
      %v4207 = vsel %vm1486, %v4174, 0.0
      %v4208 = vadd.f32 %v4206, %v4207
      %v4209 = vsel %vm1486, %v4175, 0.0
      %v4210 = vadd.f32 %v4208, %v4209
      %v4211 = vsel %vm1486, %v4176, 0.0
      %v4212 = vadd.f32 %v4210, %v4211
      %v4213 = vsel %vm1486, %v4177, 0.0
      %v4214 = vadd.f32 %v4212, %v4213
      %v4215 = vsel %vm1486, %v4178, 0.0
      %v4216 = vadd.f32 %v4214, %v4215
      %v4217 = vsel %vm1486, %v4179, 0.0
      %v4218 = vadd.f32 %v4216, %v4217
      %v4219 = vsel %vm1486, %v4180, 0.0
      %v4220 = vadd.f32 %v4218, %v4219
      %v4221 = vsel %vm1486, %v4181, 0.0
      %v4222 = vadd.f32 %v4220, %v4221
      %v4223 = vsel %vm1486, %v4182, 0.0
      %v4224 = vadd.f32 %v4222, %v4223
      %v4225 = vsel %vm1486, %v4183, 0.0
      %v4226 = vadd.f32 %v4224, %v4225
      %v4227 = vsel %vm1486, %v4184, 0.0
      %v4228 = vadd.f32 %v4226, %v4227
      %v4229 = vsel %vm1486, %v4185, 0.0
      %v4230 = vadd.f32 %v4228, %v4229
      %v4231 = vsel %vm1486, %v4186, 0.0
      %v4232 = vadd.f32 %v4230, %v4231
      %v4233 = vsel %vm1486, %v4187, 0.0
      %v4234 = vadd.f32 %v4232, %v4233
      %v4235 = vsel %vm1486, %v4188, 0.0
      %v4236 = vadd.f32 %v4234, %v4235
      %v4237 = vsel %vm1486, %v4189, 0.0
      %v4238 = vadd.f32 %v4236, %v4237
      %v4239 = vsel %vm1486, %v4190, 0.0
      %v4240 = vadd.f32 %v4238, %v4239
      %v4241 = vsel %vm1486, %v4191, 0.0
      %v4242 = vadd.f32 %v4240, %v4241
      %v4243 = vsel %vm1486, %v4192, 0.0
      %v4244 = vadd.f32 %v4242, %v4243
      %v4245 = vsel %vm1486, %v4193, 0.0
      %v4246 = vadd.f32 %v4244, %v4245
      %v4247 = vsel %vm1486, %v4194, 0.0
      %v4248 = vadd.f32 %v4246, %v4247
      %v4249 = vsel %vm1486, %v4195, 0.0
      %v4250 = vadd.f32 %v4248, %v4249
      %v4251 = vsel %vm1486, %v4196, 0.0
      %v4252 = vadd.f32 %v4250, %v4251
      %v4253 = vsel %vm1486, %v4197, 0.0
      %v4254 = vadd.f32 %v4252, %v4253
      %v4255 = vsel %vm1486, %v4198, 0.0
      %v4256 = vadd.f32 %v4254, %v4255
      %v4257 = vsel %vm1486, %v4199, 0.0
      %v4258 = vadd.f32 %v4256, %v4257
      %v4259 = vsel %vm1486, %v4200, 0.0
      %v4260 = vadd.f32 %v4258, %v4259
      %v4261 = vsel %vm1486, %v4201, 0.0
      %v4262 = vadd.f32 %v4260, %v4261
      %v4263 = vsel %vm1486, %v4202, 0.0
      %v4264 = vadd.f32 %v4262, %v4263
      %v4265 = vsel %vm1486, %v4203, 0.0
      %v4266 = vadd.f32 %v4264, %v4265
      %v4267 = vrot.slane %v4266, 4
      %v4268 = vadd.f32 %v4266, %v4267
      %v4269 = vrot.slane %v4268, 2
      %v4270 = vadd.f32 %v4268, %v4269
      %v4271 = vrot.slane %v4270, 1
      %v4272 = vadd.f32 %v4270, %v4271
      %v4273 = vmul.f32 %v4272, %v2003
      %v4274 = vadd.f32 %v4273, 1e-05
      %v4275 = vrsqrt.pop %v4274
      %v4276 = vmul.f32 %v4275, %v4274
      %v4277 = vmul.f32 %v4276, %v4275
      %v4278 = vmul.f32 0.5, %v4277
      %v4279 = vsub.f32 1.5, %v4278
      %v4280 = vmul.f32 %v4275, %v4279
      %vm4281 = vweird.f32 %v4274
      %vm4282 = vweird.f32 %v4275
      %vm4283 = vmor %vm4281, %vm4282
      %v4284 = vsel %vm4283, %v4275, %v4280
      %v4285 = vmul.f32 %v4140, %v4284
      %v4286 = vmul.f32 %v4141, %v4284
      %v4287 = vmul.f32 %v4142, %v4284
      %v4288 = vmul.f32 %v4143, %v4284
      %v4289 = vmul.f32 %v4144, %v4284
      %v4290 = vmul.f32 %v4145, %v4284
      %v4291 = vmul.f32 %v4146, %v4284
      %v4292 = vmul.f32 %v4147, %v4284
      %v4293 = vmul.f32 %v4148, %v4284
      %v4294 = vmul.f32 %v4149, %v4284
      %v4295 = vmul.f32 %v4150, %v4284
      %v4296 = vmul.f32 %v4151, %v4284
      %v4297 = vmul.f32 %v4152, %v4284
      %v4298 = vmul.f32 %v4153, %v4284
      %v4299 = vmul.f32 %v4154, %v4284
      %v4300 = vmul.f32 %v4155, %v4284
      %v4301 = vmul.f32 %v4156, %v4284
      %v4302 = vmul.f32 %v4157, %v4284
      %v4303 = vmul.f32 %v4158, %v4284
      %v4304 = vmul.f32 %v4159, %v4284
      %v4305 = vmul.f32 %v4160, %v4284
      %v4306 = vmul.f32 %v4161, %v4284
      %v4307 = vmul.f32 %v4162, %v4284
      %v4308 = vmul.f32 %v4163, %v4284
      %v4309 = vmul.f32 %v4164, %v4284
      %v4310 = vmul.f32 %v4165, %v4284
      %v4311 = vmul.f32 %v4166, %v4284
      %v4312 = vmul.f32 %v4167, %v4284
      %v4313 = vmul.f32 %v4168, %v4284
      %v4314 = vmul.f32 %v4169, %v4284
      %v4315 = vmul.f32 %v4170, %v4284
      %v4316 = vmul.f32 %v4171, %v4284
      %v4317 = vld [vmem:[%s268 + $0x1] sm:$0xff]
      %v4318 = vld [vmem:[%s268 + $0x9] sm:$0xff]
      %v4319 = vld [vmem:[%s268 + $0x19] sm:$0xff]
      %v4320 = vld [vmem:[%s268 + $0x21] sm:$0xff]
      %v4321 = vld [vmem:[%s268 + $0x31] sm:$0xff]
      %v4322 = vld [vmem:[%s268 + $0x39] sm:$0xff]
      %v4323 = vld [vmem:[%s268 + $0x49] sm:$0xff]
      %v4324 = vld [vmem:[%s268 + $0x51] sm:$0xff]
      %v4325 = vld [vmem:[%s268 + $0x61] sm:$0xff]
      %v4326 = vld [vmem:[%s268 + $0x69] sm:$0xff]
      %v4327 = vld [vmem:[%s268 + $0x79] sm:$0xff]
      %v4328 = vld [vmem:[%s268 + $0x81] sm:$0xff]
      %v4329 = vld [vmem:[%s268 + $0x91] sm:$0xff]
      %v4330 = vld [vmem:[%s268 + $0x99] sm:$0xff]
      %v4331 = vld [vmem:[%s268 + $0xa9] sm:$0xff]
      %v4332 = vld [vmem:[%s268 + $0xb1] sm:$0xff]
      %v4333 = vld [vmem:[%s268 + $0xc1] sm:$0xff]
      %v4334 = vld [vmem:[%s268 + $0xc9] sm:$0xff]
      %v4335 = vld [vmem:[%s268 + $0xd9] sm:$0xff]
      %v4336 = vld [vmem:[%s268 + $0xe1] sm:$0xff]
      %v4337 = vld [vmem:[%s268 + $0xf1] sm:$0xff]
      %v4338 = vld [vmem:[%s268 + $0xf9] sm:$0xff]
      %v4339 = vld [vmem:[%s268 + $0x109] sm:$0xff]
      %v4340 = vld [vmem:[%s268 + $0x111] sm:$0xff]
      %v4341 = vld [vmem:[%s268 + $0x121] sm:$0xff]
      %v4342 = vld [vmem:[%s268 + $0x129] sm:$0xff]
      %v4343 = vld [vmem:[%s268 + $0x139] sm:$0xff]
      %v4344 = vld [vmem:[%s268 + $0x141] sm:$0xff]
      %v4345 = vld [vmem:[%s268 + $0x151] sm:$0xff]
      %v4346 = vld [vmem:[%s268 + $0x159] sm:$0xff]
      %v4347 = vld [vmem:[%s268 + $0x169] sm:$0xff]
      %v4348 = vld [vmem:[%s268 + $0x171] sm:$0xff]
      %v4349 = vadd.f32 %v4317, %v4285
      %v4350 = vadd.f32 %v4318, %v4286
      %v4351 = vadd.f32 %v4319, %v4287
      %v4352 = vadd.f32 %v4320, %v4288
      %v4353 = vadd.f32 %v4321, %v4289
      %v4354 = vadd.f32 %v4322, %v4290
      %v4355 = vadd.f32 %v4323, %v4291
      %v4356 = vadd.f32 %v4324, %v4292
      %v4357 = vadd.f32 %v4325, %v4293
      %v4358 = vadd.f32 %v4326, %v4294
      %v4359 = vadd.f32 %v4327, %v4295
      %v4360 = vadd.f32 %v4328, %v4296
      %v4361 = vadd.f32 %v4329, %v4297
      %v4362 = vadd.f32 %v4330, %v4298
      %v4363 = vadd.f32 %v4331, %v4299
      %v4364 = vadd.f32 %v4332, %v4300
      %v4365 = vadd.f32 %v4333, %v4301
      %v4366 = vadd.f32 %v4334, %v4302
      %v4367 = vadd.f32 %v4335, %v4303
      %v4368 = vadd.f32 %v4336, %v4304
      %v4369 = vadd.f32 %v4337, %v4305
      %v4370 = vadd.f32 %v4338, %v4306
      %v4371 = vadd.f32 %v4339, %v4307
      %v4372 = vadd.f32 %v4340, %v4308
      %v4373 = vadd.f32 %v4341, %v4309
      %v4374 = vadd.f32 %v4342, %v4310
      %v4375 = vadd.f32 %v4343, %v4311
      %v4376 = vadd.f32 %v4344, %v4312
      %v4377 = vadd.f32 %v4345, %v4313
      %v4378 = vadd.f32 %v4346, %v4314
      %v4379 = vadd.f32 %v4347, %v4315
      %v4380 = vadd.f32 %v4348, %v4316
      %4381 = vst.msk [vmem:[%s170] sm:$0xff] %vm1486, %v4349
      %4382 = vst.msk [vmem:[%s170 + $0x8] sm:$0xff] %vm1486, %v4350
      %4383 = vst.msk [vmem:[%s170 + $0x10] sm:$0xff] %vm1486, %v4351
      %4384 = vst.msk [vmem:[%s170 + $0x18] sm:$0xff] %vm1486, %v4352
      %4385 = vst.msk [vmem:[%s170 + $0x20] sm:$0xff] %vm1486, %v4353
      %4386 = vst.msk [vmem:[%s170 + $0x28] sm:$0xff] %vm1486, %v4354
      %4387 = vst.msk [vmem:[%s170 + $0x30] sm:$0xff] %vm1486, %v4355
      %4388 = vst.msk [vmem:[%s170 + $0x38] sm:$0xff] %vm1486, %v4356
      %4389 = vst.msk [vmem:[%s170 + $0x40] sm:$0xff] %vm1486, %v4357
      %4390 = vst.msk [vmem:[%s170 + $0x48] sm:$0xff] %vm1486, %v4358
      %4391 = vst.msk [vmem:[%s170 + $0x50] sm:$0xff] %vm1486, %v4359
      %4392 = vst.msk [vmem:[%s170 + $0x58] sm:$0xff] %vm1486, %v4360
      %4393 = vst.msk [vmem:[%s170 + $0x60] sm:$0xff] %vm1486, %v4361
      %4394 = vst.msk [vmem:[%s170 + $0x68] sm:$0xff] %vm1486, %v4362
      %4395 = vst.msk [vmem:[%s170 + $0x70] sm:$0xff] %vm1486, %v4363
      %4396 = vst.msk [vmem:[%s170 + $0x78] sm:$0xff] %vm1486, %v4364
      %4397 = vst.msk [vmem:[%s170 + $0x80] sm:$0xff] %vm1486, %v4365
      %4398 = vst.msk [vmem:[%s170 + $0x88] sm:$0xff] %vm1486, %v4366
      %4399 = vst.msk [vmem:[%s170 + $0x90] sm:$0xff] %vm1486, %v4367
      %4400 = vst.msk [vmem:[%s170 + $0x98] sm:$0xff] %vm1486, %v4368
      %4401 = vst.msk [vmem:[%s170 + $0xa0] sm:$0xff] %vm1486, %v4369
      %4402 = vst.msk [vmem:[%s170 + $0xa8] sm:$0xff] %vm1486, %v4370
      %4403 = vst.msk [vmem:[%s170 + $0xb0] sm:$0xff] %vm1486, %v4371
      %4404 = vst.msk [vmem:[%s170 + $0xb8] sm:$0xff] %vm1486, %v4372
      %4405 = vst.msk [vmem:[%s170 + $0xc0] sm:$0xff] %vm1486, %v4373
      %4406 = vst.msk [vmem:[%s170 + $0xc8] sm:$0xff] %vm1486, %v4374
      %4407 = vst.msk [vmem:[%s170 + $0xd0] sm:$0xff] %vm1486, %v4375
      %4408 = vst.msk [vmem:[%s170 + $0xd8] sm:$0xff] %vm1486, %v4376
      %4409 = vst.msk [vmem:[%s170 + $0xe0] sm:$0xff] %vm1486, %v4377
      %4410 = vst.msk [vmem:[%s170 + $0xe8] sm:$0xff] %vm1486, %v4378
      %4411 = vst.msk [vmem:[%s170 + $0xf0] sm:$0xff] %vm1486, %v4379
      %4412 = vst.msk [vmem:[%s170 + $0xf8] sm:$0xff] %vm1486, %v4380
      %p4413 = scmp.lt.s32.totalorder %s14, 1
      %s4414 = scalar_select %p4413, %s14, 1
      %s4415 = smul.addr %s4414, 32
      %s4416 = smul.addr %s4415, 8
      %s4417 = scalar_lea.vmem %s3, %s4416
      // Predicated region
      $region33: #{tpu_custom_call.1} parent=31 // pred_check
        %p4418 = pneg %p100
      $region34: #{tpu_custom_call.1} parent=31 // pred_check_branch
        %4420 = sbr.rel (%p4418) target = $region36
      $region35: #{tpu_custom_call.1} parent=31 // pred_region
        _
      $region36: #{tpu_custom_call.1} parent=31 // pred_fallthru
        _
    $region32: #{tpu_custom_call.1} parent=5 // pred_fallthru
      _
    %p4421 = scmp.le.s32.totalorder 2, %s9
    // Predicated region
    $region37: #{tpu_custom_call.1} parent=5 // pred_check
      %p4422 = pneg %p4421
    $region38: #{tpu_custom_call.1} parent=5 // pred_check_branch
      %4424 = sbr.rel (%p4422) target = $region40
    $region39: #{tpu_custom_call.1} parent=5 // pred_region
      %s4425 = ssub.s32 %s9, 2
      // Predicated region
      $region41: #{tpu_custom_call.1} parent=39 // pred_check
        %p4426 = pneg %p106
      $region42: #{tpu_custom_call.1} parent=39 // pred_check_branch
        %4428 = sbr.rel (%p4426) target = $region44
      $region43: #{tpu_custom_call.1} parent=39 // pred_region
        %p4429 = scmp.lt.s32.totalorder %s15, 1
        %s4430 = scalar_select %p4429, %s15, 1
        %s4431 = smul.addr %s4430, 32
        %s4432 = smul.addr %s4431, 8
        %s4433 = scalar_lea.vmem %s3, %s4432
      $region44: #{tpu_custom_call.1} parent=39 // pred_fallthru
        _
    $region40: #{tpu_custom_call.1} parent=5 // pred_fallthru
      _
  $region6: #{tpu_custom_call.1} parent=0 // loop_footer
    %s13 = sadd.s32 1, %s9
  $region7: #{tpu_custom_call.1} parent=0 // loop_footer_branch
    %8 = sbr.rel target = $region3
  $region8: #{tpu_custom_call.1} parent=0 // loop_exit
    _

</llo_original>
